<compile_context>
chip_gen: v7x
topology: tpu7x:2x2x1
jax: 0.10.0
libtpu: 0.0.40
codegen_flags: <defaults>
</compile_context>

<pallas_src>
import jax
import jax.numpy as jnp
from jax import lax
from jax.experimental import pallas as pl
from jax.experimental.pallas import tpu as pltpu

LANE = 128


def _round_up(n, m):
    return (n + m - 1) // m * m


# ----------------------------- Pallas kernels ------------------------------

def _conv_step(x_ref, w_ref, b_ref, r_ref, o_ref, acc_ref):
    """One grid step: accumulate the kd-th depth tap of a 3x3x3 conv.

    x_ref:  (1, 1, H+2, W+2, Cp)  bf16  -- one (spatially padded) input depth slice
    w_ref:  (1, 3, 3*Cp, Cp)      bf16  -- BN-scale-folded weights for this kd tap,
                                           (kh, kw*Cp+cin, cout) packed for im2col
    b_ref:  (1, Cp)               f32   -- folded BN bias
    r_ref:  (1, 1, H*W, Cp) f32 or None -- optional residual (identity branch)
    o_ref:  (1, 1, H*W, Cp)             -- output slab (lane-dense, Cp=128k)
    acc_ref:(H*W, Cp)             f32   -- VMEM accumulator across kd grid steps
    """
    kd = pl.program_id(2)

    @pl.when(kd == 0)
    def _init():
        acc_ref[...] = jnp.zeros_like(acc_ref)

    Hp2, Wp2, Cp = x_ref.shape[2], x_ref.shape[3], x_ref.shape[4]
    H, W = Hp2 - 2, Wp2 - 2
    HW = H * W

    # Upcast the whole slice once; all slicing/reshaping happens on f32 values,
    # only the final MXU operand is cast to bf16 (exact: values came from bf16).
    x = x_ref[0, 0].astype(jnp.float32)                       # (H+2, W+2, Cp)

    acc = acc_ref[...]
    for kh in range(3):                                       # short static loop
        # im2col the 3 in-plane kw taps into the K dimension: (H*W, 3*Cp).
        a = jnp.concatenate(
            [x[kh:kh + H, kw:kw + W, :].reshape(HW, Cp) for kw in range(3)],
            axis=-1).astype(jnp.bfloat16)
        acc = acc + jnp.dot(a, w_ref[0, kh],                  # (HW,3Cp)x(3Cp,Cp)
                            preferred_element_type=jnp.float32)
    acc_ref[...] = acc

    @pl.when(kd == pl.num_programs(2) - 1)
    def _finish():
        y = acc_ref[...] + b_ref[...]                         # f32 epilogue
        if r_ref is not None:
            y = y + r_ref[0, 0].astype(jnp.float32)
        o_ref[0, 0] = jnp.maximum(y, 0.0).astype(o_ref.dtype)


def _conv_bn_act_kernel(x_ref, w_ref, b_ref, o_ref, acc_ref):
    _conv_step(x_ref, w_ref, b_ref, None, o_ref, acc_ref)


def _conv_bn_add_act_kernel(x_ref, w_ref, b_ref, r_ref, o_ref, acc_ref):
    _conv_step(x_ref, w_ref, b_ref, r_ref, o_ref, acc_ref)


# ------------------------------ Python wrapper ------------------------------

def conv3x3x3_bn_act(x_pc, w, scale, bias, *, residual=None,
                     out_dtype=jnp.float32):
    """relu( conv3x3x3(x)*scale + bias [+ residual] ) as one pallas_call.

    x_pc:     (N, D, H, W, Cp)  channel-padded activation (Cp multiple of 128)
    w:        (3, 3, 3, Cin, Cout) conv weights
    scale,bias: (Cout,) folded BatchNorm scale / bias
    residual: optional (N, D, H*W, Cp) f32
    returns   (N, D, H*W, Cp) out_dtype
    """
    N, D, H, W, Cp = x_pc.shape
    Cin, Cout = w.shape[3], w.shape[4]
    HW = H * W

    # Fold BN scale into the weights, zero-pad channels, pack (kw, Cin) into K.
    wf = w.astype(jnp.float32) * scale.astype(jnp.float32)[None, None, None, None, :]
    wp = jnp.zeros((3, 3, 3, Cp, Cp), jnp.float32).at[:, :, :, :Cin, :Cout].set(wf)
    wmat = wp.reshape(3, 3, 3 * Cp, Cp).astype(jnp.bfloat16)   # (kd, kh, kw*Cp+ci, co)
    bp = jnp.zeros((1, Cp), jnp.float32).at[0, :Cout].set(bias.astype(jnp.float32))

    # bf16 MXU operands; 1-voxel zero halo in D/H/W (wrapper glue).
    xb = jnp.pad(x_pc.astype(jnp.bfloat16),
                 ((0, 0), (1, 1), (1, 1), (1, 1), (0, 0)))

    in_specs = [
        pl.BlockSpec((1, 1, H + 2, W + 2, Cp), lambda n, d, kd: (n, d + kd, 0, 0, 0)),
        pl.BlockSpec((1, 3, 3 * Cp, Cp), lambda n, d, kd: (kd, 0, 0, 0)),
        pl.BlockSpec((1, Cp), lambda n, d, kd: (0, 0)),
    ]
    args = [xb, wmat, bp]
    kernel = _conv_bn_act_kernel
    if residual is not None:
        in_specs.append(pl.BlockSpec((1, 1, HW, Cp), lambda n, d, kd: (n, d, 0, 0)))
        args.append(residual)
        kernel = _conv_bn_add_act_kernel

    return pl.pallas_call(
        kernel,
        out_shape=jax.ShapeDtypeStruct((N, D, HW, Cp), out_dtype),
        grid_spec=pltpu.PrefetchScalarGridSpec(
            num_scalar_prefetch=0,
            grid=(N, D, 3),                       # kd (depth taps) is the reduction
            in_specs=in_specs,
            out_specs=pl.BlockSpec((1, 1, HW, Cp), lambda n, d, kd: (n, d, 0, 0)),
            scratch_shapes=[pltpu.VMEM((HW, Cp), jnp.float32)],
        ),
        compiler_params=pltpu.CompilerParams(
            dimension_semantics=("parallel", "parallel", "arbitrary"),
            vmem_limit_bytes=32 * 1024 * 1024,
        ),
    )(*args)


def fold_bn(gamma, beta, mean, var, eps=1e-5):
    scale = gamma / jnp.sqrt(var + eps)
    bias = beta - mean * scale
    return scale, bias


def basic_block_3d(x, params):
    """Eval-mode BasicBlock3d forward (stride=1, downsample=None)."""
    N, D, H, W, Cin = x.shape
    planes = params["w1"].shape[-1]
    if Cin != planes:
        raise ValueError("downsample=None requires inplanes == planes "
                         f"(got inplanes={Cin}, planes={planes})")
    Cp = _round_up(planes, LANE)

    # Pad channels once to a lane-dense multiple of 128.
    x_pc = jnp.zeros((N, D, H, W, Cp), jnp.float32).at[..., :Cin].set(
        x.astype(jnp.float32))

    s1, b1 = fold_bn(params["bn1_gamma"], params["bn1_beta"],
                     params["bn1_mean"], params["bn1_var"])
    s2, b2 = fold_bn(params["bn2_gamma"], params["bn2_beta"],
                     params["bn2_mean"], params["bn2_var"])

    # conv1 -> bn1 -> relu   (intermediate kept in bf16)
    h1 = conv3x3x3_bn_act(x_pc, params["w1"], s1, b1, out_dtype=jnp.bfloat16)
    h1 = h1.reshape(N, D, H, W, Cp)

    # conv2 -> bn2 -> (+ identity, Dropout3d is identity in eval) -> relu
    res = x_pc.reshape(N, D, H * W, Cp)
    out = conv3x3x3_bn_act(h1, params["w2"], s2, b2, residual=res,
                           out_dtype=jnp.float32)
    out = out.reshape(N, D, H, W, Cp)[..., :planes]
    return out.astype(x.dtype)


# ------------------------------ reference (JAX) ------------------------------

def _ref_conv(x, w):
    return lax.conv_general_dilated(
        x, w, window_strides=(1, 1, 1), padding=((1, 1), (1, 1), (1, 1)),
        dimension_numbers=("NDHWC", "DHWIO", "NDHWC"),
        precision=lax.Precision.HIGHEST)


def _q_bf16(a):
    return a.astype(jnp.bfloat16).astype(jnp.float32)


def ref_basic_block_3d(x, params):
    """Reference with the same bf16 quantization points as the kernel path."""
    s1, b1 = fold_bn(params["bn1_gamma"], params["bn1_beta"],
                     params["bn1_mean"], params["bn1_var"])
    s2, b2 = fold_bn(params["bn2_gamma"], params["bn2_beta"],
                     params["bn2_mean"], params["bn2_var"])
    w1q = _q_bf16(params["w1"] * s1)      # BN scale folded, bf16 MXU operand
    w2q = _q_bf16(params["w2"] * s2)
    h = jnp.maximum(_ref_conv(_q_bf16(x), w1q) + b1, 0.0)
    h = _q_bf16(h)                        # kernel stores the intermediate in bf16
    o = _ref_conv(h, w2q) + b2 + x
    return jnp.maximum(o, 0.0)


# ----------------------------------- main ------------------------------------

if __name__ == "__main__":
    key = jax.random.PRNGKey(0)
    N, D, H, W = 2, 4, 8, 8
    inplanes = planes = 4   # downsample=None requires inplanes == planes

    ks = jax.random.split(key, 8)
    x = jax.random.normal(ks[0], (N, D, H, W, inplanes), jnp.float32)
    params = {
        "w1": 0.1 * jax.random.normal(ks[1], (3, 3, 3, inplanes, planes), jnp.float32),
        "w2": 0.1 * jax.random.normal(ks[2], (3, 3, 3, planes, planes), jnp.float32),
        "bn1_gamma": 1.0 + 0.1 * jax.random.normal(ks[3], (planes,), jnp.float32),
        "bn1_beta": 0.1 * jax.random.normal(ks[4], (planes,), jnp.float32),
        "bn1_mean": 0.05 * jnp.arange(planes, dtype=jnp.float32),
        "bn1_var": 1.0 + 0.1 * jnp.arange(planes, dtype=jnp.float32),
        "bn2_gamma": 1.0 + 0.1 * jax.random.normal(ks[5], (planes,), jnp.float32),
        "bn2_beta": 0.1 * jax.random.normal(ks[6], (planes,), jnp.float32),
        "bn2_mean": -0.05 * jnp.arange(planes, dtype=jnp.float32),
        "bn2_var": 1.0 + 0.05 * jnp.arange(planes, dtype=jnp.float32),
    }

    out = jax.block_until_ready(jax.jit(basic_block_3d)(x, params))
    ref = jax.block_until_ready(jax.jit(ref_basic_block_3d)(x, params))

    assert out.shape == (N, D, H, W, planes)
    max_err = float(jnp.max(jnp.abs(out - ref)))
    assert jnp.allclose(out, ref, atol=1e-2, rtol=1e-2), (
        f"mismatch vs JAX reference (max abs err {max_err})")
    print("KERNEL_OK")
</pallas_src>

<mosaic_0001>
module attributes {stable_mosaic.version = 11 : i64} {
  func.func @_conv_bn_act_kernel(%arg0: i32, %arg1: i32, %arg2: i32, %arg3: memref<1x1x10x10x128xbf16, #tpu.memory_space<vmem>>, %arg4: memref<1x3x384x128xbf16, #tpu.memory_space<vmem>>, %arg5: memref<1x128xf32, #tpu.memory_space<vmem>>, %arg6: memref<1x1x64x128xbf16, #tpu.memory_space<vmem>>, %arg7: memref<64x128xf32, #tpu.memory_space<vmem>>) attributes {dimension_semantics = [#tpu.dimension_semantics<parallel>, #tpu.dimension_semantics<parallel>, #tpu.dimension_semantics<arbitrary>], iteration_bounds = array<i64: 2, 4, 3>, scalar_prefetch = 0 : i64, scratch_operands = 1 : i64, tpu.core_type = #tpu.core_type<tc>, window_params = [{transform_indices = @transform_0, window_bounds = array<i64: 1, 1, 10, 10, 128>}, {transform_indices = @transform_1, window_bounds = array<i64: 1, 3, 384, 128>}, {pipeline_mode = #tpu.pipeline_mode<synchronous>, transform_indices = @transform_2, window_bounds = array<i64: 1, 128>}, {transform_indices = @transform_3, window_bounds = array<i64: 1, 1, 64, 128>}]} {
    %c0_i32 = arith.constant 0 : i32
    %0 = arith.cmpi eq, %arg2, %c0_i32 : i32
    %1 = arith.extui %0 : i1 to i32
    %c0_i32_0 = arith.constant 0 : i32
    %2 = arith.cmpi ne, %1, %c0_i32_0 : i32
    scf.if %2 {
      %cst_22 = arith.constant 0.000000e+00 : f32
      %47 = vector.broadcast %cst_22 : f32 to vector<64x128xf32>
      %c0_23 = arith.constant 0 : index
      %c0_24 = arith.constant 0 : index
      %48 = vector.load %arg7[%c0_23, %c0_24] : memref<64x128xf32, #tpu.memory_space<vmem>>, vector<64x128xf32>
      tpu.vector_store %arg7[%c0_23, %c0_24], %47 {strides = array<i32>} : memref<64x128xf32, #tpu.memory_space<vmem>>, vector<64x128xf32>,
    } else {
    }
    %c0 = arith.constant 0 : index
    %c0_1 = arith.constant 0 : index
    %c0_2 = arith.constant 0 : index
    %c0_3 = arith.constant 0 : index
    %c0_4 = arith.constant 0 : index
    %3 = vector.load %arg3[%c0, %c0_1, %c0_2, %c0_3, %c0_4] : memref<1x1x10x10x128xbf16, #tpu.memory_space<vmem>>, vector<1x1x10x10x128xbf16>
    %4 = vector.shape_cast %3 : vector<1x1x10x10x128xbf16> to vector<10x10x128xbf16>
    %5 = arith.extf %4 : vector<10x10x128xbf16> to vector<10x10x128xf32>
    %c0_5 = arith.constant 0 : index
    %c0_6 = arith.constant 0 : index
    %6 = vector.load %arg7[%c0_5, %c0_6] : memref<64x128xf32, #tpu.memory_space<vmem>>, vector<64x128xf32>
    %7 = vector.extract_strided_slice %5 {offsets = [0, 0, 0], sizes = [8, 8, 128], strides = [1, 1, 1]} : vector<10x10x128xf32> to vector<8x8x128xf32>
    %8 = vector.shape_cast %7 : vector<8x8x128xf32> to vector<64x128xf32>
    %9 = vector.extract_strided_slice %5 {offsets = [0, 1, 0], sizes = [8, 8, 128], strides = [1, 1, 1]} : vector<10x10x128xf32> to vector<8x8x128xf32>
    %10 = vector.shape_cast %9 : vector<8x8x128xf32> to vector<64x128xf32>
    %11 = vector.extract_strided_slice %5 {offsets = [0, 2, 0], sizes = [8, 8, 128], strides = [1, 1, 1]} : vector<10x10x128xf32> to vector<8x8x128xf32>
    %12 = vector.shape_cast %11 : vector<8x8x128xf32> to vector<64x128xf32>
    %13 = tpu.concatenate %8, %10, %12 in 1 : vector<64x128xf32>, vector<64x128xf32>, vector<64x128xf32> -> vector<64x384xf32>
    %14 = arith.truncf %13 : vector<64x384xf32> to vector<64x384xbf16>
    %c0_7 = arith.constant 0 : index
    %c0_8 = arith.constant 0 : index
    %c0_9 = arith.constant 0 : index
    %c0_10 = arith.constant 0 : index
    %15 = vector.load %arg4[%c0_7, %c0_8, %c0_9, %c0_10] : memref<1x3x384x128xbf16, #tpu.memory_space<vmem>>, vector<1x1x384x128xbf16>
    %16 = vector.shape_cast %15 : vector<1x1x384x128xbf16> to vector<384x128xbf16>
    %cst = arith.constant dense<0.000000e+00> : vector<64x128xf32>
    %17 = tpu.matmul %14, %16, %cst {dimension_numbers = #tpu.dot_dimension_numbers<[1], [0], [0], [1], [0, 0, 1, 1], [], []>} : vector<64x384xbf16>, vector<384x128xbf16>, vector<64x128xf32> -> vector<64x128xf32>
    %18 = arith.addf %6, %17 : vector<64x128xf32>
    %19 = vector.extract_strided_slice %5 {offsets = [1, 0, 0], sizes = [8, 8, 128], strides = [1, 1, 1]} : vector<10x10x128xf32> to vector<8x8x128xf32>
    %20 = vector.shape_cast %19 : vector<8x8x128xf32> to vector<64x128xf32>
    %21 = vector.extract_strided_slice %5 {offsets = [1, 1, 0], sizes = [8, 8, 128], strides = [1, 1, 1]} : vector<10x10x128xf32> to vector<8x8x128xf32>
    %22 = vector.shape_cast %21 : vector<8x8x128xf32> to vector<64x128xf32>
    %23 = vector.extract_strided_slice %5 {offsets = [1, 2, 0], sizes = [8, 8, 128], strides = [1, 1, 1]} : vector<10x10x128xf32> to vector<8x8x128xf32>
    %24 = vector.shape_cast %23 : vector<8x8x128xf32> to vector<64x128xf32>
    %25 = tpu.concatenate %20, %22, %24 in 1 : vector<64x128xf32>, vector<64x128xf32>, vector<64x128xf32> -> vector<64x384xf32>
    %26 = arith.truncf %25 : vector<64x384xf32> to vector<64x384xbf16>
    %c0_11 = arith.constant 0 : index
    %c1 = arith.constant 1 : index
    %c0_12 = arith.constant 0 : index
    %c0_13 = arith.constant 0 : index
    %27 = vector.load %arg4[%c0_11, %c1, %c0_12, %c0_13] : memref<1x3x384x128xbf16, #tpu.memory_space<vmem>>, vector<1x1x384x128xbf16>
    %28 = vector.shape_cast %27 : vector<1x1x384x128xbf16> to vector<384x128xbf16>
    %cst_14 = arith.constant dense<0.000000e+00> : vector<64x128xf32>
    %29 = tpu.matmul %26, %28, %cst_14 {dimension_numbers = #tpu.dot_dimension_numbers<[1], [0], [0], [1], [0, 0, 1, 1], [], []>} : vector<64x384xbf16>, vector<384x128xbf16>, vector<64x128xf32> -> vector<64x128xf32>
    %30 = arith.addf %18, %29 : vector<64x128xf32>
    %31 = vector.extract_strided_slice %5 {offsets = [2, 0, 0], sizes = [8, 8, 128], strides = [1, 1, 1]} : vector<10x10x128xf32> to vector<8x8x128xf32>
    %32 = vector.shape_cast %31 : vector<8x8x128xf32> to vector<64x128xf32>
    %33 = vector.extract_strided_slice %5 {offsets = [2, 1, 0], sizes = [8, 8, 128], strides = [1, 1, 1]} : vector<10x10x128xf32> to vector<8x8x128xf32>
    %34 = vector.shape_cast %33 : vector<8x8x128xf32> to vector<64x128xf32>
    %35 = vector.extract_strided_slice %5 {offsets = [2, 2, 0], sizes = [8, 8, 128], strides = [1, 1, 1]} : vector<10x10x128xf32> to vector<8x8x128xf32>
    %36 = vector.shape_cast %35 : vector<8x8x128xf32> to vector<64x128xf32>
    %37 = tpu.concatenate %32, %34, %36 in 1 : vector<64x128xf32>, vector<64x128xf32>, vector<64x128xf32> -> vector<64x384xf32>
    %38 = arith.truncf %37 : vector<64x384xf32> to vector<64x384xbf16>
    %c0_15 = arith.constant 0 : index
    %c2 = arith.constant 2 : index
    %c0_16 = arith.constant 0 : index
    %c0_17 = arith.constant 0 : index
    %39 = vector.load %arg4[%c0_15, %c2, %c0_16, %c0_17] : memref<1x3x384x128xbf16, #tpu.memory_space<vmem>>, vector<1x1x384x128xbf16>
    %40 = vector.shape_cast %39 : vector<1x1x384x128xbf16> to vector<384x128xbf16>
    %cst_18 = arith.constant dense<0.000000e+00> : vector<64x128xf32>
    %41 = tpu.matmul %38, %40, %cst_18 {dimension_numbers = #tpu.dot_dimension_numbers<[1], [0], [0], [1], [0, 0, 1, 1], [], []>} : vector<64x384xbf16>, vector<384x128xbf16>, vector<64x128xf32> -> vector<64x128xf32>
    %42 = arith.addf %30, %41 : vector<64x128xf32>
    %c0_19 = arith.constant 0 : index
    %c0_20 = arith.constant 0 : index
    %43 = vector.load %arg7[%c0_19, %c0_20] : memref<64x128xf32, #tpu.memory_space<vmem>>, vector<64x128xf32>
    tpu.vector_store %arg7[%c0_19, %c0_20], %42 {strides = array<i32>} : memref<64x128xf32, #tpu.memory_space<vmem>>, vector<64x128xf32>,
    %c2_i32 = arith.constant 2 : i32
    %44 = arith.cmpi eq, %arg2, %c2_i32 : i32
    %45 = arith.extui %44 : i1 to i32
    %c0_i32_21 = arith.constant 0 : i32
    %46 = arith.cmpi ne, %45, %c0_i32_21 : i32
    scf.if %46 {
      %c0_22 = arith.constant 0 : index
      %c0_23 = arith.constant 0 : index
      %47 = vector.load %arg7[%c0_22, %c0_23] : memref<64x128xf32, #tpu.memory_space<vmem>>, vector<64x128xf32>
      %c0_24 = arith.constant 0 : index
      %c0_25 = arith.constant 0 : index
      %48 = vector.load %arg5[%c0_24, %c0_25] : memref<1x128xf32, #tpu.memory_space<vmem>>, vector<1x128xf32>
      %49 = vector.broadcast %48 : vector<1x128xf32> to vector<64x128xf32>
      %50 = arith.addf %47, %49 : vector<64x128xf32>
      %cst_26 = arith.constant 0.000000e+00 : f32
      %51 = vector.broadcast %cst_26 : f32 to vector<64x128xf32>
      %52 = arith.maximumf %50, %51 : vector<64x128xf32>
      %53 = arith.truncf %52 : vector<64x128xf32> to vector<64x128xbf16>
      %c0_27 = arith.constant 0 : index
      %c0_28 = arith.constant 0 : index
      %c0_29 = arith.constant 0 : index
      %c0_30 = arith.constant 0 : index
      %54 = vector.load %arg6[%c0_27, %c0_28, %c0_29, %c0_30] : memref<1x1x64x128xbf16, #tpu.memory_space<vmem>>, vector<1x1x64x128xbf16>
      %55 = vector.shape_cast %54 : vector<1x1x64x128xbf16> to vector<64x128xbf16>
      %56 = vector.shape_cast %53 : vector<64x128xbf16> to vector<1x1x64x128xbf16>
      tpu.vector_store %arg6[%c0_27, %c0_28, %c0_29, %c0_30], %56 {strides = array<i32>} : memref<1x1x64x128xbf16, #tpu.memory_space<vmem>>, vector<1x1x64x128xbf16>,
    } else {
    }
    return
  }
  func.func @transform_0(%arg0: i32, %arg1: i32, %arg2: i32) -> (i32, i32, i32, i32, i32) {
    %0 = arith.addi %arg1, %arg2 : i32
    %c0_i32 = arith.constant 0 : i32
    %c0_i32_0 = arith.constant 0 : i32
    %c0_i32_1 = arith.constant 0 : i32
    %c0_i32_2 = arith.constant 0 : i32
    return %arg0, %0, %c0_i32, %c0_i32_0, %c0_i32_1 : i32, i32, i32, i32, i32
  }
  func.func @transform_1(%arg0: i32, %arg1: i32, %arg2: i32) -> (i32, i32, i32, i32) {
    %c0_i32 = arith.constant 0 : i32
    %c0_i32_0 = arith.constant 0 : i32
    %c0_i32_1 = arith.constant 0 : i32
    %c0_i32_2 = arith.constant 0 : i32
    return %arg2, %c0_i32, %c0_i32_0, %c0_i32_1 : i32, i32, i32, i32
  }
  func.func @transform_2(%arg0: i32, %arg1: i32, %arg2: i32) -> (i32, i32) {
    %c0_i32 = arith.constant 0 : i32
    %c0_i32_0 = arith.constant 0 : i32
    %c0_i32_1 = arith.constant 0 : i32
    return %c0_i32, %c0_i32_0 : i32, i32
  }
  func.func @transform_3(%arg0: i32, %arg1: i32, %arg2: i32) -> (i32, i32, i32, i32) {
    %c0_i32 = arith.constant 0 : i32
    %c0_i32_0 = arith.constant 0 : i32
    %c0_i32_1 = arith.constant 0 : i32
    return %arg0, %arg1, %c0_i32, %c0_i32_0 : i32, i32, i32, i32
  }
}

module attributes {stable_mosaic.version = 11 : i64} {
  func.func @_conv_bn_add_act_kernel(%arg0: i32, %arg1: i32, %arg2: i32, %arg3: memref<1x1x10x10x128xbf16, #tpu.memory_space<vmem>>, %arg4: memref<1x3x384x128xbf16, #tpu.memory_space<vmem>>, %arg5: memref<1x128xf32, #tpu.memory_space<vmem>>, %arg6: memref<1x1x64x128xf32, #tpu.memory_space<vmem>>, %arg7: memref<1x1x64x128xf32, #tpu.memory_space<vmem>>, %arg8: memref<64x128xf32, #tpu.memory_space<vmem>>) attributes {dimension_semantics = [#tpu.dimension_semantics<parallel>, #tpu.dimension_semantics<parallel>, #tpu.dimension_semantics<arbitrary>], iteration_bounds = array<i64: 2, 4, 3>, scalar_prefetch = 0 : i64, scratch_operands = 1 : i64, tpu.core_type = #tpu.core_type<tc>, window_params = [{transform_indices = @transform_0, window_bounds = array<i64: 1, 1, 10, 10, 128>}, {transform_indices = @transform_1, window_bounds = array<i64: 1, 3, 384, 128>}, {pipeline_mode = #tpu.pipeline_mode<synchronous>, transform_indices = @transform_2, window_bounds = array<i64: 1, 128>}, {transform_indices = @transform_3, window_bounds = array<i64: 1, 1, 64, 128>}, {transform_indices = @transform_4, window_bounds = array<i64: 1, 1, 64, 128>}]} {
    %c0_i32 = arith.constant 0 : i32
    %0 = arith.cmpi eq, %arg2, %c0_i32 : i32
    %1 = arith.extui %0 : i1 to i32
    %c0_i32_0 = arith.constant 0 : i32
    %2 = arith.cmpi ne, %1, %c0_i32_0 : i32
    scf.if %2 {
      %cst_22 = arith.constant 0.000000e+00 : f32
      %47 = vector.broadcast %cst_22 : f32 to vector<64x128xf32>
      %c0_23 = arith.constant 0 : index
      %c0_24 = arith.constant 0 : index
      %48 = vector.load %arg8[%c0_23, %c0_24] : memref<64x128xf32, #tpu.memory_space<vmem>>, vector<64x128xf32>
      tpu.vector_store %arg8[%c0_23, %c0_24], %47 {strides = array<i32>} : memref<64x128xf32, #tpu.memory_space<vmem>>, vector<64x128xf32>,
    } else {
    }
    %c0 = arith.constant 0 : index
    %c0_1 = arith.constant 0 : index
    %c0_2 = arith.constant 0 : index
    %c0_3 = arith.constant 0 : index
    %c0_4 = arith.constant 0 : index
    %3 = vector.load %arg3[%c0, %c0_1, %c0_2, %c0_3, %c0_4] : memref<1x1x10x10x128xbf16, #tpu.memory_space<vmem>>, vector<1x1x10x10x128xbf16>
    %4 = vector.shape_cast %3 : vector<1x1x10x10x128xbf16> to vector<10x10x128xbf16>
    %5 = arith.extf %4 : vector<10x10x128xbf16> to vector<10x10x128xf32>
    %c0_5 = arith.constant 0 : index
    %c0_6 = arith.constant 0 : index
    %6 = vector.load %arg8[%c0_5, %c0_6] : memref<64x128xf32, #tpu.memory_space<vmem>>, vector<64x128xf32>
    %7 = vector.extract_strided_slice %5 {offsets = [0, 0, 0], sizes = [8, 8, 128], strides = [1, 1, 1]} : vector<10x10x128xf32> to vector<8x8x128xf32>
    %8 = vector.shape_cast %7 : vector<8x8x128xf32> to vector<64x128xf32>
    %9 = vector.extract_strided_slice %5 {offsets = [0, 1, 0], sizes = [8, 8, 128], strides = [1, 1, 1]} : vector<10x10x128xf32> to vector<8x8x128xf32>
    %10 = vector.shape_cast %9 : vector<8x8x128xf32> to vector<64x128xf32>
    %11 = vector.extract_strided_slice %5 {offsets = [0, 2, 0], sizes = [8, 8, 128], strides = [1, 1, 1]} : vector<10x10x128xf32> to vector<8x8x128xf32>
    %12 = vector.shape_cast %11 : vector<8x8x128xf32> to vector<64x128xf32>
    %13 = tpu.concatenate %8, %10, %12 in 1 : vector<64x128xf32>, vector<64x128xf32>, vector<64x128xf32> -> vector<64x384xf32>
    %14 = arith.truncf %13 : vector<64x384xf32> to vector<64x384xbf16>
    %c0_7 = arith.constant 0 : index
    %c0_8 = arith.constant 0 : index
    %c0_9 = arith.constant 0 : index
    %c0_10 = arith.constant 0 : index
    %15 = vector.load %arg4[%c0_7, %c0_8, %c0_9, %c0_10] : memref<1x3x384x128xbf16, #tpu.memory_space<vmem>>, vector<1x1x384x128xbf16>
    %16 = vector.shape_cast %15 : vector<1x1x384x128xbf16> to vector<384x128xbf16>
    %cst = arith.constant dense<0.000000e+00> : vector<64x128xf32>
    %17 = tpu.matmul %14, %16, %cst {dimension_numbers = #tpu.dot_dimension_numbers<[1], [0], [0], [1], [0, 0, 1, 1], [], []>} : vector<64x384xbf16>, vector<384x128xbf16>, vector<64x128xf32> -> vector<64x128xf32>
    %18 = arith.addf %6, %17 : vector<64x128xf32>
    %19 = vector.extract_strided_slice %5 {offsets = [1, 0, 0], sizes = [8, 8, 128], strides = [1, 1, 1]} : vector<10x10x128xf32> to vector<8x8x128xf32>
    %20 = vector.shape_cast %19 : vector<8x8x128xf32> to vector<64x128xf32>
    %21 = vector.extract_strided_slice %5 {offsets = [1, 1, 0], sizes = [8, 8, 128], strides = [1, 1, 1]} : vector<10x10x128xf32> to vector<8x8x128xf32>
    %22 = vector.shape_cast %21 : vector<8x8x128xf32> to vector<64x128xf32>
    %23 = vector.extract_strided_slice %5 {offsets = [1, 2, 0], sizes = [8, 8, 128], strides = [1, 1, 1]} : vector<10x10x128xf32> to vector<8x8x128xf32>
    %24 = vector.shape_cast %23 : vector<8x8x128xf32> to vector<64x128xf32>
    %25 = tpu.concatenate %20, %22, %24 in 1 : vector<64x128xf32>, vector<64x128xf32>, vector<64x128xf32> -> vector<64x384xf32>
    %26 = arith.truncf %25 : vector<64x384xf32> to vector<64x384xbf16>
    %c0_11 = arith.constant 0 : index
    %c1 = arith.constant 1 : index
    %c0_12 = arith.constant 0 : index
    %c0_13 = arith.constant 0 : index
    %27 = vector.load %arg4[%c0_11, %c1, %c0_12, %c0_13] : memref<1x3x384x128xbf16, #tpu.memory_space<vmem>>, vector<1x1x384x128xbf16>
    %28 = vector.shape_cast %27 : vector<1x1x384x128xbf16> to vector<384x128xbf16>
    %cst_14 = arith.constant dense<0.000000e+00> : vector<64x128xf32>
    %29 = tpu.matmul %26, %28, %cst_14 {dimension_numbers = #tpu.dot_dimension_numbers<[1], [0], [0], [1], [0, 0, 1, 1], [], []>} : vector<64x384xbf16>, vector<384x128xbf16>, vector<64x128xf32> -> vector<64x128xf32>
    %30 = arith.addf %18, %29 : vector<64x128xf32>
    %31 = vector.extract_strided_slice %5 {offsets = [2, 0, 0], sizes = [8, 8, 128], strides = [1, 1, 1]} : vector<10x10x128xf32> to vector<8x8x128xf32>
    %32 = vector.shape_cast %31 : vector<8x8x128xf32> to vector<64x128xf32>
    %33 = vector.extract_strided_slice %5 {offsets = [2, 1, 0], sizes = [8, 8, 128], strides = [1, 1, 1]} : vector<10x10x128xf32> to vector<8x8x128xf32>
    %34 = vector.shape_cast %33 : vector<8x8x128xf32> to vector<64x128xf32>
    %35 = vector.extract_strided_slice %5 {offsets = [2, 2, 0], sizes = [8, 8, 128], strides = [1, 1, 1]} : vector<10x10x128xf32> to vector<8x8x128xf32>
    %36 = vector.shape_cast %35 : vector<8x8x128xf32> to vector<64x128xf32>
    %37 = tpu.concatenate %32, %34, %36 in 1 : vector<64x128xf32>, vector<64x128xf32>, vector<64x128xf32> -> vector<64x384xf32>
    %38 = arith.truncf %37 : vector<64x384xf32> to vector<64x384xbf16>
    %c0_15 = arith.constant 0 : index
    %c2 = arith.constant 2 : index
    %c0_16 = arith.constant 0 : index
    %c0_17 = arith.constant 0 : index
    %39 = vector.load %arg4[%c0_15, %c2, %c0_16, %c0_17] : memref<1x3x384x128xbf16, #tpu.memory_space<vmem>>, vector<1x1x384x128xbf16>
    %40 = vector.shape_cast %39 : vector<1x1x384x128xbf16> to vector<384x128xbf16>
    %cst_18 = arith.constant dense<0.000000e+00> : vector<64x128xf32>
    %41 = tpu.matmul %38, %40, %cst_18 {dimension_numbers = #tpu.dot_dimension_numbers<[1], [0], [0], [1], [0, 0, 1, 1], [], []>} : vector<64x384xbf16>, vector<384x128xbf16>, vector<64x128xf32> -> vector<64x128xf32>
    %42 = arith.addf %30, %41 : vector<64x128xf32>
    %c0_19 = arith.constant 0 : index
    %c0_20 = arith.constant 0 : index
    %43 = vector.load %arg8[%c0_19, %c0_20] : memref<64x128xf32, #tpu.memory_space<vmem>>, vector<64x128xf32>
    tpu.vector_store %arg8[%c0_19, %c0_20], %42 {strides = array<i32>} : memref<64x128xf32, #tpu.memory_space<vmem>>, vector<64x128xf32>,
    %c2_i32 = arith.constant 2 : i32
    %44 = arith.cmpi eq, %arg2, %c2_i32 : i32
    %45 = arith.extui %44 : i1 to i32
    %c0_i32_21 = arith.constant 0 : i32
    %46 = arith.cmpi ne, %45, %c0_i32_21 : i32
    scf.if %46 {
      %c0_22 = arith.constant 0 : index
      %c0_23 = arith.constant 0 : index
      %47 = vector.load %arg8[%c0_22, %c0_23] : memref<64x128xf32, #tpu.memory_space<vmem>>, vector<64x128xf32>
      %c0_24 = arith.constant 0 : index
      %c0_25 = arith.constant 0 : index
      %48 = vector.load %arg5[%c0_24, %c0_25] : memref<1x128xf32, #tpu.memory_space<vmem>>, vector<1x128xf32>
      %49 = vector.broadcast %48 : vector<1x128xf32> to vector<64x128xf32>
      %50 = arith.addf %47, %49 : vector<64x128xf32>
      %c0_26 = arith.constant 0 : index
      %c0_27 = arith.constant 0 : index
      %c0_28 = arith.constant 0 : index
      %c0_29 = arith.constant 0 : index
      %51 = vector.load %arg6[%c0_26, %c0_27, %c0_28, %c0_29] : memref<1x1x64x128xf32, #tpu.memory_space<vmem>>, vector<1x1x64x128xf32>
      %52 = vector.shape_cast %51 : vector<1x1x64x128xf32> to vector<64x128xf32>
      %53 = arith.addf %50, %52 : vector<64x128xf32>
      %cst_30 = arith.constant 0.000000e+00 : f32
      %54 = vector.broadcast %cst_30 : f32 to vector<64x128xf32>
      %55 = arith.maximumf %53, %54 : vector<64x128xf32>
      %c0_31 = arith.constant 0 : index
      %c0_32 = arith.constant 0 : index
      %c0_33 = arith.constant 0 : index
      %c0_34 = arith.constant 0 : index
      %56 = vector.load %arg7[%c0_31, %c0_32, %c0_33, %c0_34] : memref<1x1x64x128xf32, #tpu.memory_space<vmem>>, vector<1x1x64x128xf32>
      %57 = vector.shape_cast %56 : vector<1x1x64x128xf32> to vector<64x128xf32>
      %58 = vector.shape_cast %55 : vector<64x128xf32> to vector<1x1x64x128xf32>
      tpu.vector_store %arg7[%c0_31, %c0_32, %c0_33, %c0_34], %58 {strides = array<i32>} : memref<1x1x64x128xf32, #tpu.memory_space<vmem>>, vector<1x1x64x128xf32>,
    } else {
    }
    return
  }
  func.func @transform_0(%arg0: i32, %arg1: i32, %arg2: i32) -> (i32, i32, i32, i32, i32) {
    %0 = arith.addi %arg1, %arg2 : i32
    %c0_i32 = arith.constant 0 : i32
    %c0_i32_0 = arith.constant 0 : i32
    %c0_i32_1 = arith.constant 0 : i32
    %c0_i32_2 = arith.constant 0 : i32
    return %arg0, %0, %c0_i32, %c0_i32_0, %c0_i32_1 : i32, i32, i32, i32, i32
  }
  func.func @transform_1(%arg0: i32, %arg1: i32, %arg2: i32) -> (i32, i32, i32, i32) {
    %c0_i32 = arith.constant 0 : i32
    %c0_i32_0 = arith.constant 0 : i32
    %c0_i32_1 = arith.constant 0 : i32
    %c0_i32_2 = arith.constant 0 : i32
    return %arg2, %c0_i32, %c0_i32_0, %c0_i32_1 : i32, i32, i32, i32
  }
  func.func @transform_2(%arg0: i32, %arg1: i32, %arg2: i32) -> (i32, i32) {
    %c0_i32 = arith.constant 0 : i32
    %c0_i32_0 = arith.constant 0 : i32
    %c0_i32_1 = arith.constant 0 : i32
    return %c0_i32, %c0_i32_0 : i32, i32
  }
  func.func @transform_3(%arg0: i32, %arg1: i32, %arg2: i32) -> (i32, i32, i32, i32) {
    %c0_i32 = arith.constant 0 : i32
    %c0_i32_0 = arith.constant 0 : i32
    %c0_i32_1 = arith.constant 0 : i32
    return %arg0, %arg1, %c0_i32, %c0_i32_0 : i32, i32, i32, i32
  }
  func.func @transform_4(%arg0: i32, %arg1: i32, %arg2: i32) -> (i32, i32, i32, i32) {
    %c0_i32 = arith.constant 0 : i32
    %c0_i32_0 = arith.constant 0 : i32
    %c0_i32_1 = arith.constant 0 : i32
    return %arg0, %arg1, %c0_i32, %c0_i32_0 : i32, i32, i32, i32
  }
}

</mosaic_0001>

<llo_original>
// kernel: basic_block_3d.3
$region0: #{basic_block_3d.3}
  #allocation0 [shape = 'u32[]', space=smem, size = 0x4, offset = 0x4, fixed_abs, tag = 'smem constant byte address 0x4 - core index']
  #allocation1 [shape = 'u32[144,128]{1,0:T(1,128)}', space=vmem, size = 0x12000, scoped, tag = 'internal scratch']
  #allocation2 [shape = 'f32[64,128]{1,0:T(8,128)}', space=vmem, size = 0x8000, scoped, tag = 'scratch operand']
  %s0 = inlined_call_operand.vmem [shape: bf16[2,6,10,10,128], index: 0, kind: input, shape index: {}]
  %s1 = inlined_call_operand.vmem [shape: bf16[3,3,384,128], index: 1, kind: input, shape index: {}]
  %s2 = inlined_call_operand.vmem [shape: f32[1,128], index: 2, kind: input, shape index: {}]
  %s3 = inlined_call_operand.vmem [shape: f32[2,4,64,128], index: 3, kind: input, shape index: {}]
  %s4 = inlined_call_operand.vmem [shape: f32[2,4,64,128], index: 4, kind: output, shape index: {}]
  %s5 = sld [smem:[#allocation0]]
  $region57: #{basic_block_3d.3} parent=0
    _
  %s7 = ssub.s32 1, %s5
  %s8 = scalar_select 0, %s7, %s5
  loop: start=0, step=1, limit=26
  $region2: #{basic_block_3d.3} parent=0 // loop_pre_header
    _
  $region3: #{basic_block_3d.3} parent=0 // loop_header
    %s10 = sphi 0, %s14
    %p11 = scmp.ge.s32.totalorder %s10, 26
    %s17 = sphi 0, %s36
    %s18 = sphi 0, %s32
    %s19 = sphi 0, %s28
    %s20 = sphi 0, %s17
    %s21 = sphi 0, %s18
    %s22 = sphi 0, %s19
    %s23 = sphi 0, %s20
    %s24 = sphi 0, %s21
    %s25 = sphi 0, %s22
    %s43 = sphi 0, %s45
    %s46 = sphi 0, %s43
    %s47 = sphi 0, %s46
    %s63 = sphi 0, %s47
    %s69 = sphi 0, %s71
    %s72 = sphi 0, %s69
    %s73 = sphi 0, %s72
    %s89 = sphi 0, %s73
    %s93 = sphi 0, %s93
    %s95 = sphi 0, %s93
    %s96 = sphi 0, %s95
    %s110 = sphi 0, %s96
    %s118 = sphi 0, %s120
    %s121 = sphi 0, %s118
    %s122 = sphi 0, %s121
    %s138 = sphi 0, %s122
    %s146 = sphi 0, %s148
    %s149 = sphi 0, %s146
    %s150 = sphi 0, %s149
    %s166 = sphi 0, %s150
  $region4: #{basic_block_3d.3} parent=0 // loop_header_branch
    %13 = sbr.rel (%p11) target = $region8
  $region5: #{basic_block_3d.3} parent=0 // loop_body
    %s15 = ssub.s32 %s10, 1
    %s16 = ssub.s32 %s10, 2
    %s26 = sadd.s32 1, %s19
    %p27 = scmp.ge.s32.totalorder %s26, 3
    %s28 = scalar_select %p27, 0, %s26
    %s29 = sadd.s32 1, %s18
    %s30 = scalar_select %p27, %s29, %s18
    %p31 = scmp.ge.s32.totalorder %s30, 4
    %s32 = scalar_select %p31, 0, %s30
    %s33 = sadd.s32 1, %s17
    %s34 = scalar_select %p31, %s33, %s17
    %p35 = scmp.ge.s32.totalorder %s34, 2
    %s36 = scalar_select %p35, 0, %s34
    %s37 = sadd.s32 %s18, %s19
    %s38 = sadd.s32 %s32, %s28
    %s39 = ssub.s32 %s17, %s36
    %s40 = ssub.s32 %s37, %s38
    %s41 = sor.u32 %s39, %s40
    %p42 = scmp.eq.s32.totalorder %s41, 0
    %s44 = sadd.s32 %s43, 1
    %s45 = scalar_select %p42, %s43, %s44
    %p48 = pneg %p42
    %p49 = scmp.eq.s32.totalorder %s10, 23
    %p50 = por %p48, %p49
    %p51 = scmp.ne.s32.totalorder %s43, %s46
    %p52 = scmp.eq.s32.totalorder %s10, 0
    %p53 = por %p51, %p52
    %p54 = scmp.ne.s32.totalorder %s43, %s46
    %p55 = scmp.eq.s32.totalorder %s15, 23
    %p56 = por %p54, %p55
    %p57 = scmp.ne.s32.totalorder %s46, %s47
    %p58 = scmp.eq.s32.totalorder %s15, 0
    %p59 = por %p57, %p58
    %p60 = scmp.ne.s32.totalorder %s46, %s47
    %p61 = scmp.eq.s32.totalorder %s16, 23
    %p62 = por %p60, %p61
    %p64 = scmp.ne.s32.totalorder %s47, %s63
    %p65 = scmp.eq.s32.totalorder %s16, 0
    %p66 = por %p64, %p65
    %s67 = ssub.s32 %s19, %s28
    %p68 = scmp.eq.s32.totalorder %s67, 0
    %s70 = sadd.s32 %s69, 1
    %s71 = scalar_select %p68, %s69, %s70
    %p74 = pneg %p68
    %p75 = scmp.eq.s32.totalorder %s10, 23
    %p76 = por %p74, %p75
    %p77 = scmp.ne.s32.totalorder %s69, %s72
    %p78 = scmp.eq.s32.totalorder %s10, 0
    %p79 = por %p77, %p78
    %p80 = scmp.ne.s32.totalorder %s69, %s72
    %p81 = scmp.eq.s32.totalorder %s15, 23
    %p82 = por %p80, %p81
    %p83 = scmp.ne.s32.totalorder %s72, %s73
    %p84 = scmp.eq.s32.totalorder %s15, 0
    %p85 = por %p83, %p84
    %p86 = scmp.ne.s32.totalorder %s72, %s73
    %p87 = scmp.eq.s32.totalorder %s16, 23
    %p88 = por %p86, %p87
    %p90 = scmp.ne.s32.totalorder %s73, %s89
    %p91 = scmp.eq.s32.totalorder %s16, 0
    %p92 = por %p90, %p91
    %s94 = sadd.s32 %s93, 1
    %p97 = scmp.eq.s32.totalorder %s10, 23
    %p98 = scmp.ne.s32.totalorder %s93, %s95
    %p99 = scmp.eq.s32.totalorder %s10, 0
    %p100 = por %p98, %p99
    %p101 = scmp.ne.s32.totalorder %s93, %s95
    %p102 = scmp.eq.s32.totalorder %s15, 23
    %p103 = por %p101, %p102
    %p104 = scmp.ne.s32.totalorder %s95, %s96
    %p105 = scmp.eq.s32.totalorder %s15, 0
    %p106 = por %p104, %p105
    %p107 = scmp.ne.s32.totalorder %s95, %s96
    %p108 = scmp.eq.s32.totalorder %s16, 23
    %p109 = por %p107, %p108
    %p111 = scmp.ne.s32.totalorder %s96, %s110
    %p112 = scmp.eq.s32.totalorder %s16, 0
    %p113 = por %p111, %p112
    %s114 = ssub.s32 %s17, %s36
    %s115 = ssub.s32 %s18, %s32
    %s116 = sor.u32 %s114, %s115
    %p117 = scmp.eq.s32.totalorder %s116, 0
    %s119 = sadd.s32 %s118, 1
    %s120 = scalar_select %p117, %s118, %s119
    %p123 = pneg %p117
    %p124 = scmp.eq.s32.totalorder %s10, 23
    %p125 = por %p123, %p124
    %p126 = scmp.ne.s32.totalorder %s118, %s121
    %p127 = scmp.eq.s32.totalorder %s10, 0
    %p128 = por %p126, %p127
    %p129 = scmp.ne.s32.totalorder %s118, %s121
    %p130 = scmp.eq.s32.totalorder %s15, 23
    %p131 = por %p129, %p130
    %p132 = scmp.ne.s32.totalorder %s121, %s122
    %p133 = scmp.eq.s32.totalorder %s15, 0
    %p134 = por %p132, %p133
    %p135 = scmp.ne.s32.totalorder %s121, %s122
    %p136 = scmp.eq.s32.totalorder %s16, 23
    %p137 = por %p135, %p136
    %p139 = scmp.ne.s32.totalorder %s122, %s138
    %p140 = scmp.eq.s32.totalorder %s16, 0
    %p141 = por %p139, %p140
    %s142 = ssub.s32 %s17, %s36
    %s143 = ssub.s32 %s18, %s32
    %s144 = sor.u32 %s142, %s143
    %p145 = scmp.eq.s32.totalorder %s144, 0
    %s147 = sadd.s32 %s146, 1
    %s148 = scalar_select %p145, %s146, %s147
    %p151 = pneg %p145
    %p152 = scmp.eq.s32.totalorder %s10, 23
    %p153 = por %p151, %p152
    %p154 = scmp.ne.s32.totalorder %s146, %s149
    %p155 = scmp.eq.s32.totalorder %s10, 0
    %p156 = por %p154, %p155
    %p157 = scmp.ne.s32.totalorder %s146, %s149
    %p158 = scmp.eq.s32.totalorder %s15, 23
    %p159 = por %p157, %p158
    %p160 = scmp.ne.s32.totalorder %s149, %s150
    %p161 = scmp.eq.s32.totalorder %s15, 0
    %p162 = por %p160, %p161
    %p163 = scmp.ne.s32.totalorder %s149, %s150
    %p164 = scmp.eq.s32.totalorder %s16, 23
    %p165 = por %p163, %p164
    %p167 = scmp.ne.s32.totalorder %s150, %s166
    %p168 = scmp.eq.s32.totalorder %s16, 0
    %p169 = por %p167, %p168
    %p170 = scmp.le.s32.totalorder 1, %s10
    %p171 = scmp.lt.s32.totalorder %s10, 25
    %p172 = pnand %p170, %p171
    %p173 = pneg %p172
    // Predicated region
    $region9: #{basic_block_3d.3} parent=5 // pred_check
      _
    $region10: #{basic_block_3d.3} parent=5 // pred_check_branch
      %175 = sbr.rel (%p172) target = $region12
    $region11: #{basic_block_3d.3} parent=5 // pred_region
      %s176 = ssub.s32 %s10, 1
      // Predicated region
      $region13: #{basic_block_3d.3} parent=11 // pred_check
        %p177 = pneg %p106
      $region14: #{basic_block_3d.3} parent=11 // pred_check_branch
        %179 = sbr.rel (%p177) target = $region16
      $region15: #{basic_block_3d.3} parent=11 // pred_region
        _
      $region16: #{basic_block_3d.3} parent=11 // pred_fallthru
        _
    $region12: #{basic_block_3d.3} parent=5 // pred_fallthru
      _
    %p180 = scmp.lt.s32.totalorder %s10, 24
    // Predicated region
    $region17: #{basic_block_3d.3} parent=5 // pred_check
      %p181 = pneg %p180
    $region18: #{basic_block_3d.3} parent=5 // pred_check_branch
      %183 = sbr.rel (%p181) target = $region20
    $region19: #{basic_block_3d.3} parent=5 // pred_region
      // Predicated region
      $region21: #{basic_block_3d.3} parent=19 // pred_check
        %p184 = pneg %p53
      $region22: #{basic_block_3d.3} parent=19 // pred_check_branch
        %186 = sbr.rel (%p184) target = $region24
      $region23: #{basic_block_3d.3} parent=19 // pred_region
        %s187 = sadd.s32 %s18, %s19
        %p188 = scmp.lt.s32.totalorder %s17, 1
        %s189 = scalar_select %p188, %s17, 1
        %p190 = scmp.lt.s32.totalorder %s187, 5
        %s191 = scalar_select %p190, %s187, 5
        %s192 = smul.addr %s191, 20
        %s193 = smul.addr %s189, 120
        %s194 = sadd.s32 %s192, %s193
        %s195 = smul.addr %s194, 4
        %s196 = scalar_lea.vmem %s0, %s195
        %s197 = sadd.s32 %s18, %s19
      $region24: #{basic_block_3d.3} parent=19 // pred_fallthru
        _
      // Predicated region
      $region25: #{basic_block_3d.3} parent=19 // pred_check
        %p198 = pneg %p79
      $region26: #{basic_block_3d.3} parent=19 // pred_check_branch
        %200 = sbr.rel (%p198) target = $region28
      $region27: #{basic_block_3d.3} parent=19 // pred_region
        %p201 = scmp.lt.s32.totalorder %s19, 2
        %s202 = scalar_select %p201, %s19, 2
        %s203 = smul.addr %s202, 144
        %s204 = smul.addr %s203, 4
        %s205 = scalar_lea.vmem %s1, %s204
      $region28: #{basic_block_3d.3} parent=19 // pred_fallthru
        _
      // Predicated region
      $region29: #{basic_block_3d.3} parent=19 // pred_check
        %p206 = pneg %p128
      $region30: #{basic_block_3d.3} parent=19 // pred_check_branch
        %208 = sbr.rel (%p206) target = $region32
      $region31: #{basic_block_3d.3} parent=19 // pred_region
        %p209 = scmp.lt.s32.totalorder %s17, 1
        %s210 = scalar_select %p209, %s17, 1
        %p211 = scmp.lt.s32.totalorder %s18, 3
        %s212 = scalar_select %p211, %s18, 3
        %s213 = smul.addr %s212, 8
        %s214 = smul.addr %s210, 32
        %s215 = sadd.s32 %s213, %s214
        %s216 = smul.addr %s215, 8
        %s217 = scalar_lea.vmem %s3, %s216
      $region32: #{basic_block_3d.3} parent=19 // pred_fallthru
        _
    $region20: #{basic_block_3d.3} parent=5 // pred_fallthru
      _
    %p218 = scmp.le.s32.totalorder 1, %s10
    %p219 = scmp.lt.s32.totalorder %s10, 25
    %p220 = pnand %p218, %p219
    %p221 = pneg %p220
    // Predicated region
    $region33: #{basic_block_3d.3} parent=5 // pred_check
      _
    $region34: #{basic_block_3d.3} parent=5 // pred_check_branch
      %223 = sbr.rel (%p220) target = $region36
    $region35: #{basic_block_3d.3} parent=5 // pred_region
      %s224 = ssub.s32 %s10, 1
      %s225 = sadd.s32 %s21, %s22
      %p226 = scmp.lt.s32.totalorder %s20, 1
      %s227 = scalar_select %p226, %s20, 1
      %p228 = scmp.lt.s32.totalorder %s225, 5
      %s229 = scalar_select %p228, %s225, 5
      %s230 = smul.addr %s229, 20
      %s231 = smul.addr %s227, 120
      %s232 = sadd.s32 %s230, %s231
      %s233 = smul.addr %s232, 4
      %s234 = scalar_lea.vmem %s0, %s233
      %p235 = pneg %p59
      %p236 = pneg %p56
      %p237 = scmp.lt.s32.totalorder %s22, 2
      %s238 = scalar_select %p237, %s22, 2
      %s239 = smul.addr %s238, 144
      %s240 = smul.addr %s239, 4
      %s241 = scalar_lea.vmem %s1, %s240
      %p242 = pneg %p85
      %p243 = pneg %p82
      %p244 = pneg %p106
      %p245 = pneg %p103
      %p246 = scmp.lt.s32.totalorder %s20, 1
      %s247 = scalar_select %p246, %s20, 1
      %p248 = scmp.lt.s32.totalorder %s21, 3
      %s249 = scalar_select %p248, %s21, 3
      %s250 = smul.addr %s249, 8
      %s251 = smul.addr %s247, 32
      %s252 = sadd.s32 %s250, %s251
      %s253 = smul.addr %s252, 8
      %s254 = scalar_lea.vmem %s3, %s253
      %p255 = pneg %p134
      %p256 = pneg %p131
      %p257 = pneg %p162
      %p258 = pneg %p159
      %p259 = scmp.lt.s32.totalorder %s20, 1
      %s260 = scalar_select %p259, %s20, 1
      %p261 = scmp.lt.s32.totalorder %s21, 3
      %s262 = scalar_select %p261, %s21, 3
      %s263 = smul.addr %s262, 8
      %s264 = smul.addr %s260, 32
      %s265 = sadd.s32 %s263, %s264
      %s266 = smul.addr %s265, 8
      %s267 = scalar_lea.vmem %s4, %s266
      %s268 = sadd.s32 %s21, %s22
      %p269 = scmp.lt.s32.totalorder %s20, 1
      %s270 = scalar_select %p269, %s20, 1
      %p271 = scmp.lt.s32.totalorder %s268, 5
      %s272 = scalar_select %p271, %s268, 5
      %s273 = smul.addr %s272, 20
      %s274 = smul.addr %s270, 120
      %s275 = sadd.s32 %s273, %s274
      %s276 = smul.addr %s275, 4
      %s277 = scalar_lea.vmem %s0, %s276
      %s278 = sadd.s32 %s21, %s22
      %p279 = scmp.lt.s32.totalorder %s22, 2
      %s280 = scalar_select %p279, %s22, 2
      %s281 = smul.addr %s280, 144
      %s282 = smul.addr %s281, 4
      %s283 = scalar_lea.vmem %s1, %s282
      %p284 = scmp.lt.s32.totalorder %s20, 1
      %s285 = scalar_select %p284, %s20, 1
      %p286 = scmp.lt.s32.totalorder %s21, 3
      %s287 = scalar_select %p286, %s21, 3
      %s288 = smul.addr %s287, 8
      %s289 = smul.addr %s285, 32
      %s290 = sadd.s32 %s288, %s289
      %s291 = smul.addr %s290, 8
      %s292 = scalar_lea.vmem %s3, %s291
      %p293 = scmp.lt.s32.totalorder %s20, 1
      %s294 = scalar_select %p293, %s20, 1
      %p295 = scmp.lt.s32.totalorder %s21, 3
      %s296 = scalar_select %p295, %s21, 3
      %s297 = smul.addr %s296, 8
      %s298 = smul.addr %s294, 32
      %s299 = sadd.s32 %s297, %s298
      %s300 = smul.addr %s299, 8
      %s301 = scalar_lea.vmem %s4, %s300
      %p303 = scmp.eq.s32.totalorder %s22, 0
      // Predicated region
      $region37: #{basic_block_3d.3} parent=35 // pred_check
        %p304 = pneg %p303
      $region38: #{basic_block_3d.3} parent=35 // pred_check_branch
        %306 = sbr.rel (%p304) target = $region40
      $region39: #{basic_block_3d.3} parent=35 // pred_region
        %307 = vst [vmem:[#allocation2] sm:$0xff] 0.0
        %308 = vst [vmem:[#allocation2 + $0x8] sm:$0xff] 0.0
        %309 = vst [vmem:[#allocation2 + $0x10] sm:$0xff] 0.0
        %310 = vst [vmem:[#allocation2 + $0x18] sm:$0xff] 0.0
        %311 = vst [vmem:[#allocation2 + $0x20] sm:$0xff] 0.0
        %312 = vst [vmem:[#allocation2 + $0x28] sm:$0xff] 0.0
        %313 = vst [vmem:[#allocation2 + $0x30] sm:$0xff] 0.0
        %314 = vst [vmem:[#allocation2 + $0x38] sm:$0xff] 0.0
      $region40: #{basic_block_3d.3} parent=35 // pred_fallthru
        _
      %v315 = vld [vmem:[%s277] sm:$0xf]
      %v316 = vld [vmem:[%s277 + $0x4] sm:$0x1]
      %v317 = vld [vmem:[%s277 + $0x8] sm:$0xf]
      %v318 = vld [vmem:[%s277 + $0xc] sm:$0x1]
      %v319 = vld [vmem:[%s277 + $0x10] sm:$0xf]
      %v320 = vld [vmem:[%s277 + $0x14] sm:$0x1]
      %v321 = vld [vmem:[%s277 + $0x18] sm:$0xf]
      %v322 = vld [vmem:[%s277 + $0x1c] sm:$0x1]
      %v323 = vld [vmem:[%s277 + $0x20] sm:$0xf]
      %v324 = vld [vmem:[%s277 + $0x24] sm:$0x1]
      %v325 = vld [vmem:[%s277 + $0x28] sm:$0xf]
      %v326 = vld [vmem:[%s277 + $0x2c] sm:$0x1]
      %v327 = vld [vmem:[%s277 + $0x30] sm:$0xf]
      %v328 = vld [vmem:[%s277 + $0x34] sm:$0x1]
      %v329 = vld [vmem:[%s277 + $0x38] sm:$0xf]
      %v330 = vld [vmem:[%s277 + $0x3c] sm:$0x1]
      %v331 = vld [vmem:[%s277 + $0x40] sm:$0xf]
      %v332 = vld [vmem:[%s277 + $0x44] sm:$0x1]
      %v333 = vld [vmem:[%s277 + $0x48] sm:$0xf]
      %v334 = vld [vmem:[%s277 + $0x4c] sm:$0x1]
      %v335 = vunpack.c.l.bf16 %v315
      %v336 = vunpack.c.l.bf16 %v316
      %v337 = vunpack.c.l.bf16 %v317
      %v338 = vunpack.c.l.bf16 %v318
      %v339 = vunpack.c.l.bf16 %v319
      %v340 = vunpack.c.l.bf16 %v320
      %v341 = vunpack.c.l.bf16 %v321
      %v342 = vunpack.c.l.bf16 %v322
      %v343 = vunpack.c.l.bf16 %v323
      %v344 = vunpack.c.l.bf16 %v324
      %v345 = vunpack.c.l.bf16 %v325
      %v346 = vunpack.c.l.bf16 %v326
      %v347 = vunpack.c.l.bf16 %v327
      %v348 = vunpack.c.l.bf16 %v328
      %v349 = vunpack.c.l.bf16 %v329
      %v350 = vunpack.c.l.bf16 %v330
      %v351 = vunpack.c.l.bf16 %v331
      %v352 = vunpack.c.l.bf16 %v332
      %v353 = vunpack.c.l.bf16 %v333
      %v354 = vunpack.c.l.bf16 %v334
      %v355 = vld [vmem:[#allocation2] sm:$0xff]
      %v356 = vld [vmem:[#allocation2 + $0x8] sm:$0xff]
      %v357 = vld [vmem:[#allocation2 + $0x10] sm:$0xff]
      %v358 = vld [vmem:[#allocation2 + $0x18] sm:$0xff]
      %v359 = vld [vmem:[#allocation2 + $0x20] sm:$0xff]
      %v360 = vld [vmem:[#allocation2 + $0x28] sm:$0xff]
      %v361 = vld [vmem:[#allocation2 + $0x30] sm:$0xff]
      %v362 = vld [vmem:[#allocation2 + $0x38] sm:$0xff]
      %vm379 = vcmask 1046528
      %v380 = vrot.slane %v335, 1
      %v381 = vrot.slane %v336, 1
      %v382 = vsel %vm379, %v380, %v381
      %v383 = vrot.slane %v337, 1
      %v384 = vrot.slane %v338, 1
      %v385 = vsel %vm379, %v383, %v384
      %v386 = vrot.slane %v339, 1
      %v387 = vrot.slane %v340, 1
      %v388 = vsel %vm379, %v386, %v387
      %v389 = vrot.slane %v341, 1
      %v390 = vrot.slane %v342, 1
      %v391 = vsel %vm379, %v389, %v390
      %v392 = vrot.slane %v343, 1
      %v393 = vrot.slane %v344, 1
      %v394 = vsel %vm379, %v392, %v393
      %v395 = vrot.slane %v345, 1
      %v396 = vrot.slane %v346, 1
      %v397 = vsel %vm379, %v395, %v396
      %v398 = vrot.slane %v347, 1
      %v399 = vrot.slane %v348, 1
      %v400 = vsel %vm379, %v398, %v399
      %v401 = vrot.slane %v349, 1
      %v402 = vrot.slane %v350, 1
      %v403 = vsel %vm379, %v401, %v402
      %vm412 = vcmask 1045504
      %v413 = vrot.slane %v335, 2
      %v414 = vrot.slane %v336, 2
      %v415 = vsel %vm412, %v413, %v414
      %v416 = vrot.slane %v337, 2
      %v417 = vrot.slane %v338, 2
      %v418 = vsel %vm412, %v416, %v417
      %v419 = vrot.slane %v339, 2
      %v420 = vrot.slane %v340, 2
      %v421 = vsel %vm412, %v419, %v420
      %v422 = vrot.slane %v341, 2
      %v423 = vrot.slane %v342, 2
      %v424 = vsel %vm412, %v422, %v423
      %v425 = vrot.slane %v343, 2
      %v426 = vrot.slane %v344, 2
      %v427 = vsel %vm412, %v425, %v426
      %v428 = vrot.slane %v345, 2
      %v429 = vrot.slane %v346, 2
      %v430 = vsel %vm412, %v428, %v429
      %v431 = vrot.slane %v347, 2
      %v432 = vrot.slane %v348, 2
      %v433 = vsel %vm412, %v431, %v432
      %v434 = vrot.slane %v349, 2
      %v435 = vrot.slane %v350, 2
      %v436 = vsel %vm412, %v434, %v435
      %v445 = vpack.c.bf16 %v337, %v335
      %v446 = vpack.c.bf16 %v385, %v382
      %v447 = vpack.c.bf16 %v418, %v415
      %v448 = vpack.c.bf16 %v341, %v339
      %v449 = vpack.c.bf16 %v391, %v388
      %v450 = vpack.c.bf16 %v424, %v421
      %v451 = vpack.c.bf16 %v345, %v343
      %v452 = vpack.c.bf16 %v397, %v394
      %v453 = vpack.c.bf16 %v430, %v427
      %v454 = vpack.c.bf16 %v349, %v347
      %v455 = vpack.c.bf16 %v403, %v400
      %v456 = vpack.c.bf16 %v436, %v433
      %v457 = vld [vmem:[%s283] sm:$0xf]
      %v458 = vld [vmem:[%s283 + $0x4] sm:$0xf]
      %v459 = vld [vmem:[%s283 + $0x8] sm:$0xf]
      %v460 = vld [vmem:[%s283 + $0xc] sm:$0xf]
      %v461 = vld [vmem:[%s283 + $0x10] sm:$0xf]
      %v462 = vld [vmem:[%s283 + $0x14] sm:$0xf]
      %v463 = vld [vmem:[%s283 + $0x18] sm:$0xf]
      %v464 = vld [vmem:[%s283 + $0x1c] sm:$0xf]
      %v465 = vld [vmem:[%s283 + $0x20] sm:$0xf]
      %v466 = vld [vmem:[%s283 + $0x24] sm:$0xf]
      %v467 = vld [vmem:[%s283 + $0x28] sm:$0xf]
      %v468 = vld [vmem:[%s283 + $0x2c] sm:$0xf]
      %v469 = vld [vmem:[%s283 + $0x30] sm:$0xf]
      %v470 = vld [vmem:[%s283 + $0x34] sm:$0xf]
      %v471 = vld [vmem:[%s283 + $0x38] sm:$0xf]
      %v472 = vld [vmem:[%s283 + $0x3c] sm:$0xf]
      %v473 = vld [vmem:[%s283 + $0x40] sm:$0xf]
      %v474 = vld [vmem:[%s283 + $0x44] sm:$0xf]
      %v475 = vld [vmem:[%s283 + $0x48] sm:$0xf]
      %v476 = vld [vmem:[%s283 + $0x4c] sm:$0xf]
      %v477 = vld [vmem:[%s283 + $0x50] sm:$0xf]
      %v478 = vld [vmem:[%s283 + $0x54] sm:$0xf]
      %v479 = vld [vmem:[%s283 + $0x58] sm:$0xf]
      %v480 = vld [vmem:[%s283 + $0x5c] sm:$0xf]
      %v481 = vld [vmem:[%s283 + $0x60] sm:$0xf]
      %v482 = vld [vmem:[%s283 + $0x64] sm:$0xf]
      %v483 = vld [vmem:[%s283 + $0x68] sm:$0xf]
      %v484 = vld [vmem:[%s283 + $0x6c] sm:$0xf]
      %v485 = vld [vmem:[%s283 + $0x70] sm:$0xf]
      %v486 = vld [vmem:[%s283 + $0x74] sm:$0xf]
      %v487 = vld [vmem:[%s283 + $0x78] sm:$0xf]
      %v488 = vld [vmem:[%s283 + $0x7c] sm:$0xf]
      %v489 = vld [vmem:[%s283 + $0x80] sm:$0xf]
      %v490 = vld [vmem:[%s283 + $0x84] sm:$0xf]
      %v491 = vld [vmem:[%s283 + $0x88] sm:$0xf]
      %v492 = vld [vmem:[%s283 + $0x8c] sm:$0xf]
      %v493 = vld [vmem:[%s283 + $0x90] sm:$0xf]
      %v494 = vld [vmem:[%s283 + $0x94] sm:$0xf]
      %v495 = vld [vmem:[%s283 + $0x98] sm:$0xf]
      %v496 = vld [vmem:[%s283 + $0x9c] sm:$0xf]
      %v497 = vld [vmem:[%s283 + $0xa0] sm:$0xf]
      %v498 = vld [vmem:[%s283 + $0xa4] sm:$0xf]
      %v499 = vld [vmem:[%s283 + $0xa8] sm:$0xf]
      %v500 = vld [vmem:[%s283 + $0xac] sm:$0xf]
      %v501 = vld [vmem:[%s283 + $0xb0] sm:$0xf]
      %v502 = vld [vmem:[%s283 + $0xb4] sm:$0xf]
      %v503 = vld [vmem:[%s283 + $0xb8] sm:$0xf]
      %v504 = vld [vmem:[%s283 + $0xbc] sm:$0xf]
      %v553 = vunpack.c.l.b16 %v457
      %v554 = vunpack.c.l.b16 %v458
      %v555 = vunpack.c.l.b16 %v459
      %v556 = vunpack.c.l.b16 %v460
      %v557 = vunpack.c.l.b16 %v461
      %v558 = vunpack.c.l.b16 %v462
      %v559 = vunpack.c.l.b16 %v463
      %v560 = vunpack.c.l.b16 %v464
      %v561 = vunpack.c.l.b16 %v465
      %v562 = vunpack.c.l.b16 %v466
      %v563 = vunpack.c.l.b16 %v467
      %v564 = vunpack.c.l.b16 %v468
      %v565 = vunpack.c.l.b16 %v469
      %v566 = vunpack.c.l.b16 %v470
      %v567 = vunpack.c.l.b16 %v471
      %v568 = vunpack.c.l.b16 %v472
      %v569 = vunpack.c.l.b16 %v473
      %v570 = vunpack.c.l.b16 %v474
      %v571 = vunpack.c.l.b16 %v475
      %v572 = vunpack.c.l.b16 %v476
      %v573 = vunpack.c.l.b16 %v477
      %v574 = vunpack.c.l.b16 %v478
      %v575 = vunpack.c.l.b16 %v479
      %v576 = vunpack.c.l.b16 %v480
      %v577 = vunpack.c.l.b16 %v481
      %v578 = vunpack.c.l.b16 %v482
      %v579 = vunpack.c.l.b16 %v483
      %v580 = vunpack.c.l.b16 %v484
      %v581 = vunpack.c.l.b16 %v485
      %v582 = vunpack.c.l.b16 %v486
      %v583 = vunpack.c.l.b16 %v487
      %v584 = vunpack.c.l.b16 %v488
      %v585 = vunpack.c.l.b16 %v489
      %v586 = vunpack.c.l.b16 %v490
      %v587 = vunpack.c.l.b16 %v491
      %v588 = vunpack.c.l.b16 %v492
      %v589 = vunpack.c.l.b16 %v493
      %v590 = vunpack.c.l.b16 %v494
      %v591 = vunpack.c.l.b16 %v495
      %v592 = vunpack.c.l.b16 %v496
      %v593 = vunpack.c.l.b16 %v497
      %v594 = vunpack.c.l.b16 %v498
      %v595 = vunpack.c.l.b16 %v499
      %v596 = vunpack.c.l.b16 %v500
      %v597 = vunpack.c.l.b16 %v501
      %v598 = vunpack.c.l.b16 %v502
      %v599 = vunpack.c.l.b16 %v503
      %v600 = vunpack.c.l.b16 %v504
      %v601 = vpack.c.b16 %v554, %v553
      %v602 = vpack.c.b16 %v556, %v555
      %v603 = vpack.c.b16 %v558, %v557
      %v604 = vpack.c.b16 %v560, %v559
      %v605 = vpack.c.b16 %v562, %v561
      %v606 = vpack.c.b16 %v564, %v563
      %v607 = vpack.c.b16 %v566, %v565
      %v608 = vpack.c.b16 %v568, %v567
      %v609 = vpack.c.b16 %v570, %v569
      %v610 = vpack.c.b16 %v572, %v571
      %v611 = vpack.c.b16 %v574, %v573
      %v612 = vpack.c.b16 %v576, %v575
      %v613 = vpack.c.b16 %v578, %v577
      %v614 = vpack.c.b16 %v580, %v579
      %v615 = vpack.c.b16 %v582, %v581
      %v616 = vpack.c.b16 %v584, %v583
      %v617 = vpack.c.b16 %v586, %v585
      %v618 = vpack.c.b16 %v588, %v587
      %v619 = vpack.c.b16 %v590, %v589
      %v620 = vpack.c.b16 %v592, %v591
      %v621 = vpack.c.b16 %v594, %v593
      %v622 = vpack.c.b16 %v596, %v595
      %v623 = vpack.c.b16 %v598, %v597
      %v624 = vpack.c.b16 %v600, %v599
      %649 = vmatprep.subr.bf16.mxu0 0
      %650 = vmatpush1.bf16.msra.mxu0 %v601
      %651 = vmatprep.subr.bf16.mxu0 0
      %652 = vmatpush1.bf16.msra.mxu0 %v602
      %653 = vmatprep.subr.bf16.mxu0 0
      %654 = vmatpush1.bf16.msra.mxu0 %v603
      %655 = vmatprep.subr.bf16.mxu0 0
      %656 = vmatpush1.bf16.msra.mxu0 %v604
      %657 = vmatprep.subr.bf16.mxu0 0
      %658 = vmatpush1.bf16.msra.mxu0 %v605
      %659 = vmatprep.subr.bf16.mxu0 0
      %660 = vmatpush1.bf16.msra.mxu0 %v606
      %661 = vmatprep.subr.bf16.mxu0 0
      %662 = vmatpush1.bf16.msra.mxu0 %v607
      %663 = vmatprep.subr.bf16.mxu0 0
      %664 = vmatpush1.bf16.msra.mxu0 %v608
      %665 = vmatprep.subr.bf16.mxu0 0
      %666 = vmatpush1.bf16.msra.mxu0 %v609
      %667 = vmatprep.subr.bf16.mxu0 0
      %668 = vmatpush1.bf16.msra.mxu0 %v610
      %669 = vmatprep.subr.bf16.mxu0 0
      %670 = vmatpush1.bf16.msra.mxu0 %v611
      %671 = vmatprep.subr.bf16.mxu0 0
      %672 = vmatpush1.bf16.msra.mxu0 %v612
      %673 = vmatprep.subr.bf16.mxu0 0
      %674 = vmatpush1.bf16.msra.mxu0 %v613
      %675 = vmatprep.subr.bf16.mxu0 0
      %676 = vmatpush1.bf16.msra.mxu0 %v614
      %677 = vmatprep.subr.bf16.mxu0 0
      %678 = vmatpush1.bf16.msra.mxu0 %v615
      %679 = vmatprep.subr.bf16.mxu0 0
      %680 = vmatpush1.bf16.msra.mxu0 %v616
      %681 = vmatprep.mubr.bf16.mxu0 %v446
      %682 = vmatmul.mubr.bf16.gmra.mrb[0].mxu0 %v445
      %v683 = vpop.f32.mrb[0].mxu0
      %v684 = vadd.f32 0.0, %v683
      %v685 = vpop.f32.mrb[0].mxu0
      %v686 = vpop.f32.mrb[0].mxu0
      %v687 = vadd.f32 0.0, %v686
      %v688 = vpop.f32.mrb[0].mxu0
      %689 = vmatprep.mubr.bf16.mxu0 %v449
      %690 = vmatmul.mubr.bf16.gmra.mrb[0].mxu0 %v448
      %v691 = vpop.f32.mrb[0].mxu0
      %v692 = vadd.f32 0.0, %v691
      %v693 = vpop.f32.mrb[0].mxu0
      %v694 = vpop.f32.mrb[0].mxu0
      %v695 = vadd.f32 0.0, %v694
      %v696 = vpop.f32.mrb[0].mxu0
      %697 = vmatprep.mubr.bf16.mxu0 %v452
      %698 = vmatmul.mubr.bf16.gmra.mrb[0].mxu0 %v451
      %v699 = vpop.f32.mrb[0].mxu0
      %v700 = vadd.f32 0.0, %v699
      %v701 = vpop.f32.mrb[0].mxu0
      %v702 = vpop.f32.mrb[0].mxu0
      %v703 = vadd.f32 0.0, %v702
      %v704 = vpop.f32.mrb[0].mxu0
      %705 = vmatprep.mubr.bf16.mxu0 %v455
      %706 = vmatmul.mubr.bf16.gmra.mrb[0].mxu0 %v454
      %v707 = vpop.f32.mrb[0].mxu0
      %v708 = vadd.f32 0.0, %v707
      %v709 = vpop.f32.mrb[0].mxu0
      %v710 = vpop.f32.mrb[0].mxu0
      %v711 = vadd.f32 0.0, %v710
      %v712 = vpop.f32.mrb[0].mxu0
      %713 = vdwg.mxu0
      %714 = vmatprep.subr.bf16.mxu0 0
      %715 = vmatpush1.bf16.msra.mxu0 %v617
      %716 = vmatprep.subr.bf16.mxu0 0
      %717 = vmatpush1.bf16.msra.mxu0 %v618
      %718 = vmatprep.subr.bf16.mxu0 0
      %719 = vmatpush1.bf16.msra.mxu0 %v619
      %720 = vmatprep.subr.bf16.mxu0 0
      %721 = vmatpush1.bf16.msra.mxu0 %v620
      %722 = vmatprep.subr.bf16.mxu0 0
      %723 = vmatpush1.bf16.msra.mxu0 %v621
      %724 = vmatprep.subr.bf16.mxu0 0
      %725 = vmatpush1.bf16.msra.mxu0 %v622
      %726 = vmatprep.subr.bf16.mxu0 0
      %727 = vmatpush1.bf16.msra.mxu0 %v623
      %728 = vmatprep.subr.bf16.mxu0 0
      %729 = vmatpush1.bf16.msra.mxu0 %v624
      %730 = vmatprep.subr.bf16.mxu0 0
      %731 = vmatpush1.bf16.msra.mxu0 0
      %732 = vmatprep.subr.bf16.mxu0 0
      %733 = vmatpush1.bf16.msra.mxu0 0
      %734 = vmatprep.subr.bf16.mxu0 0
      %735 = vmatpush1.bf16.msra.mxu0 0
      %736 = vmatprep.subr.bf16.mxu0 0
      %737 = vmatpush1.bf16.msra.mxu0 0
      %738 = vmatprep.subr.bf16.mxu0 0
      %739 = vmatpush1.bf16.msra.mxu0 0
      %740 = vmatprep.subr.bf16.mxu0 0
      %741 = vmatpush1.bf16.msra.mxu0 0
      %742 = vmatprep.subr.bf16.mxu0 0
      %743 = vmatpush1.bf16.msra.mxu0 0
      %744 = vmatprep.subr.bf16.mxu0 0
      %745 = vmatpush1.bf16.msra.mxu0 0
      %746 = vmatprep.mubr.bf16.mxu0 0
      %747 = vmatmul.mubr.bf16.gmra.mrb[0].mxu0 %v447
      %v748 = vpop.f32.mrb[0].mxu0
      %v749 = vadd.f32 %v684, %v748
      %v750 = vpop.f32.mrb[0].mxu0
      %v751 = vpop.f32.mrb[0].mxu0
      %v752 = vadd.f32 %v687, %v751
      %v753 = vpop.f32.mrb[0].mxu0
      %754 = vmatprep.mubr.bf16.mxu0 0
      %755 = vmatmul.mubr.bf16.gmra.mrb[0].mxu0 %v450
      %v756 = vpop.f32.mrb[0].mxu0
      %v757 = vadd.f32 %v692, %v756
      %v758 = vpop.f32.mrb[0].mxu0
      %v759 = vpop.f32.mrb[0].mxu0
      %v760 = vadd.f32 %v695, %v759
      %v761 = vpop.f32.mrb[0].mxu0
      %762 = vmatprep.mubr.bf16.mxu0 0
      %763 = vmatmul.mubr.bf16.gmra.mrb[0].mxu0 %v453
      %v764 = vpop.f32.mrb[0].mxu0
      %v765 = vadd.f32 %v700, %v764
      %v766 = vpop.f32.mrb[0].mxu0
      %v767 = vpop.f32.mrb[0].mxu0
      %v768 = vadd.f32 %v703, %v767
      %v769 = vpop.f32.mrb[0].mxu0
      %770 = vmatprep.mubr.bf16.mxu0 0
      %771 = vmatmul.mubr.bf16.gmra.mrb[0].mxu0 %v456
      %v772 = vpop.f32.mrb[0].mxu0
      %v773 = vadd.f32 %v708, %v772
      %v774 = vpop.f32.mrb[0].mxu0
      %v775 = vpop.f32.mrb[0].mxu0
      %v776 = vadd.f32 %v711, %v775
      %v777 = vpop.f32.mrb[0].mxu0
      %778 = vdwg.mxu0
      %v779 = vadd.f32 %v355, %v749
      %v780 = vadd.f32 %v356, %v752
      %v781 = vadd.f32 %v357, %v757
      %v782 = vadd.f32 %v358, %v760
      %v783 = vadd.f32 %v359, %v765
      %v784 = vadd.f32 %v360, %v768
      %v785 = vadd.f32 %v361, %v773
      %v786 = vadd.f32 %v362, %v776
      %v789 = vrot.slane %v351, 1
      %v790 = vrot.slane %v352, 1
      %v791 = vsel %vm379, %v789, %v790
      %v793 = vrot.slane %v351, 2
      %v794 = vrot.slane %v352, 2
      %v795 = vsel %vm412, %v793, %v794
      %v797 = vpack.c.bf16 %v339, %v337
      %v798 = vpack.c.bf16 %v388, %v385
      %v799 = vpack.c.bf16 %v421, %v418
      %v800 = vpack.c.bf16 %v343, %v341
      %v801 = vpack.c.bf16 %v394, %v391
      %v802 = vpack.c.bf16 %v427, %v424
      %v803 = vpack.c.bf16 %v347, %v345
      %v804 = vpack.c.bf16 %v400, %v397
      %v805 = vpack.c.bf16 %v433, %v430
      %v806 = vpack.c.bf16 %v351, %v349
      %v807 = vpack.c.bf16 %v791, %v403
      %v808 = vpack.c.bf16 %v795, %v436
      %s809 = scalar_lea.vmem %s283, 192
      %v810 = vld [vmem:[%s809] sm:$0xf]
      %v811 = vld [vmem:[%s809 + $0x4] sm:$0xf]
      %v812 = vld [vmem:[%s809 + $0x8] sm:$0xf]
      %v813 = vld [vmem:[%s809 + $0xc] sm:$0xf]
      %v814 = vld [vmem:[%s809 + $0x10] sm:$0xf]
      %v815 = vld [vmem:[%s809 + $0x14] sm:$0xf]
      %v816 = vld [vmem:[%s809 + $0x18] sm:$0xf]
      %v817 = vld [vmem:[%s809 + $0x1c] sm:$0xf]
      %v818 = vld [vmem:[%s809 + $0x20] sm:$0xf]
      %v819 = vld [vmem:[%s809 + $0x24] sm:$0xf]
      %v820 = vld [vmem:[%s809 + $0x28] sm:$0xf]
      %v821 = vld [vmem:[%s809 + $0x2c] sm:$0xf]
      %v822 = vld [vmem:[%s809 + $0x30] sm:$0xf]
      %v823 = vld [vmem:[%s809 + $0x34] sm:$0xf]
      %v824 = vld [vmem:[%s809 + $0x38] sm:$0xf]
      %v825 = vld [vmem:[%s809 + $0x3c] sm:$0xf]
      %v826 = vld [vmem:[%s809 + $0x40] sm:$0xf]
      %v827 = vld [vmem:[%s809 + $0x44] sm:$0xf]
      %v828 = vld [vmem:[%s809 + $0x48] sm:$0xf]
      %v829 = vld [vmem:[%s809 + $0x4c] sm:$0xf]
      %v830 = vld [vmem:[%s809 + $0x50] sm:$0xf]
      %v831 = vld [vmem:[%s809 + $0x54] sm:$0xf]
      %v832 = vld [vmem:[%s809 + $0x58] sm:$0xf]
      %v833 = vld [vmem:[%s809 + $0x5c] sm:$0xf]
      %v834 = vld [vmem:[%s809 + $0x60] sm:$0xf]
      %v835 = vld [vmem:[%s809 + $0x64] sm:$0xf]
      %v836 = vld [vmem:[%s809 + $0x68] sm:$0xf]
      %v837 = vld [vmem:[%s809 + $0x6c] sm:$0xf]
      %v838 = vld [vmem:[%s809 + $0x70] sm:$0xf]
      %v839 = vld [vmem:[%s809 + $0x74] sm:$0xf]
      %v840 = vld [vmem:[%s809 + $0x78] sm:$0xf]
      %v841 = vld [vmem:[%s809 + $0x7c] sm:$0xf]
      %v842 = vld [vmem:[%s809 + $0x80] sm:$0xf]
      %v843 = vld [vmem:[%s809 + $0x84] sm:$0xf]
      %v844 = vld [vmem:[%s809 + $0x88] sm:$0xf]
      %v845 = vld [vmem:[%s809 + $0x8c] sm:$0xf]
      %v846 = vld [vmem:[%s809 + $0x90] sm:$0xf]
      %v847 = vld [vmem:[%s809 + $0x94] sm:$0xf]
      %v848 = vld [vmem:[%s809 + $0x98] sm:$0xf]
      %v849 = vld [vmem:[%s809 + $0x9c] sm:$0xf]
      %v850 = vld [vmem:[%s809 + $0xa0] sm:$0xf]
      %v851 = vld [vmem:[%s809 + $0xa4] sm:$0xf]
      %v852 = vld [vmem:[%s809 + $0xa8] sm:$0xf]
      %v853 = vld [vmem:[%s809 + $0xac] sm:$0xf]
      %v854 = vld [vmem:[%s809 + $0xb0] sm:$0xf]
      %v855 = vld [vmem:[%s809 + $0xb4] sm:$0xf]
      %v856 = vld [vmem:[%s809 + $0xb8] sm:$0xf]
      %v857 = vld [vmem:[%s809 + $0xbc] sm:$0xf]
      %v906 = vunpack.c.l.b16 %v810
      %v907 = vunpack.c.l.b16 %v811
      %v908 = vunpack.c.l.b16 %v812
      %v909 = vunpack.c.l.b16 %v813
      %v910 = vunpack.c.l.b16 %v814
      %v911 = vunpack.c.l.b16 %v815
      %v912 = vunpack.c.l.b16 %v816
      %v913 = vunpack.c.l.b16 %v817
      %v914 = vunpack.c.l.b16 %v818
      %v915 = vunpack.c.l.b16 %v819
      %v916 = vunpack.c.l.b16 %v820
      %v917 = vunpack.c.l.b16 %v821
      %v918 = vunpack.c.l.b16 %v822
      %v919 = vunpack.c.l.b16 %v823
      %v920 = vunpack.c.l.b16 %v824
      %v921 = vunpack.c.l.b16 %v825
      %v922 = vunpack.c.l.b16 %v826
      %v923 = vunpack.c.l.b16 %v827
      %v924 = vunpack.c.l.b16 %v828
      %v925 = vunpack.c.l.b16 %v829
      %v926 = vunpack.c.l.b16 %v830
      %v927 = vunpack.c.l.b16 %v831
      %v928 = vunpack.c.l.b16 %v832
      %v929 = vunpack.c.l.b16 %v833
      %v930 = vunpack.c.l.b16 %v834
      %v931 = vunpack.c.l.b16 %v835
      %v932 = vunpack.c.l.b16 %v836
      %v933 = vunpack.c.l.b16 %v837
      %v934 = vunpack.c.l.b16 %v838
      %v935 = vunpack.c.l.b16 %v839
      %v936 = vunpack.c.l.b16 %v840
      %v937 = vunpack.c.l.b16 %v841
      %v938 = vunpack.c.l.b16 %v842
      %v939 = vunpack.c.l.b16 %v843
      %v940 = vunpack.c.l.b16 %v844
      %v941 = vunpack.c.l.b16 %v845
      %v942 = vunpack.c.l.b16 %v846
      %v943 = vunpack.c.l.b16 %v847
      %v944 = vunpack.c.l.b16 %v848
      %v945 = vunpack.c.l.b16 %v849
      %v946 = vunpack.c.l.b16 %v850
      %v947 = vunpack.c.l.b16 %v851
      %v948 = vunpack.c.l.b16 %v852
      %v949 = vunpack.c.l.b16 %v853
      %v950 = vunpack.c.l.b16 %v854
      %v951 = vunpack.c.l.b16 %v855
      %v952 = vunpack.c.l.b16 %v856
      %v953 = vunpack.c.l.b16 %v857
      %v954 = vpack.c.b16 %v907, %v906
      %v955 = vpack.c.b16 %v909, %v908
      %v956 = vpack.c.b16 %v911, %v910
      %v957 = vpack.c.b16 %v913, %v912
      %v958 = vpack.c.b16 %v915, %v914
      %v959 = vpack.c.b16 %v917, %v916
      %v960 = vpack.c.b16 %v919, %v918
      %v961 = vpack.c.b16 %v921, %v920
      %v962 = vpack.c.b16 %v923, %v922
      %v963 = vpack.c.b16 %v925, %v924
      %v964 = vpack.c.b16 %v927, %v926
      %v965 = vpack.c.b16 %v929, %v928
      %v966 = vpack.c.b16 %v931, %v930
      %v967 = vpack.c.b16 %v933, %v932
      %v968 = vpack.c.b16 %v935, %v934
      %v969 = vpack.c.b16 %v937, %v936
      %v970 = vpack.c.b16 %v939, %v938
      %v971 = vpack.c.b16 %v941, %v940
      %v972 = vpack.c.b16 %v943, %v942
      %v973 = vpack.c.b16 %v945, %v944
      %v974 = vpack.c.b16 %v947, %v946
      %v975 = vpack.c.b16 %v949, %v948
      %v976 = vpack.c.b16 %v951, %v950
      %v977 = vpack.c.b16 %v953, %v952
      %1002 = vmatprep.subr.bf16.mxu0 0
      %1003 = vmatpush1.bf16.msra.mxu0 %v954
      %1004 = vmatprep.subr.bf16.mxu0 0
      %1005 = vmatpush1.bf16.msra.mxu0 %v955
      %1006 = vmatprep.subr.bf16.mxu0 0
      %1007 = vmatpush1.bf16.msra.mxu0 %v956
      %1008 = vmatprep.subr.bf16.mxu0 0
      %1009 = vmatpush1.bf16.msra.mxu0 %v957
      %1010 = vmatprep.subr.bf16.mxu0 0
      %1011 = vmatpush1.bf16.msra.mxu0 %v958
      %1012 = vmatprep.subr.bf16.mxu0 0
      %1013 = vmatpush1.bf16.msra.mxu0 %v959
      %1014 = vmatprep.subr.bf16.mxu0 0
      %1015 = vmatpush1.bf16.msra.mxu0 %v960
      %1016 = vmatprep.subr.bf16.mxu0 0
      %1017 = vmatpush1.bf16.msra.mxu0 %v961
      %1018 = vmatprep.subr.bf16.mxu0 0
      %1019 = vmatpush1.bf16.msra.mxu0 %v962
      %1020 = vmatprep.subr.bf16.mxu0 0
      %1021 = vmatpush1.bf16.msra.mxu0 %v963
      %1022 = vmatprep.subr.bf16.mxu0 0
      %1023 = vmatpush1.bf16.msra.mxu0 %v964
      %1024 = vmatprep.subr.bf16.mxu0 0
      %1025 = vmatpush1.bf16.msra.mxu0 %v965
      %1026 = vmatprep.subr.bf16.mxu0 0
      %1027 = vmatpush1.bf16.msra.mxu0 %v966
      %1028 = vmatprep.subr.bf16.mxu0 0
      %1029 = vmatpush1.bf16.msra.mxu0 %v967
      %1030 = vmatprep.subr.bf16.mxu0 0
      %1031 = vmatpush1.bf16.msra.mxu0 %v968
      %1032 = vmatprep.subr.bf16.mxu0 0
      %1033 = vmatpush1.bf16.msra.mxu0 %v969
      %1034 = vmatprep.mubr.bf16.mxu0 %v798
      %1035 = vmatmul.mubr.bf16.gmra.mrb[0].mxu0 %v797
      %v1036 = vpop.f32.mrb[0].mxu0
      %v1037 = vadd.f32 0.0, %v1036
      %v1038 = vpop.f32.mrb[0].mxu0
      %v1039 = vpop.f32.mrb[0].mxu0
      %v1040 = vadd.f32 0.0, %v1039
      %v1041 = vpop.f32.mrb[0].mxu0
      %1042 = vmatprep.mubr.bf16.mxu0 %v801
      %1043 = vmatmul.mubr.bf16.gmra.mrb[0].mxu0 %v800
      %v1044 = vpop.f32.mrb[0].mxu0
      %v1045 = vadd.f32 0.0, %v1044
      %v1046 = vpop.f32.mrb[0].mxu0
      %v1047 = vpop.f32.mrb[0].mxu0
      %v1048 = vadd.f32 0.0, %v1047
      %v1049 = vpop.f32.mrb[0].mxu0
      %1050 = vmatprep.mubr.bf16.mxu0 %v804
      %1051 = vmatmul.mubr.bf16.gmra.mrb[0].mxu0 %v803
      %v1052 = vpop.f32.mrb[0].mxu0
      %v1053 = vadd.f32 0.0, %v1052
      %v1054 = vpop.f32.mrb[0].mxu0
      %v1055 = vpop.f32.mrb[0].mxu0
      %v1056 = vadd.f32 0.0, %v1055
      %v1057 = vpop.f32.mrb[0].mxu0
      %1058 = vmatprep.mubr.bf16.mxu0 %v807
      %1059 = vmatmul.mubr.bf16.gmra.mrb[0].mxu0 %v806
      %v1060 = vpop.f32.mrb[0].mxu0
      %v1061 = vadd.f32 0.0, %v1060
      %v1062 = vpop.f32.mrb[0].mxu0
      %v1063 = vpop.f32.mrb[0].mxu0
      %v1064 = vadd.f32 0.0, %v1063
      %v1065 = vpop.f32.mrb[0].mxu0
      %1066 = vdwg.mxu0
      %1067 = vmatprep.subr.bf16.mxu0 0
      %1068 = vmatpush1.bf16.msra.mxu0 %v970
      %1069 = vmatprep.subr.bf16.mxu0 0
      %1070 = vmatpush1.bf16.msra.mxu0 %v971
      %1071 = vmatprep.subr.bf16.mxu0 0
      %1072 = vmatpush1.bf16.msra.mxu0 %v972
      %1073 = vmatprep.subr.bf16.mxu0 0
      %1074 = vmatpush1.bf16.msra.mxu0 %v973
      %1075 = vmatprep.subr.bf16.mxu0 0
      %1076 = vmatpush1.bf16.msra.mxu0 %v974
      %1077 = vmatprep.subr.bf16.mxu0 0
      %1078 = vmatpush1.bf16.msra.mxu0 %v975
      %1079 = vmatprep.subr.bf16.mxu0 0
      %1080 = vmatpush1.bf16.msra.mxu0 %v976
      %1081 = vmatprep.subr.bf16.mxu0 0
      %1082 = vmatpush1.bf16.msra.mxu0 %v977
      %1083 = vmatprep.subr.bf16.mxu0 0
      %1084 = vmatpush1.bf16.msra.mxu0 0
      %1085 = vmatprep.subr.bf16.mxu0 0
      %1086 = vmatpush1.bf16.msra.mxu0 0
      %1087 = vmatprep.subr.bf16.mxu0 0
      %1088 = vmatpush1.bf16.msra.mxu0 0
      %1089 = vmatprep.subr.bf16.mxu0 0
      %1090 = vmatpush1.bf16.msra.mxu0 0
      %1091 = vmatprep.subr.bf16.mxu0 0
      %1092 = vmatpush1.bf16.msra.mxu0 0
      %1093 = vmatprep.subr.bf16.mxu0 0
      %1094 = vmatpush1.bf16.msra.mxu0 0
      %1095 = vmatprep.subr.bf16.mxu0 0
      %1096 = vmatpush1.bf16.msra.mxu0 0
      %1097 = vmatprep.subr.bf16.mxu0 0
      %1098 = vmatpush1.bf16.msra.mxu0 0
      %1099 = vmatprep.mubr.bf16.mxu0 0
      %1100 = vmatmul.mubr.bf16.gmra.mrb[0].mxu0 %v799
      %v1101 = vpop.f32.mrb[0].mxu0
      %v1102 = vadd.f32 %v1037, %v1101
      %v1103 = vpop.f32.mrb[0].mxu0
      %v1104 = vpop.f32.mrb[0].mxu0
      %v1105 = vadd.f32 %v1040, %v1104
      %v1106 = vpop.f32.mrb[0].mxu0
      %1107 = vmatprep.mubr.bf16.mxu0 0
      %1108 = vmatmul.mubr.bf16.gmra.mrb[0].mxu0 %v802
      %v1109 = vpop.f32.mrb[0].mxu0
      %v1110 = vadd.f32 %v1045, %v1109
      %v1111 = vpop.f32.mrb[0].mxu0
      %v1112 = vpop.f32.mrb[0].mxu0
      %v1113 = vadd.f32 %v1048, %v1112
      %v1114 = vpop.f32.mrb[0].mxu0
      %1115 = vmatprep.mubr.bf16.mxu0 0
      %1116 = vmatmul.mubr.bf16.gmra.mrb[0].mxu0 %v805
      %v1117 = vpop.f32.mrb[0].mxu0
      %v1118 = vadd.f32 %v1053, %v1117
      %v1119 = vpop.f32.mrb[0].mxu0
      %v1120 = vpop.f32.mrb[0].mxu0
      %v1121 = vadd.f32 %v1056, %v1120
      %v1122 = vpop.f32.mrb[0].mxu0
      %1123 = vmatprep.mubr.bf16.mxu0 0
      %1124 = vmatmul.mubr.bf16.gmra.mrb[0].mxu0 %v808
      %v1125 = vpop.f32.mrb[0].mxu0
      %v1126 = vadd.f32 %v1061, %v1125
      %v1127 = vpop.f32.mrb[0].mxu0
      %v1128 = vpop.f32.mrb[0].mxu0
      %v1129 = vadd.f32 %v1064, %v1128
      %v1130 = vpop.f32.mrb[0].mxu0
      %1131 = vdwg.mxu0
      %v1132 = vadd.f32 %v779, %v1102
      %v1133 = vadd.f32 %v780, %v1105
      %v1134 = vadd.f32 %v781, %v1110
      %v1135 = vadd.f32 %v782, %v1113
      %v1136 = vadd.f32 %v783, %v1118
      %v1137 = vadd.f32 %v784, %v1121
      %v1138 = vadd.f32 %v785, %v1126
      %v1139 = vadd.f32 %v786, %v1129
      %v1142 = vrot.slane %v353, 1
      %v1143 = vrot.slane %v354, 1
      %v1144 = vsel %vm379, %v1142, %v1143
      %v1146 = vrot.slane %v353, 2
      %v1147 = vrot.slane %v354, 2
      %v1148 = vsel %vm412, %v1146, %v1147
      %v1150 = vpack.c.bf16 %v353, %v351
      %v1151 = vpack.c.bf16 %v1144, %v791
      %v1152 = vpack.c.bf16 %v1148, %v795
      %s1153 = scalar_lea.vmem %s283, 384
      %v1154 = vld [vmem:[%s1153] sm:$0xf]
      %v1155 = vld [vmem:[%s1153 + $0x4] sm:$0xf]
      %v1156 = vld [vmem:[%s1153 + $0x8] sm:$0xf]
      %v1157 = vld [vmem:[%s1153 + $0xc] sm:$0xf]
      %v1158 = vld [vmem:[%s1153 + $0x10] sm:$0xf]
      %v1159 = vld [vmem:[%s1153 + $0x14] sm:$0xf]
      %v1160 = vld [vmem:[%s1153 + $0x18] sm:$0xf]
      %v1161 = vld [vmem:[%s1153 + $0x1c] sm:$0xf]
      %v1162 = vld [vmem:[%s1153 + $0x20] sm:$0xf]
      %v1163 = vld [vmem:[%s1153 + $0x24] sm:$0xf]
      %v1164 = vld [vmem:[%s1153 + $0x28] sm:$0xf]
      %v1165 = vld [vmem:[%s1153 + $0x2c] sm:$0xf]
      %v1166 = vld [vmem:[%s1153 + $0x30] sm:$0xf]
      %v1167 = vld [vmem:[%s1153 + $0x34] sm:$0xf]
      %v1168 = vld [vmem:[%s1153 + $0x38] sm:$0xf]
      %v1169 = vld [vmem:[%s1153 + $0x3c] sm:$0xf]
      %v1170 = vld [vmem:[%s1153 + $0x40] sm:$0xf]
      %v1171 = vld [vmem:[%s1153 + $0x44] sm:$0xf]
      %v1172 = vld [vmem:[%s1153 + $0x48] sm:$0xf]
      %v1173 = vld [vmem:[%s1153 + $0x4c] sm:$0xf]
      %v1174 = vld [vmem:[%s1153 + $0x50] sm:$0xf]
      %v1175 = vld [vmem:[%s1153 + $0x54] sm:$0xf]
      %v1176 = vld [vmem:[%s1153 + $0x58] sm:$0xf]
      %v1177 = vld [vmem:[%s1153 + $0x5c] sm:$0xf]
      %v1178 = vld [vmem:[%s1153 + $0x60] sm:$0xf]
      %v1179 = vld [vmem:[%s1153 + $0x64] sm:$0xf]
      %v1180 = vld [vmem:[%s1153 + $0x68] sm:$0xf]
      %v1181 = vld [vmem:[%s1153 + $0x6c] sm:$0xf]
      %v1182 = vld [vmem:[%s1153 + $0x70] sm:$0xf]
      %v1183 = vld [vmem:[%s1153 + $0x74] sm:$0xf]
      %v1184 = vld [vmem:[%s1153 + $0x78] sm:$0xf]
      %v1185 = vld [vmem:[%s1153 + $0x7c] sm:$0xf]
      %v1186 = vld [vmem:[%s1153 + $0x80] sm:$0xf]
      %v1187 = vld [vmem:[%s1153 + $0x84] sm:$0xf]
      %v1188 = vld [vmem:[%s1153 + $0x88] sm:$0xf]
      %v1189 = vld [vmem:[%s1153 + $0x8c] sm:$0xf]
      %v1190 = vld [vmem:[%s1153 + $0x90] sm:$0xf]
      %v1191 = vld [vmem:[%s1153 + $0x94] sm:$0xf]
      %v1192 = vld [vmem:[%s1153 + $0x98] sm:$0xf]
      %v1193 = vld [vmem:[%s1153 + $0x9c] sm:$0xf]
      %v1194 = vld [vmem:[%s1153 + $0xa0] sm:$0xf]
      %v1195 = vld [vmem:[%s1153 + $0xa4] sm:$0xf]
      %v1196 = vld [vmem:[%s1153 + $0xa8] sm:$0xf]
      %v1197 = vld [vmem:[%s1153 + $0xac] sm:$0xf]
      %v1198 = vld [vmem:[%s1153 + $0xb0] sm:$0xf]
      %v1199 = vld [vmem:[%s1153 + $0xb4] sm:$0xf]
      %v1200 = vld [vmem:[%s1153 + $0xb8] sm:$0xf]
      %v1201 = vld [vmem:[%s1153 + $0xbc] sm:$0xf]
      %v1250 = vunpack.c.l.b16 %v1154
      %v1251 = vunpack.c.l.b16 %v1155
      %v1252 = vunpack.c.l.b16 %v1156
      %v1253 = vunpack.c.l.b16 %v1157
      %v1254 = vunpack.c.l.b16 %v1158
      %v1255 = vunpack.c.l.b16 %v1159
      %v1256 = vunpack.c.l.b16 %v1160
      %v1257 = vunpack.c.l.b16 %v1161
      %v1258 = vunpack.c.l.b16 %v1162
      %v1259 = vunpack.c.l.b16 %v1163
      %v1260 = vunpack.c.l.b16 %v1164
      %v1261 = vunpack.c.l.b16 %v1165
      %v1262 = vunpack.c.l.b16 %v1166
      %v1263 = vunpack.c.l.b16 %v1167
      %v1264 = vunpack.c.l.b16 %v1168
      %v1265 = vunpack.c.l.b16 %v1169
      %v1266 = vunpack.c.l.b16 %v1170
      %v1267 = vunpack.c.l.b16 %v1171
      %v1268 = vunpack.c.l.b16 %v1172
      %v1269 = vunpack.c.l.b16 %v1173
      %v1270 = vunpack.c.l.b16 %v1174
      %v1271 = vunpack.c.l.b16 %v1175
      %v1272 = vunpack.c.l.b16 %v1176
      %v1273 = vunpack.c.l.b16 %v1177
      %v1274 = vunpack.c.l.b16 %v1178
      %v1275 = vunpack.c.l.b16 %v1179
      %v1276 = vunpack.c.l.b16 %v1180
      %v1277 = vunpack.c.l.b16 %v1181
      %v1278 = vunpack.c.l.b16 %v1182
      %v1279 = vunpack.c.l.b16 %v1183
      %v1280 = vunpack.c.l.b16 %v1184
      %v1281 = vunpack.c.l.b16 %v1185
      %v1282 = vunpack.c.l.b16 %v1186
      %v1283 = vunpack.c.l.b16 %v1187
      %v1284 = vunpack.c.l.b16 %v1188
      %v1285 = vunpack.c.l.b16 %v1189
      %v1286 = vunpack.c.l.b16 %v1190
      %v1287 = vunpack.c.l.b16 %v1191
      %v1288 = vunpack.c.l.b16 %v1192
      %v1289 = vunpack.c.l.b16 %v1193
      %v1290 = vunpack.c.l.b16 %v1194
      %v1291 = vunpack.c.l.b16 %v1195
      %v1292 = vunpack.c.l.b16 %v1196
      %v1293 = vunpack.c.l.b16 %v1197
      %v1294 = vunpack.c.l.b16 %v1198
      %v1295 = vunpack.c.l.b16 %v1199
      %v1296 = vunpack.c.l.b16 %v1200
      %v1297 = vunpack.c.l.b16 %v1201
      %v1298 = vpack.c.b16 %v1251, %v1250
      %v1299 = vpack.c.b16 %v1253, %v1252
      %v1300 = vpack.c.b16 %v1255, %v1254
      %v1301 = vpack.c.b16 %v1257, %v1256
      %v1302 = vpack.c.b16 %v1259, %v1258
      %v1303 = vpack.c.b16 %v1261, %v1260
      %v1304 = vpack.c.b16 %v1263, %v1262
      %v1305 = vpack.c.b16 %v1265, %v1264
      %v1306 = vpack.c.b16 %v1267, %v1266
      %v1307 = vpack.c.b16 %v1269, %v1268
      %v1308 = vpack.c.b16 %v1271, %v1270
      %v1309 = vpack.c.b16 %v1273, %v1272
      %v1310 = vpack.c.b16 %v1275, %v1274
      %v1311 = vpack.c.b16 %v1277, %v1276
      %v1312 = vpack.c.b16 %v1279, %v1278
      %v1313 = vpack.c.b16 %v1281, %v1280
      %v1314 = vpack.c.b16 %v1283, %v1282
      %v1315 = vpack.c.b16 %v1285, %v1284
      %v1316 = vpack.c.b16 %v1287, %v1286
      %v1317 = vpack.c.b16 %v1289, %v1288
      %v1318 = vpack.c.b16 %v1291, %v1290
      %v1319 = vpack.c.b16 %v1293, %v1292
      %v1320 = vpack.c.b16 %v1295, %v1294
      %v1321 = vpack.c.b16 %v1297, %v1296
      %1346 = vmatprep.subr.bf16.mxu0 0
      %1347 = vmatpush1.bf16.msra.mxu0 %v1298
      %1348 = vmatprep.subr.bf16.mxu0 0
      %1349 = vmatpush1.bf16.msra.mxu0 %v1299
      %1350 = vmatprep.subr.bf16.mxu0 0
      %1351 = vmatpush1.bf16.msra.mxu0 %v1300
      %1352 = vmatprep.subr.bf16.mxu0 0
      %1353 = vmatpush1.bf16.msra.mxu0 %v1301
      %1354 = vmatprep.subr.bf16.mxu0 0
      %1355 = vmatpush1.bf16.msra.mxu0 %v1302
      %1356 = vmatprep.subr.bf16.mxu0 0
      %1357 = vmatpush1.bf16.msra.mxu0 %v1303
      %1358 = vmatprep.subr.bf16.mxu0 0
      %1359 = vmatpush1.bf16.msra.mxu0 %v1304
      %1360 = vmatprep.subr.bf16.mxu0 0
      %1361 = vmatpush1.bf16.msra.mxu0 %v1305
      %1362 = vmatprep.subr.bf16.mxu0 0
      %1363 = vmatpush1.bf16.msra.mxu0 %v1306
      %1364 = vmatprep.subr.bf16.mxu0 0
      %1365 = vmatpush1.bf16.msra.mxu0 %v1307
      %1366 = vmatprep.subr.bf16.mxu0 0
      %1367 = vmatpush1.bf16.msra.mxu0 %v1308
      %1368 = vmatprep.subr.bf16.mxu0 0
      %1369 = vmatpush1.bf16.msra.mxu0 %v1309
      %1370 = vmatprep.subr.bf16.mxu0 0
      %1371 = vmatpush1.bf16.msra.mxu0 %v1310
      %1372 = vmatprep.subr.bf16.mxu0 0
      %1373 = vmatpush1.bf16.msra.mxu0 %v1311
      %1374 = vmatprep.subr.bf16.mxu0 0
      %1375 = vmatpush1.bf16.msra.mxu0 %v1312
      %1376 = vmatprep.subr.bf16.mxu0 0
      %1377 = vmatpush1.bf16.msra.mxu0 %v1313
      %1378 = vmatprep.mubr.bf16.mxu0 %v449
      %1379 = vmatmul.mubr.bf16.gmra.mrb[0].mxu0 %v448
      %v1380 = vpop.f32.mrb[0].mxu0
      %v1381 = vadd.f32 0.0, %v1380
      %v1382 = vpop.f32.mrb[0].mxu0
      %v1383 = vpop.f32.mrb[0].mxu0
      %v1384 = vadd.f32 0.0, %v1383
      %v1385 = vpop.f32.mrb[0].mxu0
      %1386 = vmatprep.mubr.bf16.mxu0 %v452
      %1387 = vmatmul.mubr.bf16.gmra.mrb[0].mxu0 %v451
      %v1388 = vpop.f32.mrb[0].mxu0
      %v1389 = vadd.f32 0.0, %v1388
      %v1390 = vpop.f32.mrb[0].mxu0
      %v1391 = vpop.f32.mrb[0].mxu0
      %v1392 = vadd.f32 0.0, %v1391
      %v1393 = vpop.f32.mrb[0].mxu0
      %1394 = vmatprep.mubr.bf16.mxu0 %v455
      %1395 = vmatmul.mubr.bf16.gmra.mrb[0].mxu0 %v454
      %v1396 = vpop.f32.mrb[0].mxu0
      %v1397 = vadd.f32 0.0, %v1396
      %v1398 = vpop.f32.mrb[0].mxu0
      %v1399 = vpop.f32.mrb[0].mxu0
      %v1400 = vadd.f32 0.0, %v1399
      %v1401 = vpop.f32.mrb[0].mxu0
      %1402 = vmatprep.mubr.bf16.mxu0 %v1151
      %1403 = vmatmul.mubr.bf16.gmra.mrb[0].mxu0 %v1150
      %v1404 = vpop.f32.mrb[0].mxu0
      %v1405 = vadd.f32 0.0, %v1404
      %v1406 = vpop.f32.mrb[0].mxu0
      %v1407 = vpop.f32.mrb[0].mxu0
      %v1408 = vadd.f32 0.0, %v1407
      %v1409 = vpop.f32.mrb[0].mxu0
      %1410 = vdwg.mxu0
      %1411 = vmatprep.subr.bf16.mxu0 0
      %1412 = vmatpush1.bf16.msra.mxu0 %v1314
      %1413 = vmatprep.subr.bf16.mxu0 0
      %1414 = vmatpush1.bf16.msra.mxu0 %v1315
      %1415 = vmatprep.subr.bf16.mxu0 0
      %1416 = vmatpush1.bf16.msra.mxu0 %v1316
      %1417 = vmatprep.subr.bf16.mxu0 0
      %1418 = vmatpush1.bf16.msra.mxu0 %v1317
      %1419 = vmatprep.subr.bf16.mxu0 0
      %1420 = vmatpush1.bf16.msra.mxu0 %v1318
      %1421 = vmatprep.subr.bf16.mxu0 0
      %1422 = vmatpush1.bf16.msra.mxu0 %v1319
      %1423 = vmatprep.subr.bf16.mxu0 0
      %1424 = vmatpush1.bf16.msra.mxu0 %v1320
      %1425 = vmatprep.subr.bf16.mxu0 0
      %1426 = vmatpush1.bf16.msra.mxu0 %v1321
      %1427 = vmatprep.subr.bf16.mxu0 0
      %1428 = vmatpush1.bf16.msra.mxu0 0
      %1429 = vmatprep.subr.bf16.mxu0 0
      %1430 = vmatpush1.bf16.msra.mxu0 0
      %1431 = vmatprep.subr.bf16.mxu0 0
      %1432 = vmatpush1.bf16.msra.mxu0 0
      %1433 = vmatprep.subr.bf16.mxu0 0
      %1434 = vmatpush1.bf16.msra.mxu0 0
      %1435 = vmatprep.subr.bf16.mxu0 0
      %1436 = vmatpush1.bf16.msra.mxu0 0
      %1437 = vmatprep.subr.bf16.mxu0 0
      %1438 = vmatpush1.bf16.msra.mxu0 0
      %1439 = vmatprep.subr.bf16.mxu0 0
      %1440 = vmatpush1.bf16.msra.mxu0 0
      %1441 = vmatprep.subr.bf16.mxu0 0
      %1442 = vmatpush1.bf16.msra.mxu0 0
      %1443 = vmatprep.mubr.bf16.mxu0 0
      %1444 = vmatmul.mubr.bf16.gmra.mrb[0].mxu0 %v450
      %v1445 = vpop.f32.mrb[0].mxu0
      %v1446 = vadd.f32 %v1381, %v1445
      %v1447 = vpop.f32.mrb[0].mxu0
      %v1448 = vpop.f32.mrb[0].mxu0
      %v1449 = vadd.f32 %v1384, %v1448
      %v1450 = vpop.f32.mrb[0].mxu0
      %1451 = vmatprep.mubr.bf16.mxu0 0
      %1452 = vmatmul.mubr.bf16.gmra.mrb[0].mxu0 %v453
      %v1453 = vpop.f32.mrb[0].mxu0
      %v1454 = vadd.f32 %v1389, %v1453
      %v1455 = vpop.f32.mrb[0].mxu0
      %v1456 = vpop.f32.mrb[0].mxu0
      %v1457 = vadd.f32 %v1392, %v1456
      %v1458 = vpop.f32.mrb[0].mxu0
      %1459 = vmatprep.mubr.bf16.mxu0 0
      %1460 = vmatmul.mubr.bf16.gmra.mrb[0].mxu0 %v456
      %v1461 = vpop.f32.mrb[0].mxu0
      %v1462 = vadd.f32 %v1397, %v1461
      %v1463 = vpop.f32.mrb[0].mxu0
      %v1464 = vpop.f32.mrb[0].mxu0
      %v1465 = vadd.f32 %v1400, %v1464
      %v1466 = vpop.f32.mrb[0].mxu0
      %1467 = vmatprep.mubr.bf16.mxu0 0
      %1468 = vmatmul.mubr.bf16.gmra.mrb[0].mxu0 %v1152
      %v1469 = vpop.f32.mrb[0].mxu0
      %v1470 = vadd.f32 %v1405, %v1469
      %v1471 = vpop.f32.mrb[0].mxu0
      %v1472 = vpop.f32.mrb[0].mxu0
      %v1473 = vadd.f32 %v1408, %v1472
      %v1474 = vpop.f32.mrb[0].mxu0
      %1475 = vdwg.mxu0
      %v1476 = vadd.f32 %v1132, %v1446
      %v1477 = vadd.f32 %v1133, %v1449
      %v1478 = vadd.f32 %v1134, %v1454
      %v1479 = vadd.f32 %v1135, %v1457
      %v1480 = vadd.f32 %v1136, %v1462
      %v1481 = vadd.f32 %v1137, %v1465
      %v1482 = vadd.f32 %v1138, %v1470
      %v1483 = vadd.f32 %v1139, %v1473
      %1484 = vst [vmem:[#allocation2] sm:$0xff] %v1476
      %1485 = vst [vmem:[#allocation2 + $0x8] sm:$0xff] %v1477
      %1486 = vst [vmem:[#allocation2 + $0x10] sm:$0xff] %v1478
      %1487 = vst [vmem:[#allocation2 + $0x18] sm:$0xff] %v1479
      %1488 = vst [vmem:[#allocation2 + $0x20] sm:$0xff] %v1480
      %1489 = vst [vmem:[#allocation2 + $0x28] sm:$0xff] %v1481
      %1490 = vst [vmem:[#allocation2 + $0x30] sm:$0xff] %v1482
      %1491 = vst [vmem:[#allocation2 + $0x38] sm:$0xff] %v1483
      %p1492 = scmp.eq.s32.totalorder %s22, 2
      // Predicated region
      $region41: #{basic_block_3d.3} parent=35 // pred_check
        %p1493 = pneg %p1492
      $region42: #{basic_block_3d.3} parent=35 // pred_check_branch
        %1495 = sbr.rel (%p1493) target = $region44
      $region43: #{basic_block_3d.3} parent=35 // pred_region
        %v1496 = vld [vmem:[#allocation2] sm:$0xff]
        %v1497 = vld [vmem:[#allocation2 + $0x8] sm:$0xff]
        %v1498 = vld [vmem:[#allocation2 + $0x10] sm:$0xff]
        %v1499 = vld [vmem:[#allocation2 + $0x18] sm:$0xff]
        %v1500 = vld [vmem:[#allocation2 + $0x20] sm:$0xff]
        %v1501 = vld [vmem:[#allocation2 + $0x28] sm:$0xff]
        %v1502 = vld [vmem:[#allocation2 + $0x30] sm:$0xff]
        %v1503 = vld [vmem:[#allocation2 + $0x38] sm:$0xff]
        %v1504 = vld [vmem:[%s2] sm:$0x1]
        %v1506 = vlaneseq
        %v1507 = vshrl.u32 %v1506, 7
        %v1508 = vsub.s32 0, %v1507
        %v1509 = vrot.slane %v1504, %v1508
        %v1511 = vadd.f32 %v1496, %v1509
        %v1512 = vadd.f32 %v1497, %v1509
        %v1513 = vadd.f32 %v1498, %v1509
        %v1514 = vadd.f32 %v1499, %v1509
        %v1515 = vadd.f32 %v1500, %v1509
        %v1516 = vadd.f32 %v1501, %v1509
        %v1517 = vadd.f32 %v1502, %v1509
        %v1518 = vadd.f32 %v1503, %v1509
        %v1519 = vld [vmem:[%s292] sm:$0xff]
        %v1520 = vld [vmem:[%s292 + $0x8] sm:$0xff]
        %v1521 = vld [vmem:[%s292 + $0x10] sm:$0xff]
        %v1522 = vld [vmem:[%s292 + $0x18] sm:$0xff]
        %v1523 = vld [vmem:[%s292 + $0x20] sm:$0xff]
        %v1524 = vld [vmem:[%s292 + $0x28] sm:$0xff]
        %v1525 = vld [vmem:[%s292 + $0x30] sm:$0xff]
        %v1526 = vld [vmem:[%s292 + $0x38] sm:$0xff]
        %v1527 = vadd.f32 %v1511, %v1519
        %v1528 = vadd.f32 %v1512, %v1520
        %v1529 = vadd.f32 %v1513, %v1521
        %v1530 = vadd.f32 %v1514, %v1522
        %v1531 = vadd.f32 %v1515, %v1523
        %v1532 = vadd.f32 %v1516, %v1524
        %v1533 = vadd.f32 %v1517, %v1525
        %v1534 = vadd.f32 %v1518, %v1526
        %v1535 = vmax.f32 %v1527, 0.0
        %v1536 = vmax.f32 %v1528, 0.0
        %v1537 = vmax.f32 %v1529, 0.0
        %v1538 = vmax.f32 %v1530, 0.0
        %v1539 = vmax.f32 %v1531, 0.0
        %v1540 = vmax.f32 %v1532, 0.0
        %v1541 = vmax.f32 %v1533, 0.0
        %v1542 = vmax.f32 %v1534, 0.0
        %1543 = vst [vmem:[%s301] sm:$0xff] %v1535
        %1544 = vst [vmem:[%s301 + $0x8] sm:$0xff] %v1536
        %1545 = vst [vmem:[%s301 + $0x10] sm:$0xff] %v1537
        %1546 = vst [vmem:[%s301 + $0x18] sm:$0xff] %v1538
        %1547 = vst [vmem:[%s301 + $0x20] sm:$0xff] %v1539
        %1548 = vst [vmem:[%s301 + $0x28] sm:$0xff] %v1540
        %1549 = vst [vmem:[%s301 + $0x30] sm:$0xff] %v1541
        %1550 = vst [vmem:[%s301 + $0x38] sm:$0xff] %v1542
      $region44: #{basic_block_3d.3} parent=35 // pred_fallthru
        _
      %p1551 = scmp.lt.s32.totalorder %s20, 1
      %s1552 = scalar_select %p1551, %s20, 1
      %p1553 = scmp.lt.s32.totalorder %s21, 3
      %s1554 = scalar_select %p1553, %s21, 3
      %s1555 = smul.addr %s1554, 8
      %s1556 = smul.addr %s1552, 32
      %s1557 = sadd.s32 %s1555, %s1556
      %s1558 = smul.addr %s1557, 8
      %s1559 = scalar_lea.vmem %s4, %s1558
      // Predicated region
      $region45: #{basic_block_3d.3} parent=35 // pred_check
        %p1560 = pneg %p159
      $region46: #{basic_block_3d.3} parent=35 // pred_check_branch
        %1562 = sbr.rel (%p1560) target = $region48
      $region47: #{basic_block_3d.3} parent=35 // pred_region
        _
      $region48: #{basic_block_3d.3} parent=35 // pred_fallthru
        _
    $region36: #{basic_block_3d.3} parent=5 // pred_fallthru
      _
    %p1563 = scmp.le.s32.totalorder 2, %s10
    // Predicated region
    $region49: #{basic_block_3d.3} parent=5 // pred_check
      %p1564 = pneg %p1563
    $region50: #{basic_block_3d.3} parent=5 // pred_check_branch
      %1566 = sbr.rel (%p1564) target = $region52
    $region51: #{basic_block_3d.3} parent=5 // pred_region
      %s1567 = ssub.s32 %s10, 2
      // Predicated region
      $region53: #{basic_block_3d.3} parent=51 // pred_check
        %p1568 = pneg %p165
      $region54: #{basic_block_3d.3} parent=51 // pred_check_branch
        %1570 = sbr.rel (%p1568) target = $region56
      $region55: #{basic_block_3d.3} parent=51 // pred_region
        %p1571 = scmp.lt.s32.totalorder %s23, 1
        %s1572 = scalar_select %p1571, %s23, 1
        %p1573 = scmp.lt.s32.totalorder %s24, 3
        %s1574 = scalar_select %p1573, %s24, 3
        %s1575 = smul.addr %s1574, 8
        %s1576 = smul.addr %s1572, 32
        %s1577 = sadd.s32 %s1575, %s1576
        %s1578 = smul.addr %s1577, 8
        %s1579 = scalar_lea.vmem %s4, %s1578
      $region56: #{basic_block_3d.3} parent=51 // pred_fallthru
        _
    $region52: #{basic_block_3d.3} parent=5 // pred_fallthru
      _
  $region6: #{basic_block_3d.3} parent=0 // loop_footer
    %s14 = sadd.s32 1, %s10
  $region7: #{basic_block_3d.3} parent=0 // loop_footer_branch
    %9 = sbr.rel target = $region3
  $region8: #{basic_block_3d.3} parent=0 // loop_exit
    _

// kernel: basic_block_3d.2
$region0: #{basic_block_3d.2}
  #allocation0 [shape = 'u32[]', space=smem, size = 0x4, offset = 0x4, fixed_abs, tag = 'smem constant byte address 0x4 - core index']
  #allocation1 [shape = 'u32[144,128]{1,0:T(1,128)}', space=vmem, size = 0x12000, scoped, tag = 'internal scratch']
  #allocation2 [shape = 'f32[64,128]{1,0:T(8,128)}', space=vmem, size = 0x8000, scoped, tag = 'scratch operand']
  %s0 = inlined_call_operand.vmem [shape: bf16[2,6,10,10,128], index: 0, kind: input, shape index: {}]
  %s1 = inlined_call_operand.vmem [shape: bf16[3,3,384,128], index: 1, kind: input, shape index: {}]
  %s2 = inlined_call_operand.vmem [shape: f32[1,128], index: 2, kind: input, shape index: {}]
  %s3 = inlined_call_operand.vmem [shape: bf16[2,4,64,128], index: 3, kind: output, shape index: {}]
  %s4 = sld [smem:[#allocation0]]
  $region53: #{basic_block_3d.2} parent=0
    _
  %s6 = ssub.s32 1, %s4
  %s7 = scalar_select 0, %s6, %s4
  loop: start=0, step=1, limit=26
  $region2: #{basic_block_3d.2} parent=0 // loop_pre_header
    _
  $region3: #{basic_block_3d.2} parent=0 // loop_header
    %s9 = sphi 0, %s13
    %p10 = scmp.ge.s32.totalorder %s9, 26
    %s16 = sphi 0, %s35
    %s17 = sphi 0, %s31
    %s18 = sphi 0, %s27
    %s19 = sphi 0, %s16
    %s20 = sphi 0, %s17
    %s21 = sphi 0, %s18
    %s22 = sphi 0, %s19
    %s23 = sphi 0, %s20
    %s24 = sphi 0, %s21
    %s42 = sphi 0, %s44
    %s45 = sphi 0, %s42
    %s46 = sphi 0, %s45
    %s62 = sphi 0, %s46
    %s68 = sphi 0, %s70
    %s71 = sphi 0, %s68
    %s72 = sphi 0, %s71
    %s88 = sphi 0, %s72
    %s92 = sphi 0, %s92
    %s94 = sphi 0, %s92
    %s95 = sphi 0, %s94
    %s109 = sphi 0, %s95
    %s117 = sphi 0, %s119
    %s120 = sphi 0, %s117
    %s121 = sphi 0, %s120
    %s137 = sphi 0, %s121
  $region4: #{basic_block_3d.2} parent=0 // loop_header_branch
    %12 = sbr.rel (%p10) target = $region8
  $region5: #{basic_block_3d.2} parent=0 // loop_body
    %s14 = ssub.s32 %s9, 1
    %s15 = ssub.s32 %s9, 2
    %s25 = sadd.s32 1, %s18
    %p26 = scmp.ge.s32.totalorder %s25, 3
    %s27 = scalar_select %p26, 0, %s25
    %s28 = sadd.s32 1, %s17
    %s29 = scalar_select %p26, %s28, %s17
    %p30 = scmp.ge.s32.totalorder %s29, 4
    %s31 = scalar_select %p30, 0, %s29
    %s32 = sadd.s32 1, %s16
    %s33 = scalar_select %p30, %s32, %s16
    %p34 = scmp.ge.s32.totalorder %s33, 2
    %s35 = scalar_select %p34, 0, %s33
    %s36 = sadd.s32 %s17, %s18
    %s37 = sadd.s32 %s31, %s27
    %s38 = ssub.s32 %s16, %s35
    %s39 = ssub.s32 %s36, %s37
    %s40 = sor.u32 %s38, %s39
    %p41 = scmp.eq.s32.totalorder %s40, 0
    %s43 = sadd.s32 %s42, 1
    %s44 = scalar_select %p41, %s42, %s43
    %p47 = pneg %p41
    %p48 = scmp.eq.s32.totalorder %s9, 23
    %p49 = por %p47, %p48
    %p50 = scmp.ne.s32.totalorder %s42, %s45
    %p51 = scmp.eq.s32.totalorder %s9, 0
    %p52 = por %p50, %p51
    %p53 = scmp.ne.s32.totalorder %s42, %s45
    %p54 = scmp.eq.s32.totalorder %s14, 23
    %p55 = por %p53, %p54
    %p56 = scmp.ne.s32.totalorder %s45, %s46
    %p57 = scmp.eq.s32.totalorder %s14, 0
    %p58 = por %p56, %p57
    %p59 = scmp.ne.s32.totalorder %s45, %s46
    %p60 = scmp.eq.s32.totalorder %s15, 23
    %p61 = por %p59, %p60
    %p63 = scmp.ne.s32.totalorder %s46, %s62
    %p64 = scmp.eq.s32.totalorder %s15, 0
    %p65 = por %p63, %p64
    %s66 = ssub.s32 %s18, %s27
    %p67 = scmp.eq.s32.totalorder %s66, 0
    %s69 = sadd.s32 %s68, 1
    %s70 = scalar_select %p67, %s68, %s69
    %p73 = pneg %p67
    %p74 = scmp.eq.s32.totalorder %s9, 23
    %p75 = por %p73, %p74
    %p76 = scmp.ne.s32.totalorder %s68, %s71
    %p77 = scmp.eq.s32.totalorder %s9, 0
    %p78 = por %p76, %p77
    %p79 = scmp.ne.s32.totalorder %s68, %s71
    %p80 = scmp.eq.s32.totalorder %s14, 23
    %p81 = por %p79, %p80
    %p82 = scmp.ne.s32.totalorder %s71, %s72
    %p83 = scmp.eq.s32.totalorder %s14, 0
    %p84 = por %p82, %p83
    %p85 = scmp.ne.s32.totalorder %s71, %s72
    %p86 = scmp.eq.s32.totalorder %s15, 23
    %p87 = por %p85, %p86
    %p89 = scmp.ne.s32.totalorder %s72, %s88
    %p90 = scmp.eq.s32.totalorder %s15, 0
    %p91 = por %p89, %p90
    %s93 = sadd.s32 %s92, 1
    %p96 = scmp.eq.s32.totalorder %s9, 23
    %p97 = scmp.ne.s32.totalorder %s92, %s94
    %p98 = scmp.eq.s32.totalorder %s9, 0
    %p99 = por %p97, %p98
    %p100 = scmp.ne.s32.totalorder %s92, %s94
    %p101 = scmp.eq.s32.totalorder %s14, 23
    %p102 = por %p100, %p101
    %p103 = scmp.ne.s32.totalorder %s94, %s95
    %p104 = scmp.eq.s32.totalorder %s14, 0
    %p105 = por %p103, %p104
    %p106 = scmp.ne.s32.totalorder %s94, %s95
    %p107 = scmp.eq.s32.totalorder %s15, 23
    %p108 = por %p106, %p107
    %p110 = scmp.ne.s32.totalorder %s95, %s109
    %p111 = scmp.eq.s32.totalorder %s15, 0
    %p112 = por %p110, %p111
    %s113 = ssub.s32 %s16, %s35
    %s114 = ssub.s32 %s17, %s31
    %s115 = sor.u32 %s113, %s114
    %p116 = scmp.eq.s32.totalorder %s115, 0
    %s118 = sadd.s32 %s117, 1
    %s119 = scalar_select %p116, %s117, %s118
    %p122 = pneg %p116
    %p123 = scmp.eq.s32.totalorder %s9, 23
    %p124 = por %p122, %p123
    %p125 = scmp.ne.s32.totalorder %s117, %s120
    %p126 = scmp.eq.s32.totalorder %s9, 0
    %p127 = por %p125, %p126
    %p128 = scmp.ne.s32.totalorder %s117, %s120
    %p129 = scmp.eq.s32.totalorder %s14, 23
    %p130 = por %p128, %p129
    %p131 = scmp.ne.s32.totalorder %s120, %s121
    %p132 = scmp.eq.s32.totalorder %s14, 0
    %p133 = por %p131, %p132
    %p134 = scmp.ne.s32.totalorder %s120, %s121
    %p135 = scmp.eq.s32.totalorder %s15, 23
    %p136 = por %p134, %p135
    %p138 = scmp.ne.s32.totalorder %s121, %s137
    %p139 = scmp.eq.s32.totalorder %s15, 0
    %p140 = por %p138, %p139
    %p141 = scmp.le.s32.totalorder 1, %s9
    %p142 = scmp.lt.s32.totalorder %s9, 25
    %p143 = pnand %p141, %p142
    %p144 = pneg %p143
    // Predicated region
    $region9: #{basic_block_3d.2} parent=5 // pred_check
      _
    $region10: #{basic_block_3d.2} parent=5 // pred_check_branch
      %146 = sbr.rel (%p143) target = $region12
    $region11: #{basic_block_3d.2} parent=5 // pred_region
      %s147 = ssub.s32 %s9, 1
      // Predicated region
      $region13: #{basic_block_3d.2} parent=11 // pred_check
        %p148 = pneg %p105
      $region14: #{basic_block_3d.2} parent=11 // pred_check_branch
        %150 = sbr.rel (%p148) target = $region16
      $region15: #{basic_block_3d.2} parent=11 // pred_region
        _
      $region16: #{basic_block_3d.2} parent=11 // pred_fallthru
        _
    $region12: #{basic_block_3d.2} parent=5 // pred_fallthru
      _
    %p151 = scmp.lt.s32.totalorder %s9, 24
    // Predicated region
    $region17: #{basic_block_3d.2} parent=5 // pred_check
      %p152 = pneg %p151
    $region18: #{basic_block_3d.2} parent=5 // pred_check_branch
      %154 = sbr.rel (%p152) target = $region20
    $region19: #{basic_block_3d.2} parent=5 // pred_region
      // Predicated region
      $region21: #{basic_block_3d.2} parent=19 // pred_check
        %p155 = pneg %p52
      $region22: #{basic_block_3d.2} parent=19 // pred_check_branch
        %157 = sbr.rel (%p155) target = $region24
      $region23: #{basic_block_3d.2} parent=19 // pred_region
        %s158 = sadd.s32 %s17, %s18
        %p159 = scmp.lt.s32.totalorder %s16, 1
        %s160 = scalar_select %p159, %s16, 1
        %p161 = scmp.lt.s32.totalorder %s158, 5
        %s162 = scalar_select %p161, %s158, 5
        %s163 = smul.addr %s162, 20
        %s164 = smul.addr %s160, 120
        %s165 = sadd.s32 %s163, %s164
        %s166 = smul.addr %s165, 4
        %s167 = scalar_lea.vmem %s0, %s166
        %s168 = sadd.s32 %s17, %s18
      $region24: #{basic_block_3d.2} parent=19 // pred_fallthru
        _
      // Predicated region
      $region25: #{basic_block_3d.2} parent=19 // pred_check
        %p169 = pneg %p78
      $region26: #{basic_block_3d.2} parent=19 // pred_check_branch
        %171 = sbr.rel (%p169) target = $region28
      $region27: #{basic_block_3d.2} parent=19 // pred_region
        %p172 = scmp.lt.s32.totalorder %s18, 2
        %s173 = scalar_select %p172, %s18, 2
        %s174 = smul.addr %s173, 144
        %s175 = smul.addr %s174, 4
        %s176 = scalar_lea.vmem %s1, %s175
      $region28: #{basic_block_3d.2} parent=19 // pred_fallthru
        _
    $region20: #{basic_block_3d.2} parent=5 // pred_fallthru
      _
    %p177 = scmp.le.s32.totalorder 1, %s9
    %p178 = scmp.lt.s32.totalorder %s9, 25
    %p179 = pnand %p177, %p178
    %p180 = pneg %p179
    // Predicated region
    $region29: #{basic_block_3d.2} parent=5 // pred_check
      _
    $region30: #{basic_block_3d.2} parent=5 // pred_check_branch
      %182 = sbr.rel (%p179) target = $region32
    $region31: #{basic_block_3d.2} parent=5 // pred_region
      %s183 = ssub.s32 %s9, 1
      %s184 = sadd.s32 %s20, %s21
      %p185 = scmp.lt.s32.totalorder %s19, 1
      %s186 = scalar_select %p185, %s19, 1
      %p187 = scmp.lt.s32.totalorder %s184, 5
      %s188 = scalar_select %p187, %s184, 5
      %s189 = smul.addr %s188, 20
      %s190 = smul.addr %s186, 120
      %s191 = sadd.s32 %s189, %s190
      %s192 = smul.addr %s191, 4
      %s193 = scalar_lea.vmem %s0, %s192
      %p194 = pneg %p58
      %p195 = pneg %p55
      %p196 = scmp.lt.s32.totalorder %s21, 2
      %s197 = scalar_select %p196, %s21, 2
      %s198 = smul.addr %s197, 144
      %s199 = smul.addr %s198, 4
      %s200 = scalar_lea.vmem %s1, %s199
      %p201 = pneg %p84
      %p202 = pneg %p81
      %p203 = pneg %p105
      %p204 = pneg %p102
      %p205 = pneg %p133
      %p206 = pneg %p130
      %p207 = scmp.lt.s32.totalorder %s19, 1
      %s208 = scalar_select %p207, %s19, 1
      %p209 = scmp.lt.s32.totalorder %s20, 3
      %s210 = scalar_select %p209, %s20, 3
      %s211 = smul.addr %s210, 8
      %s212 = smul.addr %s208, 32
      %s213 = sadd.s32 %s211, %s212
      %s214 = smul.addr %s213, 4
      %s215 = scalar_lea.vmem %s3, %s214
      %s216 = sadd.s32 %s20, %s21
      %p217 = scmp.lt.s32.totalorder %s19, 1
      %s218 = scalar_select %p217, %s19, 1
      %p219 = scmp.lt.s32.totalorder %s216, 5
      %s220 = scalar_select %p219, %s216, 5
      %s221 = smul.addr %s220, 20
      %s222 = smul.addr %s218, 120
      %s223 = sadd.s32 %s221, %s222
      %s224 = smul.addr %s223, 4
      %s225 = scalar_lea.vmem %s0, %s224
      %s226 = sadd.s32 %s20, %s21
      %p227 = scmp.lt.s32.totalorder %s21, 2
      %s228 = scalar_select %p227, %s21, 2
      %s229 = smul.addr %s228, 144
      %s230 = smul.addr %s229, 4
      %s231 = scalar_lea.vmem %s1, %s230
      %p232 = scmp.lt.s32.totalorder %s19, 1
      %s233 = scalar_select %p232, %s19, 1
      %p234 = scmp.lt.s32.totalorder %s20, 3
      %s235 = scalar_select %p234, %s20, 3
      %s236 = smul.addr %s235, 8
      %s237 = smul.addr %s233, 32
      %s238 = sadd.s32 %s236, %s237
      %s239 = smul.addr %s238, 4
      %s240 = scalar_lea.vmem %s3, %s239
      %p242 = scmp.eq.s32.totalorder %s21, 0
      // Predicated region
      $region33: #{basic_block_3d.2} parent=31 // pred_check
        %p243 = pneg %p242
      $region34: #{basic_block_3d.2} parent=31 // pred_check_branch
        %245 = sbr.rel (%p243) target = $region36
      $region35: #{basic_block_3d.2} parent=31 // pred_region
        %246 = vst [vmem:[#allocation2] sm:$0xff] 0.0
        %247 = vst [vmem:[#allocation2 + $0x8] sm:$0xff] 0.0
        %248 = vst [vmem:[#allocation2 + $0x10] sm:$0xff] 0.0
        %249 = vst [vmem:[#allocation2 + $0x18] sm:$0xff] 0.0
        %250 = vst [vmem:[#allocation2 + $0x20] sm:$0xff] 0.0
        %251 = vst [vmem:[#allocation2 + $0x28] sm:$0xff] 0.0
        %252 = vst [vmem:[#allocation2 + $0x30] sm:$0xff] 0.0
        %253 = vst [vmem:[#allocation2 + $0x38] sm:$0xff] 0.0
      $region36: #{basic_block_3d.2} parent=31 // pred_fallthru
        _
      %v254 = vld [vmem:[%s225] sm:$0xf]
      %v255 = vld [vmem:[%s225 + $0x4] sm:$0x1]
      %v256 = vld [vmem:[%s225 + $0x8] sm:$0xf]
      %v257 = vld [vmem:[%s225 + $0xc] sm:$0x1]
      %v258 = vld [vmem:[%s225 + $0x10] sm:$0xf]
      %v259 = vld [vmem:[%s225 + $0x14] sm:$0x1]
      %v260 = vld [vmem:[%s225 + $0x18] sm:$0xf]
      %v261 = vld [vmem:[%s225 + $0x1c] sm:$0x1]
      %v262 = vld [vmem:[%s225 + $0x20] sm:$0xf]
      %v263 = vld [vmem:[%s225 + $0x24] sm:$0x1]
      %v264 = vld [vmem:[%s225 + $0x28] sm:$0xf]
      %v265 = vld [vmem:[%s225 + $0x2c] sm:$0x1]
      %v266 = vld [vmem:[%s225 + $0x30] sm:$0xf]
      %v267 = vld [vmem:[%s225 + $0x34] sm:$0x1]
      %v268 = vld [vmem:[%s225 + $0x38] sm:$0xf]
      %v269 = vld [vmem:[%s225 + $0x3c] sm:$0x1]
      %v270 = vld [vmem:[%s225 + $0x40] sm:$0xf]
      %v271 = vld [vmem:[%s225 + $0x44] sm:$0x1]
      %v272 = vld [vmem:[%s225 + $0x48] sm:$0xf]
      %v273 = vld [vmem:[%s225 + $0x4c] sm:$0x1]
      %v274 = vunpack.c.l.bf16 %v254
      %v275 = vunpack.c.l.bf16 %v255
      %v276 = vunpack.c.l.bf16 %v256
      %v277 = vunpack.c.l.bf16 %v257
      %v278 = vunpack.c.l.bf16 %v258
      %v279 = vunpack.c.l.bf16 %v259
      %v280 = vunpack.c.l.bf16 %v260
      %v281 = vunpack.c.l.bf16 %v261
      %v282 = vunpack.c.l.bf16 %v262
      %v283 = vunpack.c.l.bf16 %v263
      %v284 = vunpack.c.l.bf16 %v264
      %v285 = vunpack.c.l.bf16 %v265
      %v286 = vunpack.c.l.bf16 %v266
      %v287 = vunpack.c.l.bf16 %v267
      %v288 = vunpack.c.l.bf16 %v268
      %v289 = vunpack.c.l.bf16 %v269
      %v290 = vunpack.c.l.bf16 %v270
      %v291 = vunpack.c.l.bf16 %v271
      %v292 = vunpack.c.l.bf16 %v272
      %v293 = vunpack.c.l.bf16 %v273
      %v294 = vld [vmem:[#allocation2] sm:$0xff]
      %v295 = vld [vmem:[#allocation2 + $0x8] sm:$0xff]
      %v296 = vld [vmem:[#allocation2 + $0x10] sm:$0xff]
      %v297 = vld [vmem:[#allocation2 + $0x18] sm:$0xff]
      %v298 = vld [vmem:[#allocation2 + $0x20] sm:$0xff]
      %v299 = vld [vmem:[#allocation2 + $0x28] sm:$0xff]
      %v300 = vld [vmem:[#allocation2 + $0x30] sm:$0xff]
      %v301 = vld [vmem:[#allocation2 + $0x38] sm:$0xff]
      %vm318 = vcmask 1046528
      %v319 = vrot.slane %v274, 1
      %v320 = vrot.slane %v275, 1
      %v321 = vsel %vm318, %v319, %v320
      %v322 = vrot.slane %v276, 1
      %v323 = vrot.slane %v277, 1
      %v324 = vsel %vm318, %v322, %v323
      %v325 = vrot.slane %v278, 1
      %v326 = vrot.slane %v279, 1
      %v327 = vsel %vm318, %v325, %v326
      %v328 = vrot.slane %v280, 1
      %v329 = vrot.slane %v281, 1
      %v330 = vsel %vm318, %v328, %v329
      %v331 = vrot.slane %v282, 1
      %v332 = vrot.slane %v283, 1
      %v333 = vsel %vm318, %v331, %v332
      %v334 = vrot.slane %v284, 1
      %v335 = vrot.slane %v285, 1
      %v336 = vsel %vm318, %v334, %v335
      %v337 = vrot.slane %v286, 1
      %v338 = vrot.slane %v287, 1
      %v339 = vsel %vm318, %v337, %v338
      %v340 = vrot.slane %v288, 1
      %v341 = vrot.slane %v289, 1
      %v342 = vsel %vm318, %v340, %v341
      %vm351 = vcmask 1045504
      %v352 = vrot.slane %v274, 2
      %v353 = vrot.slane %v275, 2
      %v354 = vsel %vm351, %v352, %v353
      %v355 = vrot.slane %v276, 2
      %v356 = vrot.slane %v277, 2
      %v357 = vsel %vm351, %v355, %v356
      %v358 = vrot.slane %v278, 2
      %v359 = vrot.slane %v279, 2
      %v360 = vsel %vm351, %v358, %v359
      %v361 = vrot.slane %v280, 2
      %v362 = vrot.slane %v281, 2
      %v363 = vsel %vm351, %v361, %v362
      %v364 = vrot.slane %v282, 2
      %v365 = vrot.slane %v283, 2
      %v366 = vsel %vm351, %v364, %v365
      %v367 = vrot.slane %v284, 2
      %v368 = vrot.slane %v285, 2
      %v369 = vsel %vm351, %v367, %v368
      %v370 = vrot.slane %v286, 2
      %v371 = vrot.slane %v287, 2
      %v372 = vsel %vm351, %v370, %v371
      %v373 = vrot.slane %v288, 2
      %v374 = vrot.slane %v289, 2
      %v375 = vsel %vm351, %v373, %v374
      %v384 = vpack.c.bf16 %v276, %v274
      %v385 = vpack.c.bf16 %v324, %v321
      %v386 = vpack.c.bf16 %v357, %v354
      %v387 = vpack.c.bf16 %v280, %v278
      %v388 = vpack.c.bf16 %v330, %v327
      %v389 = vpack.c.bf16 %v363, %v360
      %v390 = vpack.c.bf16 %v284, %v282
      %v391 = vpack.c.bf16 %v336, %v333
      %v392 = vpack.c.bf16 %v369, %v366
      %v393 = vpack.c.bf16 %v288, %v286
      %v394 = vpack.c.bf16 %v342, %v339
      %v395 = vpack.c.bf16 %v375, %v372
      %v396 = vld [vmem:[%s231] sm:$0xf]
      %v397 = vld [vmem:[%s231 + $0x4] sm:$0xf]
      %v398 = vld [vmem:[%s231 + $0x8] sm:$0xf]
      %v399 = vld [vmem:[%s231 + $0xc] sm:$0xf]
      %v400 = vld [vmem:[%s231 + $0x10] sm:$0xf]
      %v401 = vld [vmem:[%s231 + $0x14] sm:$0xf]
      %v402 = vld [vmem:[%s231 + $0x18] sm:$0xf]
      %v403 = vld [vmem:[%s231 + $0x1c] sm:$0xf]
      %v404 = vld [vmem:[%s231 + $0x20] sm:$0xf]
      %v405 = vld [vmem:[%s231 + $0x24] sm:$0xf]
      %v406 = vld [vmem:[%s231 + $0x28] sm:$0xf]
      %v407 = vld [vmem:[%s231 + $0x2c] sm:$0xf]
      %v408 = vld [vmem:[%s231 + $0x30] sm:$0xf]
      %v409 = vld [vmem:[%s231 + $0x34] sm:$0xf]
      %v410 = vld [vmem:[%s231 + $0x38] sm:$0xf]
      %v411 = vld [vmem:[%s231 + $0x3c] sm:$0xf]
      %v412 = vld [vmem:[%s231 + $0x40] sm:$0xf]
      %v413 = vld [vmem:[%s231 + $0x44] sm:$0xf]
      %v414 = vld [vmem:[%s231 + $0x48] sm:$0xf]
      %v415 = vld [vmem:[%s231 + $0x4c] sm:$0xf]
      %v416 = vld [vmem:[%s231 + $0x50] sm:$0xf]
      %v417 = vld [vmem:[%s231 + $0x54] sm:$0xf]
      %v418 = vld [vmem:[%s231 + $0x58] sm:$0xf]
      %v419 = vld [vmem:[%s231 + $0x5c] sm:$0xf]
      %v420 = vld [vmem:[%s231 + $0x60] sm:$0xf]
      %v421 = vld [vmem:[%s231 + $0x64] sm:$0xf]
      %v422 = vld [vmem:[%s231 + $0x68] sm:$0xf]
      %v423 = vld [vmem:[%s231 + $0x6c] sm:$0xf]
      %v424 = vld [vmem:[%s231 + $0x70] sm:$0xf]
      %v425 = vld [vmem:[%s231 + $0x74] sm:$0xf]
      %v426 = vld [vmem:[%s231 + $0x78] sm:$0xf]
      %v427 = vld [vmem:[%s231 + $0x7c] sm:$0xf]
      %v428 = vld [vmem:[%s231 + $0x80] sm:$0xf]
      %v429 = vld [vmem:[%s231 + $0x84] sm:$0xf]
      %v430 = vld [vmem:[%s231 + $0x88] sm:$0xf]
      %v431 = vld [vmem:[%s231 + $0x8c] sm:$0xf]
      %v432 = vld [vmem:[%s231 + $0x90] sm:$0xf]
      %v433 = vld [vmem:[%s231 + $0x94] sm:$0xf]
      %v434 = vld [vmem:[%s231 + $0x98] sm:$0xf]
      %v435 = vld [vmem:[%s231 + $0x9c] sm:$0xf]
      %v436 = vld [vmem:[%s231 + $0xa0] sm:$0xf]
      %v437 = vld [vmem:[%s231 + $0xa4] sm:$0xf]
      %v438 = vld [vmem:[%s231 + $0xa8] sm:$0xf]
      %v439 = vld [vmem:[%s231 + $0xac] sm:$0xf]
      %v440 = vld [vmem:[%s231 + $0xb0] sm:$0xf]
      %v441 = vld [vmem:[%s231 + $0xb4] sm:$0xf]
      %v442 = vld [vmem:[%s231 + $0xb8] sm:$0xf]
      %v443 = vld [vmem:[%s231 + $0xbc] sm:$0xf]
      %v492 = vunpack.c.l.b16 %v396
      %v493 = vunpack.c.l.b16 %v397
      %v494 = vunpack.c.l.b16 %v398
      %v495 = vunpack.c.l.b16 %v399
      %v496 = vunpack.c.l.b16 %v400
      %v497 = vunpack.c.l.b16 %v401
      %v498 = vunpack.c.l.b16 %v402
      %v499 = vunpack.c.l.b16 %v403
      %v500 = vunpack.c.l.b16 %v404
      %v501 = vunpack.c.l.b16 %v405
      %v502 = vunpack.c.l.b16 %v406
      %v503 = vunpack.c.l.b16 %v407
      %v504 = vunpack.c.l.b16 %v408
      %v505 = vunpack.c.l.b16 %v409
      %v506 = vunpack.c.l.b16 %v410
      %v507 = vunpack.c.l.b16 %v411
      %v508 = vunpack.c.l.b16 %v412
      %v509 = vunpack.c.l.b16 %v413
      %v510 = vunpack.c.l.b16 %v414
      %v511 = vunpack.c.l.b16 %v415
      %v512 = vunpack.c.l.b16 %v416
      %v513 = vunpack.c.l.b16 %v417
      %v514 = vunpack.c.l.b16 %v418
      %v515 = vunpack.c.l.b16 %v419
      %v516 = vunpack.c.l.b16 %v420
      %v517 = vunpack.c.l.b16 %v421
      %v518 = vunpack.c.l.b16 %v422
      %v519 = vunpack.c.l.b16 %v423
      %v520 = vunpack.c.l.b16 %v424
      %v521 = vunpack.c.l.b16 %v425
      %v522 = vunpack.c.l.b16 %v426
      %v523 = vunpack.c.l.b16 %v427
      %v524 = vunpack.c.l.b16 %v428
      %v525 = vunpack.c.l.b16 %v429
      %v526 = vunpack.c.l.b16 %v430
      %v527 = vunpack.c.l.b16 %v431
      %v528 = vunpack.c.l.b16 %v432
      %v529 = vunpack.c.l.b16 %v433
      %v530 = vunpack.c.l.b16 %v434
      %v531 = vunpack.c.l.b16 %v435
      %v532 = vunpack.c.l.b16 %v436
      %v533 = vunpack.c.l.b16 %v437
      %v534 = vunpack.c.l.b16 %v438
      %v535 = vunpack.c.l.b16 %v439
      %v536 = vunpack.c.l.b16 %v440
      %v537 = vunpack.c.l.b16 %v441
      %v538 = vunpack.c.l.b16 %v442
      %v539 = vunpack.c.l.b16 %v443
      %v540 = vpack.c.b16 %v493, %v492
      %v541 = vpack.c.b16 %v495, %v494
      %v542 = vpack.c.b16 %v497, %v496
      %v543 = vpack.c.b16 %v499, %v498
      %v544 = vpack.c.b16 %v501, %v500
      %v545 = vpack.c.b16 %v503, %v502
      %v546 = vpack.c.b16 %v505, %v504
      %v547 = vpack.c.b16 %v507, %v506
      %v548 = vpack.c.b16 %v509, %v508
      %v549 = vpack.c.b16 %v511, %v510
      %v550 = vpack.c.b16 %v513, %v512
      %v551 = vpack.c.b16 %v515, %v514
      %v552 = vpack.c.b16 %v517, %v516
      %v553 = vpack.c.b16 %v519, %v518
      %v554 = vpack.c.b16 %v521, %v520
      %v555 = vpack.c.b16 %v523, %v522
      %v556 = vpack.c.b16 %v525, %v524
      %v557 = vpack.c.b16 %v527, %v526
      %v558 = vpack.c.b16 %v529, %v528
      %v559 = vpack.c.b16 %v531, %v530
      %v560 = vpack.c.b16 %v533, %v532
      %v561 = vpack.c.b16 %v535, %v534
      %v562 = vpack.c.b16 %v537, %v536
      %v563 = vpack.c.b16 %v539, %v538
      %588 = vmatprep.subr.bf16.mxu0 0
      %589 = vmatpush1.bf16.msra.mxu0 %v540
      %590 = vmatprep.subr.bf16.mxu0 0
      %591 = vmatpush1.bf16.msra.mxu0 %v541
      %592 = vmatprep.subr.bf16.mxu0 0
      %593 = vmatpush1.bf16.msra.mxu0 %v542
      %594 = vmatprep.subr.bf16.mxu0 0
      %595 = vmatpush1.bf16.msra.mxu0 %v543
      %596 = vmatprep.subr.bf16.mxu0 0
      %597 = vmatpush1.bf16.msra.mxu0 %v544
      %598 = vmatprep.subr.bf16.mxu0 0
      %599 = vmatpush1.bf16.msra.mxu0 %v545
      %600 = vmatprep.subr.bf16.mxu0 0
      %601 = vmatpush1.bf16.msra.mxu0 %v546
      %602 = vmatprep.subr.bf16.mxu0 0
      %603 = vmatpush1.bf16.msra.mxu0 %v547
      %604 = vmatprep.subr.bf16.mxu0 0
      %605 = vmatpush1.bf16.msra.mxu0 %v548
      %606 = vmatprep.subr.bf16.mxu0 0
      %607 = vmatpush1.bf16.msra.mxu0 %v549
      %608 = vmatprep.subr.bf16.mxu0 0
      %609 = vmatpush1.bf16.msra.mxu0 %v550
      %610 = vmatprep.subr.bf16.mxu0 0
      %611 = vmatpush1.bf16.msra.mxu0 %v551
      %612 = vmatprep.subr.bf16.mxu0 0
      %613 = vmatpush1.bf16.msra.mxu0 %v552
      %614 = vmatprep.subr.bf16.mxu0 0
      %615 = vmatpush1.bf16.msra.mxu0 %v553
      %616 = vmatprep.subr.bf16.mxu0 0
      %617 = vmatpush1.bf16.msra.mxu0 %v554
      %618 = vmatprep.subr.bf16.mxu0 0
      %619 = vmatpush1.bf16.msra.mxu0 %v555
      %620 = vmatprep.mubr.bf16.mxu0 %v385
      %621 = vmatmul.mubr.bf16.gmra.mrb[0].mxu0 %v384
      %v622 = vpop.f32.mrb[0].mxu0
      %v623 = vadd.f32 0.0, %v622
      %v624 = vpop.f32.mrb[0].mxu0
      %v625 = vpop.f32.mrb[0].mxu0
      %v626 = vadd.f32 0.0, %v625
      %v627 = vpop.f32.mrb[0].mxu0
      %628 = vmatprep.mubr.bf16.mxu0 %v388
      %629 = vmatmul.mubr.bf16.gmra.mrb[0].mxu0 %v387
      %v630 = vpop.f32.mrb[0].mxu0
      %v631 = vadd.f32 0.0, %v630
      %v632 = vpop.f32.mrb[0].mxu0
      %v633 = vpop.f32.mrb[0].mxu0
      %v634 = vadd.f32 0.0, %v633
      %v635 = vpop.f32.mrb[0].mxu0
      %636 = vmatprep.mubr.bf16.mxu0 %v391
      %637 = vmatmul.mubr.bf16.gmra.mrb[0].mxu0 %v390
      %v638 = vpop.f32.mrb[0].mxu0
      %v639 = vadd.f32 0.0, %v638
      %v640 = vpop.f32.mrb[0].mxu0
      %v641 = vpop.f32.mrb[0].mxu0
      %v642 = vadd.f32 0.0, %v641
      %v643 = vpop.f32.mrb[0].mxu0
      %644 = vmatprep.mubr.bf16.mxu0 %v394
      %645 = vmatmul.mubr.bf16.gmra.mrb[0].mxu0 %v393
      %v646 = vpop.f32.mrb[0].mxu0
      %v647 = vadd.f32 0.0, %v646
      %v648 = vpop.f32.mrb[0].mxu0
      %v649 = vpop.f32.mrb[0].mxu0
      %v650 = vadd.f32 0.0, %v649
      %v651 = vpop.f32.mrb[0].mxu0
      %652 = vdwg.mxu0
      %653 = vmatprep.subr.bf16.mxu0 0
      %654 = vmatpush1.bf16.msra.mxu0 %v556
      %655 = vmatprep.subr.bf16.mxu0 0
      %656 = vmatpush1.bf16.msra.mxu0 %v557
      %657 = vmatprep.subr.bf16.mxu0 0
      %658 = vmatpush1.bf16.msra.mxu0 %v558
      %659 = vmatprep.subr.bf16.mxu0 0
      %660 = vmatpush1.bf16.msra.mxu0 %v559
      %661 = vmatprep.subr.bf16.mxu0 0
      %662 = vmatpush1.bf16.msra.mxu0 %v560
      %663 = vmatprep.subr.bf16.mxu0 0
      %664 = vmatpush1.bf16.msra.mxu0 %v561
      %665 = vmatprep.subr.bf16.mxu0 0
      %666 = vmatpush1.bf16.msra.mxu0 %v562
      %667 = vmatprep.subr.bf16.mxu0 0
      %668 = vmatpush1.bf16.msra.mxu0 %v563
      %669 = vmatprep.subr.bf16.mxu0 0
      %670 = vmatpush1.bf16.msra.mxu0 0
      %671 = vmatprep.subr.bf16.mxu0 0
      %672 = vmatpush1.bf16.msra.mxu0 0
      %673 = vmatprep.subr.bf16.mxu0 0
      %674 = vmatpush1.bf16.msra.mxu0 0
      %675 = vmatprep.subr.bf16.mxu0 0
      %676 = vmatpush1.bf16.msra.mxu0 0
      %677 = vmatprep.subr.bf16.mxu0 0
      %678 = vmatpush1.bf16.msra.mxu0 0
      %679 = vmatprep.subr.bf16.mxu0 0
      %680 = vmatpush1.bf16.msra.mxu0 0
      %681 = vmatprep.subr.bf16.mxu0 0
      %682 = vmatpush1.bf16.msra.mxu0 0
      %683 = vmatprep.subr.bf16.mxu0 0
      %684 = vmatpush1.bf16.msra.mxu0 0
      %685 = vmatprep.mubr.bf16.mxu0 0
      %686 = vmatmul.mubr.bf16.gmra.mrb[0].mxu0 %v386
      %v687 = vpop.f32.mrb[0].mxu0
      %v688 = vadd.f32 %v623, %v687
      %v689 = vpop.f32.mrb[0].mxu0
      %v690 = vpop.f32.mrb[0].mxu0
      %v691 = vadd.f32 %v626, %v690
      %v692 = vpop.f32.mrb[0].mxu0
      %693 = vmatprep.mubr.bf16.mxu0 0
      %694 = vmatmul.mubr.bf16.gmra.mrb[0].mxu0 %v389
      %v695 = vpop.f32.mrb[0].mxu0
      %v696 = vadd.f32 %v631, %v695
      %v697 = vpop.f32.mrb[0].mxu0
      %v698 = vpop.f32.mrb[0].mxu0
      %v699 = vadd.f32 %v634, %v698
      %v700 = vpop.f32.mrb[0].mxu0
      %701 = vmatprep.mubr.bf16.mxu0 0
      %702 = vmatmul.mubr.bf16.gmra.mrb[0].mxu0 %v392
      %v703 = vpop.f32.mrb[0].mxu0
      %v704 = vadd.f32 %v639, %v703
      %v705 = vpop.f32.mrb[0].mxu0
      %v706 = vpop.f32.mrb[0].mxu0
      %v707 = vadd.f32 %v642, %v706
      %v708 = vpop.f32.mrb[0].mxu0
      %709 = vmatprep.mubr.bf16.mxu0 0
      %710 = vmatmul.mubr.bf16.gmra.mrb[0].mxu0 %v395
      %v711 = vpop.f32.mrb[0].mxu0
      %v712 = vadd.f32 %v647, %v711
      %v713 = vpop.f32.mrb[0].mxu0
      %v714 = vpop.f32.mrb[0].mxu0
      %v715 = vadd.f32 %v650, %v714
      %v716 = vpop.f32.mrb[0].mxu0
      %717 = vdwg.mxu0
      %v718 = vadd.f32 %v294, %v688
      %v719 = vadd.f32 %v295, %v691
      %v720 = vadd.f32 %v296, %v696
      %v721 = vadd.f32 %v297, %v699
      %v722 = vadd.f32 %v298, %v704
      %v723 = vadd.f32 %v299, %v707
      %v724 = vadd.f32 %v300, %v712
      %v725 = vadd.f32 %v301, %v715
      %v728 = vrot.slane %v290, 1
      %v729 = vrot.slane %v291, 1
      %v730 = vsel %vm318, %v728, %v729
      %v732 = vrot.slane %v290, 2
      %v733 = vrot.slane %v291, 2
      %v734 = vsel %vm351, %v732, %v733
      %v736 = vpack.c.bf16 %v278, %v276
      %v737 = vpack.c.bf16 %v327, %v324
      %v738 = vpack.c.bf16 %v360, %v357
      %v739 = vpack.c.bf16 %v282, %v280
      %v740 = vpack.c.bf16 %v333, %v330
      %v741 = vpack.c.bf16 %v366, %v363
      %v742 = vpack.c.bf16 %v286, %v284
      %v743 = vpack.c.bf16 %v339, %v336
      %v744 = vpack.c.bf16 %v372, %v369
      %v745 = vpack.c.bf16 %v290, %v288
      %v746 = vpack.c.bf16 %v730, %v342
      %v747 = vpack.c.bf16 %v734, %v375
      %s748 = scalar_lea.vmem %s231, 192
      %v749 = vld [vmem:[%s748] sm:$0xf]
      %v750 = vld [vmem:[%s748 + $0x4] sm:$0xf]
      %v751 = vld [vmem:[%s748 + $0x8] sm:$0xf]
      %v752 = vld [vmem:[%s748 + $0xc] sm:$0xf]
      %v753 = vld [vmem:[%s748 + $0x10] sm:$0xf]
      %v754 = vld [vmem:[%s748 + $0x14] sm:$0xf]
      %v755 = vld [vmem:[%s748 + $0x18] sm:$0xf]
      %v756 = vld [vmem:[%s748 + $0x1c] sm:$0xf]
      %v757 = vld [vmem:[%s748 + $0x20] sm:$0xf]
      %v758 = vld [vmem:[%s748 + $0x24] sm:$0xf]
      %v759 = vld [vmem:[%s748 + $0x28] sm:$0xf]
      %v760 = vld [vmem:[%s748 + $0x2c] sm:$0xf]
      %v761 = vld [vmem:[%s748 + $0x30] sm:$0xf]
      %v762 = vld [vmem:[%s748 + $0x34] sm:$0xf]
      %v763 = vld [vmem:[%s748 + $0x38] sm:$0xf]
      %v764 = vld [vmem:[%s748 + $0x3c] sm:$0xf]
      %v765 = vld [vmem:[%s748 + $0x40] sm:$0xf]
      %v766 = vld [vmem:[%s748 + $0x44] sm:$0xf]
      %v767 = vld [vmem:[%s748 + $0x48] sm:$0xf]
      %v768 = vld [vmem:[%s748 + $0x4c] sm:$0xf]
      %v769 = vld [vmem:[%s748 + $0x50] sm:$0xf]
      %v770 = vld [vmem:[%s748 + $0x54] sm:$0xf]
      %v771 = vld [vmem:[%s748 + $0x58] sm:$0xf]
      %v772 = vld [vmem:[%s748 + $0x5c] sm:$0xf]
      %v773 = vld [vmem:[%s748 + $0x60] sm:$0xf]
      %v774 = vld [vmem:[%s748 + $0x64] sm:$0xf]
      %v775 = vld [vmem:[%s748 + $0x68] sm:$0xf]
      %v776 = vld [vmem:[%s748 + $0x6c] sm:$0xf]
      %v777 = vld [vmem:[%s748 + $0x70] sm:$0xf]
      %v778 = vld [vmem:[%s748 + $0x74] sm:$0xf]
      %v779 = vld [vmem:[%s748 + $0x78] sm:$0xf]
      %v780 = vld [vmem:[%s748 + $0x7c] sm:$0xf]
      %v781 = vld [vmem:[%s748 + $0x80] sm:$0xf]
      %v782 = vld [vmem:[%s748 + $0x84] sm:$0xf]
      %v783 = vld [vmem:[%s748 + $0x88] sm:$0xf]
      %v784 = vld [vmem:[%s748 + $0x8c] sm:$0xf]
      %v785 = vld [vmem:[%s748 + $0x90] sm:$0xf]
      %v786 = vld [vmem:[%s748 + $0x94] sm:$0xf]
      %v787 = vld [vmem:[%s748 + $0x98] sm:$0xf]
      %v788 = vld [vmem:[%s748 + $0x9c] sm:$0xf]
      %v789 = vld [vmem:[%s748 + $0xa0] sm:$0xf]
      %v790 = vld [vmem:[%s748 + $0xa4] sm:$0xf]
      %v791 = vld [vmem:[%s748 + $0xa8] sm:$0xf]
      %v792 = vld [vmem:[%s748 + $0xac] sm:$0xf]
      %v793 = vld [vmem:[%s748 + $0xb0] sm:$0xf]
      %v794 = vld [vmem:[%s748 + $0xb4] sm:$0xf]
      %v795 = vld [vmem:[%s748 + $0xb8] sm:$0xf]
      %v796 = vld [vmem:[%s748 + $0xbc] sm:$0xf]
      %v845 = vunpack.c.l.b16 %v749
      %v846 = vunpack.c.l.b16 %v750
      %v847 = vunpack.c.l.b16 %v751
      %v848 = vunpack.c.l.b16 %v752
      %v849 = vunpack.c.l.b16 %v753
      %v850 = vunpack.c.l.b16 %v754
      %v851 = vunpack.c.l.b16 %v755
      %v852 = vunpack.c.l.b16 %v756
      %v853 = vunpack.c.l.b16 %v757
      %v854 = vunpack.c.l.b16 %v758
      %v855 = vunpack.c.l.b16 %v759
      %v856 = vunpack.c.l.b16 %v760
      %v857 = vunpack.c.l.b16 %v761
      %v858 = vunpack.c.l.b16 %v762
      %v859 = vunpack.c.l.b16 %v763
      %v860 = vunpack.c.l.b16 %v764
      %v861 = vunpack.c.l.b16 %v765
      %v862 = vunpack.c.l.b16 %v766
      %v863 = vunpack.c.l.b16 %v767
      %v864 = vunpack.c.l.b16 %v768
      %v865 = vunpack.c.l.b16 %v769
      %v866 = vunpack.c.l.b16 %v770
      %v867 = vunpack.c.l.b16 %v771
      %v868 = vunpack.c.l.b16 %v772
      %v869 = vunpack.c.l.b16 %v773
      %v870 = vunpack.c.l.b16 %v774
      %v871 = vunpack.c.l.b16 %v775
      %v872 = vunpack.c.l.b16 %v776
      %v873 = vunpack.c.l.b16 %v777
      %v874 = vunpack.c.l.b16 %v778
      %v875 = vunpack.c.l.b16 %v779
      %v876 = vunpack.c.l.b16 %v780
      %v877 = vunpack.c.l.b16 %v781
      %v878 = vunpack.c.l.b16 %v782
      %v879 = vunpack.c.l.b16 %v783
      %v880 = vunpack.c.l.b16 %v784
      %v881 = vunpack.c.l.b16 %v785
      %v882 = vunpack.c.l.b16 %v786
      %v883 = vunpack.c.l.b16 %v787
      %v884 = vunpack.c.l.b16 %v788
      %v885 = vunpack.c.l.b16 %v789
      %v886 = vunpack.c.l.b16 %v790
      %v887 = vunpack.c.l.b16 %v791
      %v888 = vunpack.c.l.b16 %v792
      %v889 = vunpack.c.l.b16 %v793
      %v890 = vunpack.c.l.b16 %v794
      %v891 = vunpack.c.l.b16 %v795
      %v892 = vunpack.c.l.b16 %v796
      %v893 = vpack.c.b16 %v846, %v845
      %v894 = vpack.c.b16 %v848, %v847
      %v895 = vpack.c.b16 %v850, %v849
      %v896 = vpack.c.b16 %v852, %v851
      %v897 = vpack.c.b16 %v854, %v853
      %v898 = vpack.c.b16 %v856, %v855
      %v899 = vpack.c.b16 %v858, %v857
      %v900 = vpack.c.b16 %v860, %v859
      %v901 = vpack.c.b16 %v862, %v861
      %v902 = vpack.c.b16 %v864, %v863
      %v903 = vpack.c.b16 %v866, %v865
      %v904 = vpack.c.b16 %v868, %v867
      %v905 = vpack.c.b16 %v870, %v869
      %v906 = vpack.c.b16 %v872, %v871
      %v907 = vpack.c.b16 %v874, %v873
      %v908 = vpack.c.b16 %v876, %v875
      %v909 = vpack.c.b16 %v878, %v877
      %v910 = vpack.c.b16 %v880, %v879
      %v911 = vpack.c.b16 %v882, %v881
      %v912 = vpack.c.b16 %v884, %v883
      %v913 = vpack.c.b16 %v886, %v885
      %v914 = vpack.c.b16 %v888, %v887
      %v915 = vpack.c.b16 %v890, %v889
      %v916 = vpack.c.b16 %v892, %v891
      %941 = vmatprep.subr.bf16.mxu0 0
      %942 = vmatpush1.bf16.msra.mxu0 %v893
      %943 = vmatprep.subr.bf16.mxu0 0
      %944 = vmatpush1.bf16.msra.mxu0 %v894
      %945 = vmatprep.subr.bf16.mxu0 0
      %946 = vmatpush1.bf16.msra.mxu0 %v895
      %947 = vmatprep.subr.bf16.mxu0 0
      %948 = vmatpush1.bf16.msra.mxu0 %v896
      %949 = vmatprep.subr.bf16.mxu0 0
      %950 = vmatpush1.bf16.msra.mxu0 %v897
      %951 = vmatprep.subr.bf16.mxu0 0
      %952 = vmatpush1.bf16.msra.mxu0 %v898
      %953 = vmatprep.subr.bf16.mxu0 0
      %954 = vmatpush1.bf16.msra.mxu0 %v899
      %955 = vmatprep.subr.bf16.mxu0 0
      %956 = vmatpush1.bf16.msra.mxu0 %v900
      %957 = vmatprep.subr.bf16.mxu0 0
      %958 = vmatpush1.bf16.msra.mxu0 %v901
      %959 = vmatprep.subr.bf16.mxu0 0
      %960 = vmatpush1.bf16.msra.mxu0 %v902
      %961 = vmatprep.subr.bf16.mxu0 0
      %962 = vmatpush1.bf16.msra.mxu0 %v903
      %963 = vmatprep.subr.bf16.mxu0 0
      %964 = vmatpush1.bf16.msra.mxu0 %v904
      %965 = vmatprep.subr.bf16.mxu0 0
      %966 = vmatpush1.bf16.msra.mxu0 %v905
      %967 = vmatprep.subr.bf16.mxu0 0
      %968 = vmatpush1.bf16.msra.mxu0 %v906
      %969 = vmatprep.subr.bf16.mxu0 0
      %970 = vmatpush1.bf16.msra.mxu0 %v907
      %971 = vmatprep.subr.bf16.mxu0 0
      %972 = vmatpush1.bf16.msra.mxu0 %v908
      %973 = vmatprep.mubr.bf16.mxu0 %v737
      %974 = vmatmul.mubr.bf16.gmra.mrb[0].mxu0 %v736
      %v975 = vpop.f32.mrb[0].mxu0
      %v976 = vadd.f32 0.0, %v975
      %v977 = vpop.f32.mrb[0].mxu0
      %v978 = vpop.f32.mrb[0].mxu0
      %v979 = vadd.f32 0.0, %v978
      %v980 = vpop.f32.mrb[0].mxu0
      %981 = vmatprep.mubr.bf16.mxu0 %v740
      %982 = vmatmul.mubr.bf16.gmra.mrb[0].mxu0 %v739
      %v983 = vpop.f32.mrb[0].mxu0
      %v984 = vadd.f32 0.0, %v983
      %v985 = vpop.f32.mrb[0].mxu0
      %v986 = vpop.f32.mrb[0].mxu0
      %v987 = vadd.f32 0.0, %v986
      %v988 = vpop.f32.mrb[0].mxu0
      %989 = vmatprep.mubr.bf16.mxu0 %v743
      %990 = vmatmul.mubr.bf16.gmra.mrb[0].mxu0 %v742
      %v991 = vpop.f32.mrb[0].mxu0
      %v992 = vadd.f32 0.0, %v991
      %v993 = vpop.f32.mrb[0].mxu0
      %v994 = vpop.f32.mrb[0].mxu0
      %v995 = vadd.f32 0.0, %v994
      %v996 = vpop.f32.mrb[0].mxu0
      %997 = vmatprep.mubr.bf16.mxu0 %v746
      %998 = vmatmul.mubr.bf16.gmra.mrb[0].mxu0 %v745
      %v999 = vpop.f32.mrb[0].mxu0
      %v1000 = vadd.f32 0.0, %v999
      %v1001 = vpop.f32.mrb[0].mxu0
      %v1002 = vpop.f32.mrb[0].mxu0
      %v1003 = vadd.f32 0.0, %v1002
      %v1004 = vpop.f32.mrb[0].mxu0
      %1005 = vdwg.mxu0
      %1006 = vmatprep.subr.bf16.mxu0 0
      %1007 = vmatpush1.bf16.msra.mxu0 %v909
      %1008 = vmatprep.subr.bf16.mxu0 0
      %1009 = vmatpush1.bf16.msra.mxu0 %v910
      %1010 = vmatprep.subr.bf16.mxu0 0
      %1011 = vmatpush1.bf16.msra.mxu0 %v911
      %1012 = vmatprep.subr.bf16.mxu0 0
      %1013 = vmatpush1.bf16.msra.mxu0 %v912
      %1014 = vmatprep.subr.bf16.mxu0 0
      %1015 = vmatpush1.bf16.msra.mxu0 %v913
      %1016 = vmatprep.subr.bf16.mxu0 0
      %1017 = vmatpush1.bf16.msra.mxu0 %v914
      %1018 = vmatprep.subr.bf16.mxu0 0
      %1019 = vmatpush1.bf16.msra.mxu0 %v915
      %1020 = vmatprep.subr.bf16.mxu0 0
      %1021 = vmatpush1.bf16.msra.mxu0 %v916
      %1022 = vmatprep.subr.bf16.mxu0 0
      %1023 = vmatpush1.bf16.msra.mxu0 0
      %1024 = vmatprep.subr.bf16.mxu0 0
      %1025 = vmatpush1.bf16.msra.mxu0 0
      %1026 = vmatprep.subr.bf16.mxu0 0
      %1027 = vmatpush1.bf16.msra.mxu0 0
      %1028 = vmatprep.subr.bf16.mxu0 0
      %1029 = vmatpush1.bf16.msra.mxu0 0
      %1030 = vmatprep.subr.bf16.mxu0 0
      %1031 = vmatpush1.bf16.msra.mxu0 0
      %1032 = vmatprep.subr.bf16.mxu0 0
      %1033 = vmatpush1.bf16.msra.mxu0 0
      %1034 = vmatprep.subr.bf16.mxu0 0
      %1035 = vmatpush1.bf16.msra.mxu0 0
      %1036 = vmatprep.subr.bf16.mxu0 0
      %1037 = vmatpush1.bf16.msra.mxu0 0
      %1038 = vmatprep.mubr.bf16.mxu0 0
      %1039 = vmatmul.mubr.bf16.gmra.mrb[0].mxu0 %v738
      %v1040 = vpop.f32.mrb[0].mxu0
      %v1041 = vadd.f32 %v976, %v1040
      %v1042 = vpop.f32.mrb[0].mxu0
      %v1043 = vpop.f32.mrb[0].mxu0
      %v1044 = vadd.f32 %v979, %v1043
      %v1045 = vpop.f32.mrb[0].mxu0
      %1046 = vmatprep.mubr.bf16.mxu0 0
      %1047 = vmatmul.mubr.bf16.gmra.mrb[0].mxu0 %v741
      %v1048 = vpop.f32.mrb[0].mxu0
      %v1049 = vadd.f32 %v984, %v1048
      %v1050 = vpop.f32.mrb[0].mxu0
      %v1051 = vpop.f32.mrb[0].mxu0
      %v1052 = vadd.f32 %v987, %v1051
      %v1053 = vpop.f32.mrb[0].mxu0
      %1054 = vmatprep.mubr.bf16.mxu0 0
      %1055 = vmatmul.mubr.bf16.gmra.mrb[0].mxu0 %v744
      %v1056 = vpop.f32.mrb[0].mxu0
      %v1057 = vadd.f32 %v992, %v1056
      %v1058 = vpop.f32.mrb[0].mxu0
      %v1059 = vpop.f32.mrb[0].mxu0
      %v1060 = vadd.f32 %v995, %v1059
      %v1061 = vpop.f32.mrb[0].mxu0
      %1062 = vmatprep.mubr.bf16.mxu0 0
      %1063 = vmatmul.mubr.bf16.gmra.mrb[0].mxu0 %v747
      %v1064 = vpop.f32.mrb[0].mxu0
      %v1065 = vadd.f32 %v1000, %v1064
      %v1066 = vpop.f32.mrb[0].mxu0
      %v1067 = vpop.f32.mrb[0].mxu0
      %v1068 = vadd.f32 %v1003, %v1067
      %v1069 = vpop.f32.mrb[0].mxu0
      %1070 = vdwg.mxu0
      %v1071 = vadd.f32 %v718, %v1041
      %v1072 = vadd.f32 %v719, %v1044
      %v1073 = vadd.f32 %v720, %v1049
      %v1074 = vadd.f32 %v721, %v1052
      %v1075 = vadd.f32 %v722, %v1057
      %v1076 = vadd.f32 %v723, %v1060
      %v1077 = vadd.f32 %v724, %v1065
      %v1078 = vadd.f32 %v725, %v1068
      %v1081 = vrot.slane %v292, 1
      %v1082 = vrot.slane %v293, 1
      %v1083 = vsel %vm318, %v1081, %v1082
      %v1085 = vrot.slane %v292, 2
      %v1086 = vrot.slane %v293, 2
      %v1087 = vsel %vm351, %v1085, %v1086
      %v1089 = vpack.c.bf16 %v292, %v290
      %v1090 = vpack.c.bf16 %v1083, %v730
      %v1091 = vpack.c.bf16 %v1087, %v734
      %s1092 = scalar_lea.vmem %s231, 384
      %v1093 = vld [vmem:[%s1092] sm:$0xf]
      %v1094 = vld [vmem:[%s1092 + $0x4] sm:$0xf]
      %v1095 = vld [vmem:[%s1092 + $0x8] sm:$0xf]
      %v1096 = vld [vmem:[%s1092 + $0xc] sm:$0xf]
      %v1097 = vld [vmem:[%s1092 + $0x10] sm:$0xf]
      %v1098 = vld [vmem:[%s1092 + $0x14] sm:$0xf]
      %v1099 = vld [vmem:[%s1092 + $0x18] sm:$0xf]
      %v1100 = vld [vmem:[%s1092 + $0x1c] sm:$0xf]
      %v1101 = vld [vmem:[%s1092 + $0x20] sm:$0xf]
      %v1102 = vld [vmem:[%s1092 + $0x24] sm:$0xf]
      %v1103 = vld [vmem:[%s1092 + $0x28] sm:$0xf]
      %v1104 = vld [vmem:[%s1092 + $0x2c] sm:$0xf]
      %v1105 = vld [vmem:[%s1092 + $0x30] sm:$0xf]
      %v1106 = vld [vmem:[%s1092 + $0x34] sm:$0xf]
      %v1107 = vld [vmem:[%s1092 + $0x38] sm:$0xf]
      %v1108 = vld [vmem:[%s1092 + $0x3c] sm:$0xf]
      %v1109 = vld [vmem:[%s1092 + $0x40] sm:$0xf]
      %v1110 = vld [vmem:[%s1092 + $0x44] sm:$0xf]
      %v1111 = vld [vmem:[%s1092 + $0x48] sm:$0xf]
      %v1112 = vld [vmem:[%s1092 + $0x4c] sm:$0xf]
      %v1113 = vld [vmem:[%s1092 + $0x50] sm:$0xf]
      %v1114 = vld [vmem:[%s1092 + $0x54] sm:$0xf]
      %v1115 = vld [vmem:[%s1092 + $0x58] sm:$0xf]
      %v1116 = vld [vmem:[%s1092 + $0x5c] sm:$0xf]
      %v1117 = vld [vmem:[%s1092 + $0x60] sm:$0xf]
      %v1118 = vld [vmem:[%s1092 + $0x64] sm:$0xf]
      %v1119 = vld [vmem:[%s1092 + $0x68] sm:$0xf]
      %v1120 = vld [vmem:[%s1092 + $0x6c] sm:$0xf]
      %v1121 = vld [vmem:[%s1092 + $0x70] sm:$0xf]
      %v1122 = vld [vmem:[%s1092 + $0x74] sm:$0xf]
      %v1123 = vld [vmem:[%s1092 + $0x78] sm:$0xf]
      %v1124 = vld [vmem:[%s1092 + $0x7c] sm:$0xf]
      %v1125 = vld [vmem:[%s1092 + $0x80] sm:$0xf]
      %v1126 = vld [vmem:[%s1092 + $0x84] sm:$0xf]
      %v1127 = vld [vmem:[%s1092 + $0x88] sm:$0xf]
      %v1128 = vld [vmem:[%s1092 + $0x8c] sm:$0xf]
      %v1129 = vld [vmem:[%s1092 + $0x90] sm:$0xf]
      %v1130 = vld [vmem:[%s1092 + $0x94] sm:$0xf]
      %v1131 = vld [vmem:[%s1092 + $0x98] sm:$0xf]
      %v1132 = vld [vmem:[%s1092 + $0x9c] sm:$0xf]
      %v1133 = vld [vmem:[%s1092 + $0xa0] sm:$0xf]
      %v1134 = vld [vmem:[%s1092 + $0xa4] sm:$0xf]
      %v1135 = vld [vmem:[%s1092 + $0xa8] sm:$0xf]
      %v1136 = vld [vmem:[%s1092 + $0xac] sm:$0xf]
      %v1137 = vld [vmem:[%s1092 + $0xb0] sm:$0xf]
      %v1138 = vld [vmem:[%s1092 + $0xb4] sm:$0xf]
      %v1139 = vld [vmem:[%s1092 + $0xb8] sm:$0xf]
      %v1140 = vld [vmem:[%s1092 + $0xbc] sm:$0xf]
      %v1189 = vunpack.c.l.b16 %v1093
      %v1190 = vunpack.c.l.b16 %v1094
      %v1191 = vunpack.c.l.b16 %v1095
      %v1192 = vunpack.c.l.b16 %v1096
      %v1193 = vunpack.c.l.b16 %v1097
      %v1194 = vunpack.c.l.b16 %v1098
      %v1195 = vunpack.c.l.b16 %v1099
      %v1196 = vunpack.c.l.b16 %v1100
      %v1197 = vunpack.c.l.b16 %v1101
      %v1198 = vunpack.c.l.b16 %v1102
      %v1199 = vunpack.c.l.b16 %v1103
      %v1200 = vunpack.c.l.b16 %v1104
      %v1201 = vunpack.c.l.b16 %v1105
      %v1202 = vunpack.c.l.b16 %v1106
      %v1203 = vunpack.c.l.b16 %v1107
      %v1204 = vunpack.c.l.b16 %v1108
      %v1205 = vunpack.c.l.b16 %v1109
      %v1206 = vunpack.c.l.b16 %v1110
      %v1207 = vunpack.c.l.b16 %v1111
      %v1208 = vunpack.c.l.b16 %v1112
      %v1209 = vunpack.c.l.b16 %v1113
      %v1210 = vunpack.c.l.b16 %v1114
      %v1211 = vunpack.c.l.b16 %v1115
      %v1212 = vunpack.c.l.b16 %v1116
      %v1213 = vunpack.c.l.b16 %v1117
      %v1214 = vunpack.c.l.b16 %v1118
      %v1215 = vunpack.c.l.b16 %v1119
      %v1216 = vunpack.c.l.b16 %v1120
      %v1217 = vunpack.c.l.b16 %v1121
      %v1218 = vunpack.c.l.b16 %v1122
      %v1219 = vunpack.c.l.b16 %v1123
      %v1220 = vunpack.c.l.b16 %v1124
      %v1221 = vunpack.c.l.b16 %v1125
      %v1222 = vunpack.c.l.b16 %v1126
      %v1223 = vunpack.c.l.b16 %v1127
      %v1224 = vunpack.c.l.b16 %v1128
      %v1225 = vunpack.c.l.b16 %v1129
      %v1226 = vunpack.c.l.b16 %v1130
      %v1227 = vunpack.c.l.b16 %v1131
      %v1228 = vunpack.c.l.b16 %v1132
      %v1229 = vunpack.c.l.b16 %v1133
      %v1230 = vunpack.c.l.b16 %v1134
      %v1231 = vunpack.c.l.b16 %v1135
      %v1232 = vunpack.c.l.b16 %v1136
      %v1233 = vunpack.c.l.b16 %v1137
      %v1234 = vunpack.c.l.b16 %v1138
      %v1235 = vunpack.c.l.b16 %v1139
      %v1236 = vunpack.c.l.b16 %v1140
      %v1237 = vpack.c.b16 %v1190, %v1189
      %v1238 = vpack.c.b16 %v1192, %v1191
      %v1239 = vpack.c.b16 %v1194, %v1193
      %v1240 = vpack.c.b16 %v1196, %v1195
      %v1241 = vpack.c.b16 %v1198, %v1197
      %v1242 = vpack.c.b16 %v1200, %v1199
      %v1243 = vpack.c.b16 %v1202, %v1201
      %v1244 = vpack.c.b16 %v1204, %v1203
      %v1245 = vpack.c.b16 %v1206, %v1205
      %v1246 = vpack.c.b16 %v1208, %v1207
      %v1247 = vpack.c.b16 %v1210, %v1209
      %v1248 = vpack.c.b16 %v1212, %v1211
      %v1249 = vpack.c.b16 %v1214, %v1213
      %v1250 = vpack.c.b16 %v1216, %v1215
      %v1251 = vpack.c.b16 %v1218, %v1217
      %v1252 = vpack.c.b16 %v1220, %v1219
      %v1253 = vpack.c.b16 %v1222, %v1221
      %v1254 = vpack.c.b16 %v1224, %v1223
      %v1255 = vpack.c.b16 %v1226, %v1225
      %v1256 = vpack.c.b16 %v1228, %v1227
      %v1257 = vpack.c.b16 %v1230, %v1229
      %v1258 = vpack.c.b16 %v1232, %v1231
      %v1259 = vpack.c.b16 %v1234, %v1233
      %v1260 = vpack.c.b16 %v1236, %v1235
      %1285 = vmatprep.subr.bf16.mxu0 0
      %1286 = vmatpush1.bf16.msra.mxu0 %v1237
      %1287 = vmatprep.subr.bf16.mxu0 0
      %1288 = vmatpush1.bf16.msra.mxu0 %v1238
      %1289 = vmatprep.subr.bf16.mxu0 0
      %1290 = vmatpush1.bf16.msra.mxu0 %v1239
      %1291 = vmatprep.subr.bf16.mxu0 0
      %1292 = vmatpush1.bf16.msra.mxu0 %v1240
      %1293 = vmatprep.subr.bf16.mxu0 0
      %1294 = vmatpush1.bf16.msra.mxu0 %v1241
      %1295 = vmatprep.subr.bf16.mxu0 0
      %1296 = vmatpush1.bf16.msra.mxu0 %v1242
      %1297 = vmatprep.subr.bf16.mxu0 0
      %1298 = vmatpush1.bf16.msra.mxu0 %v1243
      %1299 = vmatprep.subr.bf16.mxu0 0
      %1300 = vmatpush1.bf16.msra.mxu0 %v1244
      %1301 = vmatprep.subr.bf16.mxu0 0
      %1302 = vmatpush1.bf16.msra.mxu0 %v1245
      %1303 = vmatprep.subr.bf16.mxu0 0
      %1304 = vmatpush1.bf16.msra.mxu0 %v1246
      %1305 = vmatprep.subr.bf16.mxu0 0
      %1306 = vmatpush1.bf16.msra.mxu0 %v1247
      %1307 = vmatprep.subr.bf16.mxu0 0
      %1308 = vmatpush1.bf16.msra.mxu0 %v1248
      %1309 = vmatprep.subr.bf16.mxu0 0
      %1310 = vmatpush1.bf16.msra.mxu0 %v1249
      %1311 = vmatprep.subr.bf16.mxu0 0
      %1312 = vmatpush1.bf16.msra.mxu0 %v1250
      %1313 = vmatprep.subr.bf16.mxu0 0
      %1314 = vmatpush1.bf16.msra.mxu0 %v1251
      %1315 = vmatprep.subr.bf16.mxu0 0
      %1316 = vmatpush1.bf16.msra.mxu0 %v1252
      %1317 = vmatprep.mubr.bf16.mxu0 %v388
      %1318 = vmatmul.mubr.bf16.gmra.mrb[0].mxu0 %v387
      %v1319 = vpop.f32.mrb[0].mxu0
      %v1320 = vadd.f32 0.0, %v1319
      %v1321 = vpop.f32.mrb[0].mxu0
      %v1322 = vpop.f32.mrb[0].mxu0
      %v1323 = vadd.f32 0.0, %v1322
      %v1324 = vpop.f32.mrb[0].mxu0
      %1325 = vmatprep.mubr.bf16.mxu0 %v391
      %1326 = vmatmul.mubr.bf16.gmra.mrb[0].mxu0 %v390
      %v1327 = vpop.f32.mrb[0].mxu0
      %v1328 = vadd.f32 0.0, %v1327
      %v1329 = vpop.f32.mrb[0].mxu0
      %v1330 = vpop.f32.mrb[0].mxu0
      %v1331 = vadd.f32 0.0, %v1330
      %v1332 = vpop.f32.mrb[0].mxu0
      %1333 = vmatprep.mubr.bf16.mxu0 %v394
      %1334 = vmatmul.mubr.bf16.gmra.mrb[0].mxu0 %v393
      %v1335 = vpop.f32.mrb[0].mxu0
      %v1336 = vadd.f32 0.0, %v1335
      %v1337 = vpop.f32.mrb[0].mxu0
      %v1338 = vpop.f32.mrb[0].mxu0
      %v1339 = vadd.f32 0.0, %v1338
      %v1340 = vpop.f32.mrb[0].mxu0
      %1341 = vmatprep.mubr.bf16.mxu0 %v1090
      %1342 = vmatmul.mubr.bf16.gmra.mrb[0].mxu0 %v1089
      %v1343 = vpop.f32.mrb[0].mxu0
      %v1344 = vadd.f32 0.0, %v1343
      %v1345 = vpop.f32.mrb[0].mxu0
      %v1346 = vpop.f32.mrb[0].mxu0
      %v1347 = vadd.f32 0.0, %v1346
      %v1348 = vpop.f32.mrb[0].mxu0
      %1349 = vdwg.mxu0
      %1350 = vmatprep.subr.bf16.mxu0 0
      %1351 = vmatpush1.bf16.msra.mxu0 %v1253
      %1352 = vmatprep.subr.bf16.mxu0 0
      %1353 = vmatpush1.bf16.msra.mxu0 %v1254
      %1354 = vmatprep.subr.bf16.mxu0 0
      %1355 = vmatpush1.bf16.msra.mxu0 %v1255
      %1356 = vmatprep.subr.bf16.mxu0 0
      %1357 = vmatpush1.bf16.msra.mxu0 %v1256
      %1358 = vmatprep.subr.bf16.mxu0 0
      %1359 = vmatpush1.bf16.msra.mxu0 %v1257
      %1360 = vmatprep.subr.bf16.mxu0 0
      %1361 = vmatpush1.bf16.msra.mxu0 %v1258
      %1362 = vmatprep.subr.bf16.mxu0 0
      %1363 = vmatpush1.bf16.msra.mxu0 %v1259
      %1364 = vmatprep.subr.bf16.mxu0 0
      %1365 = vmatpush1.bf16.msra.mxu0 %v1260
      %1366 = vmatprep.subr.bf16.mxu0 0
      %1367 = vmatpush1.bf16.msra.mxu0 0
      %1368 = vmatprep.subr.bf16.mxu0 0
      %1369 = vmatpush1.bf16.msra.mxu0 0
      %1370 = vmatprep.subr.bf16.mxu0 0
      %1371 = vmatpush1.bf16.msra.mxu0 0
      %1372 = vmatprep.subr.bf16.mxu0 0
      %1373 = vmatpush1.bf16.msra.mxu0 0
      %1374 = vmatprep.subr.bf16.mxu0 0
      %1375 = vmatpush1.bf16.msra.mxu0 0
      %1376 = vmatprep.subr.bf16.mxu0 0
      %1377 = vmatpush1.bf16.msra.mxu0 0
      %1378 = vmatprep.subr.bf16.mxu0 0
      %1379 = vmatpush1.bf16.msra.mxu0 0
      %1380 = vmatprep.subr.bf16.mxu0 0
      %1381 = vmatpush1.bf16.msra.mxu0 0
      %1382 = vmatprep.mubr.bf16.mxu0 0
      %1383 = vmatmul.mubr.bf16.gmra.mrb[0].mxu0 %v389
      %v1384 = vpop.f32.mrb[0].mxu0
      %v1385 = vadd.f32 %v1320, %v1384
      %v1386 = vpop.f32.mrb[0].mxu0
      %v1387 = vpop.f32.mrb[0].mxu0
      %v1388 = vadd.f32 %v1323, %v1387
      %v1389 = vpop.f32.mrb[0].mxu0
      %1390 = vmatprep.mubr.bf16.mxu0 0
      %1391 = vmatmul.mubr.bf16.gmra.mrb[0].mxu0 %v392
      %v1392 = vpop.f32.mrb[0].mxu0
      %v1393 = vadd.f32 %v1328, %v1392
      %v1394 = vpop.f32.mrb[0].mxu0
      %v1395 = vpop.f32.mrb[0].mxu0
      %v1396 = vadd.f32 %v1331, %v1395
      %v1397 = vpop.f32.mrb[0].mxu0
      %1398 = vmatprep.mubr.bf16.mxu0 0
      %1399 = vmatmul.mubr.bf16.gmra.mrb[0].mxu0 %v395
      %v1400 = vpop.f32.mrb[0].mxu0
      %v1401 = vadd.f32 %v1336, %v1400
      %v1402 = vpop.f32.mrb[0].mxu0
      %v1403 = vpop.f32.mrb[0].mxu0
      %v1404 = vadd.f32 %v1339, %v1403
      %v1405 = vpop.f32.mrb[0].mxu0
      %1406 = vmatprep.mubr.bf16.mxu0 0
      %1407 = vmatmul.mubr.bf16.gmra.mrb[0].mxu0 %v1091
      %v1408 = vpop.f32.mrb[0].mxu0
      %v1409 = vadd.f32 %v1344, %v1408
      %v1410 = vpop.f32.mrb[0].mxu0
      %v1411 = vpop.f32.mrb[0].mxu0
      %v1412 = vadd.f32 %v1347, %v1411
      %v1413 = vpop.f32.mrb[0].mxu0
      %1414 = vdwg.mxu0
      %v1415 = vadd.f32 %v1071, %v1385
      %v1416 = vadd.f32 %v1072, %v1388
      %v1417 = vadd.f32 %v1073, %v1393
      %v1418 = vadd.f32 %v1074, %v1396
      %v1419 = vadd.f32 %v1075, %v1401
      %v1420 = vadd.f32 %v1076, %v1404
      %v1421 = vadd.f32 %v1077, %v1409
      %v1422 = vadd.f32 %v1078, %v1412
      %1423 = vst [vmem:[#allocation2] sm:$0xff] %v1415
      %1424 = vst [vmem:[#allocation2 + $0x8] sm:$0xff] %v1416
      %1425 = vst [vmem:[#allocation2 + $0x10] sm:$0xff] %v1417
      %1426 = vst [vmem:[#allocation2 + $0x18] sm:$0xff] %v1418
      %1427 = vst [vmem:[#allocation2 + $0x20] sm:$0xff] %v1419
      %1428 = vst [vmem:[#allocation2 + $0x28] sm:$0xff] %v1420
      %1429 = vst [vmem:[#allocation2 + $0x30] sm:$0xff] %v1421
      %1430 = vst [vmem:[#allocation2 + $0x38] sm:$0xff] %v1422
      %p1431 = scmp.eq.s32.totalorder %s21, 2
      // Predicated region
      $region37: #{basic_block_3d.2} parent=31 // pred_check
        %p1432 = pneg %p1431
      $region38: #{basic_block_3d.2} parent=31 // pred_check_branch
        %1434 = sbr.rel (%p1432) target = $region40
      $region39: #{basic_block_3d.2} parent=31 // pred_region
        %v1435 = vld [vmem:[#allocation2] sm:$0xff]
        %v1436 = vld [vmem:[#allocation2 + $0x8] sm:$0xff]
        %v1437 = vld [vmem:[#allocation2 + $0x10] sm:$0xff]
        %v1438 = vld [vmem:[#allocation2 + $0x18] sm:$0xff]
        %v1439 = vld [vmem:[#allocation2 + $0x20] sm:$0xff]
        %v1440 = vld [vmem:[#allocation2 + $0x28] sm:$0xff]
        %v1441 = vld [vmem:[#allocation2 + $0x30] sm:$0xff]
        %v1442 = vld [vmem:[#allocation2 + $0x38] sm:$0xff]
        %v1443 = vld [vmem:[%s2] sm:$0x1]
        %v1445 = vlaneseq
        %v1446 = vshrl.u32 %v1445, 7
        %v1447 = vsub.s32 0, %v1446
        %v1448 = vrot.slane %v1443, %v1447
        %v1450 = vadd.f32 %v1435, %v1448
        %v1451 = vadd.f32 %v1436, %v1448
        %v1452 = vadd.f32 %v1437, %v1448
        %v1453 = vadd.f32 %v1438, %v1448
        %v1454 = vadd.f32 %v1439, %v1448
        %v1455 = vadd.f32 %v1440, %v1448
        %v1456 = vadd.f32 %v1441, %v1448
        %v1457 = vadd.f32 %v1442, %v1448
        %v1458 = vmax.f32 %v1450, 0.0
        %v1459 = vmax.f32 %v1451, 0.0
        %v1460 = vmax.f32 %v1452, 0.0
        %v1461 = vmax.f32 %v1453, 0.0
        %v1462 = vmax.f32 %v1454, 0.0
        %v1463 = vmax.f32 %v1455, 0.0
        %v1464 = vmax.f32 %v1456, 0.0
        %v1465 = vmax.f32 %v1457, 0.0
        %v1466 = vpack.c.bf16 %v1459, %v1458
        %v1467 = vpack.c.bf16 %v1461, %v1460
        %v1468 = vpack.c.bf16 %v1463, %v1462
        %v1469 = vpack.c.bf16 %v1465, %v1464
        %v1474 = vunpack.c.l.b16 %v1466
        %v1475 = vunpack.c.h.b16 %v1466
        %v1476 = vunpack.c.l.b16 %v1467
        %v1477 = vunpack.c.h.b16 %v1467
        %v1478 = vunpack.c.l.b16 %v1468
        %v1479 = vunpack.c.h.b16 %v1468
        %v1480 = vunpack.c.l.b16 %v1469
        %v1481 = vunpack.c.h.b16 %v1469
        %v1482 = vpack.c.b16 %v1474, %v1474
        %v1483 = vpack.c.b16 %v1475, %v1475
        %v1484 = vpack.c.b16 %v1476, %v1476
        %v1485 = vpack.c.b16 %v1477, %v1477
        %v1486 = vpack.c.b16 %v1478, %v1478
        %v1487 = vpack.c.b16 %v1479, %v1479
        %v1488 = vpack.c.b16 %v1480, %v1480
        %v1489 = vpack.c.b16 %v1481, %v1481
        %1498 = vst [vmem:[%s240] sm:$0xf] %v1482
        %1499 = vst [vmem:[%s240 + $0x4] sm:$0xf] %v1483
        %1500 = vst [vmem:[%s240 + $0x8] sm:$0xf] %v1484
        %1501 = vst [vmem:[%s240 + $0xc] sm:$0xf] %v1485
        %1502 = vst [vmem:[%s240 + $0x10] sm:$0xf] %v1486
        %1503 = vst [vmem:[%s240 + $0x14] sm:$0xf] %v1487
        %1504 = vst [vmem:[%s240 + $0x18] sm:$0xf] %v1488
        %1505 = vst [vmem:[%s240 + $0x1c] sm:$0xf] %v1489
      $region40: #{basic_block_3d.2} parent=31 // pred_fallthru
        _
      %p1506 = scmp.lt.s32.totalorder %s19, 1
      %s1507 = scalar_select %p1506, %s19, 1
      %p1508 = scmp.lt.s32.totalorder %s20, 3
      %s1509 = scalar_select %p1508, %s20, 3
      %s1510 = smul.addr %s1509, 8
      %s1511 = smul.addr %s1507, 32
      %s1512 = sadd.s32 %s1510, %s1511
      %s1513 = smul.addr %s1512, 4
      %s1514 = scalar_lea.vmem %s3, %s1513
      // Predicated region
      $region41: #{basic_block_3d.2} parent=31 // pred_check
        %p1515 = pneg %p130
      $region42: #{basic_block_3d.2} parent=31 // pred_check_branch
        %1517 = sbr.rel (%p1515) target = $region44
      $region43: #{basic_block_3d.2} parent=31 // pred_region
        _
      $region44: #{basic_block_3d.2} parent=31 // pred_fallthru
        _
    $region32: #{basic_block_3d.2} parent=5 // pred_fallthru
      _
    %p1518 = scmp.le.s32.totalorder 2, %s9
    // Predicated region
    $region45: #{basic_block_3d.2} parent=5 // pred_check
      %p1519 = pneg %p1518
    $region46: #{basic_block_3d.2} parent=5 // pred_check_branch
      %1521 = sbr.rel (%p1519) target = $region48
    $region47: #{basic_block_3d.2} parent=5 // pred_region
      %s1522 = ssub.s32 %s9, 2
      // Predicated region
      $region49: #{basic_block_3d.2} parent=47 // pred_check
        %p1523 = pneg %p136
      $region50: #{basic_block_3d.2} parent=47 // pred_check_branch
        %1525 = sbr.rel (%p1523) target = $region52
      $region51: #{basic_block_3d.2} parent=47 // pred_region
        %p1526 = scmp.lt.s32.totalorder %s22, 1
        %s1527 = scalar_select %p1526, %s22, 1
        %p1528 = scmp.lt.s32.totalorder %s23, 3
        %s1529 = scalar_select %p1528, %s23, 3
        %s1530 = smul.addr %s1529, 8
        %s1531 = smul.addr %s1527, 32
        %s1532 = sadd.s32 %s1530, %s1531
        %s1533 = smul.addr %s1532, 4
        %s1534 = scalar_lea.vmem %s3, %s1533
      $region52: #{basic_block_3d.2} parent=47 // pred_fallthru
        _
    $region48: #{basic_block_3d.2} parent=5 // pred_fallthru
      _
  $region6: #{basic_block_3d.2} parent=0 // loop_footer
    %s13 = sadd.s32 1, %s9
  $region7: #{basic_block_3d.2} parent=0 // loop_footer_branch
    %8 = sbr.rel target = $region3
  $region8: #{basic_block_3d.2} parent=0 // loop_exit
    _

</llo_original>
